<compile_context>
chip_gen: v7x
topology: tpu7x:2x2x1
jax: 0.10.0
libtpu: 0.0.40
codegen_flags: <defaults>
</compile_context>

<pallas_src>
import functools

import jax
import jax.numpy as jnp
from jax.experimental import pallas as pl
from jax.experimental.pallas import tpu as pltpu


def _round_up(x, m):
    return ((x + m - 1) // m) * m


def _choose_row_tile(n, m, d_pad, h_pad, itemsize, budget_bytes=8 * 1024 * 1024):
    """Pick a node-row tile so the double-buffered working set stays small
    (conservative enough for v7x's 64 MiB VMEM / 32 MiB scoped default)."""
    per_node = m * d_pad * itemsize * 2            # streamed z tile (double-buffered)
    per_node += m * (h_pad + 128) * 4              # pass-1 intermediates (h, one-hot)
    per_node += d_pad * (itemsize + 4) * 2         # pass-2 output tile
    tile = budget_bytes // max(per_node, 1)
    tile = max(8, min(1024, (tile // 8) * 8))
    tile = min(tile, _round_up(n, 8))
    return int(tile)


# --------------------------------------------------------------------------- #
# Pass 1: per-view score sums over all nodes.
# --------------------------------------------------------------------------- #
def _score_kernel(zf_ref, w1_ref, b1_ref, w2t_ref, ssum_ref, *,
                  n_valid_rows, num_views, matmul_dtype):
    i = pl.program_id(0)

    @pl.when(i == 0)
    def _init():
        ssum_ref[...] = jnp.zeros_like(ssum_ref)

    # Projection MLP for every (node, view) row of this tile: MXU + EUP.
    z = zf_ref[...]                                                  # (TNF, Dp)
    h = jnp.tanh(
        jnp.dot(z.astype(matmul_dtype), w1_ref[...].astype(matmul_dtype),
                preferred_element_type=jnp.float32)
        + b1_ref[...])                                               # (TNF, Hp) f32

    # score(row) = h . w2  -> VPU multiply + lane reduce (no (H,1) MXU matmul).
    s_rows = jnp.sum(h * w2t_ref[...], axis=1, keepdims=True)        # (TNF, 1)

    tnf = zf_ref.shape[0]
    lanes = ssum_ref.shape[1]
    rows = i * tnf + jax.lax.broadcasted_iota(jnp.int32, (tnf, 1), 0)
    valid = rows < n_valid_rows                   # mask rows added by N-padding
    view = rows % num_views                       # metapath view of each flat row
    lane_ids = jax.lax.broadcasted_iota(jnp.int32, (tnf, lanes), 1)
    onehot = jnp.where(jnp.logical_and(valid, view == lane_ids), 1.0, 0.0)

    # Per-view partial sums land in lanes 0..M-1 of the resident accumulator.
    ssum_ref[...] += jnp.sum(onehot * s_rows, axis=0, keepdims=True)  # (1, lanes)


# --------------------------------------------------------------------------- #
# Pass 2: out[tile] = sum_m beta[m] * z[tile, m, :]   (HBM-bound, "parallel").
# --------------------------------------------------------------------------- #
def _weighted_sum_kernel(beta_ref, z_ref, o_ref):
    # beta_ref: (1, M, 1) f32, z_ref: (TN, M, Dp), o_ref: (TN, Dp)
    acc = jnp.sum(beta_ref[...] * z_ref[...].astype(jnp.float32), axis=1)
    o_ref[...] = acc.astype(o_ref.dtype)


def semantic_attention(z, w1, b1, w2, *, row_tile=None, matmul_dtype=jnp.bfloat16):
    """z: (N, M, D); w1: (D, H); b1: (1, H); w2: (H, 1)  ->  (N, D)."""
    N, M, D = z.shape
    Din, H = w1.shape
    assert Din == D and b1.shape == (1, H) and w2.shape == (H, 1)

    f32 = jnp.float32
    Dp = _round_up(D, 128)
    Hp = _round_up(H, 128)
    lanes = _round_up(max(M, 1), 128)

    if row_tile is None:
        row_tile = _choose_row_tile(N, M, Dp, Hp, z.dtype.itemsize)
    TN = _round_up(int(row_tile), 8)
    Np = _round_up(N, TN)
    num_tiles = Np // TN
    TNF = TN * M                                   # flat rows per pass-1 tile

    # -- wrapper-level padding to lane-dense shapes (exact: zero padding) ------
    if Dp != D or Hp != H:
        w1_p = jnp.zeros((Dp, Hp), w1.dtype).at[:D, :H].set(w1)
    else:
        w1_p = w1
    if Hp != H:
        b1_p = jnp.zeros((1, Hp), f32).at[:, :H].set(b1.astype(f32))
        w2t_p = jnp.zeros((1, Hp), f32).at[:, :H].set(w2.astype(f32).T)
    else:
        b1_p = b1.astype(f32)
        w2t_p = w2.astype(f32).T

    if Np != N or Dp != D:
        z_p = jnp.zeros((Np, M, Dp), z.dtype).at[:N, :, :D].set(z)
    else:
        z_p = z
    z_flat = z_p.reshape(Np * M, Dp)               # free metadata reshape in HBM

    vmem_limit = 32 * 1024 * 1024

    # ----------------------------- pass 1 ------------------------------------
    score_kernel = functools.partial(
        _score_kernel, n_valid_rows=N * M, num_views=M, matmul_dtype=matmul_dtype)

    ssum = pl.pallas_call(
        score_kernel,
        out_shape=jax.ShapeDtypeStruct((1, lanes), jnp.float32),
        grid=(num_tiles,),
        in_specs=[
            pl.BlockSpec((TNF, Dp), lambda i: (i, 0)),
            pl.BlockSpec((Dp, Hp), lambda i: (0, 0)),
            pl.BlockSpec((1, Hp), lambda i: (0, 0)),
            pl.BlockSpec((1, Hp), lambda i: (0, 0)),
        ],
        out_specs=pl.BlockSpec((1, lanes), lambda i: (0, 0)),
        compiler_params=pltpu.CompilerParams(
            dimension_semantics=("arbitrary",),     # global score accumulator
            vmem_limit_bytes=vmem_limit,
        ),
        cost_estimate=pl.CostEstimate(
            flops=int(2 * Np * M * Dp * Hp + 4 * Np * M * Hp),
            transcendentals=int(Np * M * Hp),
            bytes_accessed=int(z_flat.size * z_flat.dtype.itemsize
                               + (Dp * Hp + 2 * Hp + lanes) * 4),
        ),
    )(z_flat, w1_p, b1_p, w2t_p)

    # ----------------------------- softmax over M views ----------------------
    # Note: bf16 MXU operands slightly perturb the scores; they only feed this
    # M-way softmax, so the effect on the output is benign (documented).
    scores_mean = ssum[0, :M] / jnp.asarray(N, jnp.float32)
    beta = jax.nn.softmax(scores_mean)             # (M,)
    beta3 = beta.reshape(1, M, 1)

    # ----------------------------- pass 2 ------------------------------------
    out_p = pl.pallas_call(
        _weighted_sum_kernel,
        out_shape=jax.ShapeDtypeStruct((Np, Dp), z.dtype),
        grid=(num_tiles,),
        in_specs=[
            pl.BlockSpec((1, M, 1), lambda i: (0, 0, 0)),
            pl.BlockSpec((TN, M, Dp), lambda i: (i, 0, 0)),
        ],
        out_specs=pl.BlockSpec((TN, Dp), lambda i: (i, 0)),
        compiler_params=pltpu.CompilerParams(
            dimension_semantics=("parallel",),      # megacore-splittable on v7x
            vmem_limit_bytes=vmem_limit,
        ),
        cost_estimate=pl.CostEstimate(
            flops=int(2 * Np * M * Dp),
            transcendentals=0,
            bytes_accessed=int(z_p.size * z_p.dtype.itemsize
                               + Np * Dp * z.dtype.itemsize + M * 4),
        ),
    )(beta3, z_p)

    return out_p[:N, :D]


def semantic_attention_ref(z, w1, b1, w2, matmul_dtype=None):
    """Pure-JAX reference mirroring the PyTorch forward (optionally with the
    same bf16 projection-matmul operands as the kernel)."""
    if matmul_dtype is not None:
        pre = jnp.einsum("nmd,dh->nmh", z.astype(matmul_dtype),
                         w1.astype(matmul_dtype),
                         preferred_element_type=jnp.float32)
    else:
        pre = jnp.einsum("nmd,dh->nmh", z, w1)
    s = jnp.tanh(pre + b1) @ w2                    # (N, M, 1)
    w = s.mean(0)                                  # (M, 1)
    beta = jax.nn.softmax(w, axis=0)               # (M, 1)
    return (beta[None] * z).sum(1)                 # (N, D)


if __name__ == "__main__":
    # Small shapes consistent with the module: N nodes, M metapath views,
    # in_size features, hidden projection width.  Chosen to exercise D/H lane
    # padding, N-row padding/masking, and the multi-tile grid.
    N, M, in_size, hidden = 300, 4, 64, 96

    key = jax.random.PRNGKey(0)
    kz, kw1, kb1, kw2 = jax.random.split(key, 4)

    z = jax.random.normal(kz, (N, M, in_size), dtype=jnp.float32)
    w1 = jax.random.normal(kw1, (in_size, hidden), dtype=jnp.float32) * 0.1
    b1 = jax.random.normal(kb1, (1, hidden), dtype=jnp.float32) * 0.1
    w2 = jax.random.normal(kw2, (hidden, 1), dtype=jnp.float32) * 0.1

    ref_f32 = semantic_attention_ref(z, w1, b1, w2)
    ref_bf16 = semantic_attention_ref(z, w1, b1, w2, matmul_dtype=jnp.bfloat16)

    # Default path: auto tile, bf16 MXU operands for the projection matmul.
    out = jax.block_until_ready(semantic_attention(z, w1, b1, w2))
    assert out.shape == (N, in_size)
    assert jnp.allclose(out, ref_bf16, atol=1e-4, rtol=1e-4), "mismatch vs bf16 reference"
    assert jnp.allclose(out, ref_f32, atol=6e-2, rtol=6e-2), "mismatch vs f32 reference"

    # Multi-tile path must agree with the auto-tile path.
    out_tiled = jax.block_until_ready(semantic_attention(z, w1, b1, w2, row_tile=128))
    assert jnp.allclose(out_tiled, out, atol=1e-4, rtol=1e-4), "tile-size dependence"

    # Full-f32 matmul variant stays close to the exact reference.
    out_f32mm = jax.block_until_ready(
        semantic_attention(z, w1, b1, w2, row_tile=64, matmul_dtype=jnp.float32))
    assert jnp.allclose(out_f32mm, ref_f32, atol=6e-2, rtol=6e-2), "f32-matmul mismatch"

    print("KERNEL_OK")
</pallas_src>

<mosaic_0001>
module attributes {stable_mosaic.version = 11 : i64} {
  func.func @_score_kernel(%arg0: i32, %arg1: memref<1216x128xf32, #tpu.memory_space<vmem>>, %arg2: memref<128x128xf32, #tpu.memory_space<vmem>>, %arg3: memref<1x128xf32, #tpu.memory_space<vmem>>, %arg4: memref<1x128xf32, #tpu.memory_space<vmem>>, %arg5: memref<1x128xf32, #tpu.memory_space<vmem>>) attributes {dimension_semantics = [#tpu.dimension_semantics<arbitrary>], iteration_bounds = array<i64: 1>, scalar_prefetch = 0 : i64, scratch_operands = 0 : i64, tpu.core_type = #tpu.core_type<tc>, window_params = [{transform_indices = @transform_0, window_bounds = array<i64: 1216, 128>}, {pipeline_mode = #tpu.pipeline_mode<synchronous>, transform_indices = @transform_1, window_bounds = array<i64: 128, 128>}, {pipeline_mode = #tpu.pipeline_mode<synchronous>, transform_indices = @transform_2, window_bounds = array<i64: 1, 128>}, {pipeline_mode = #tpu.pipeline_mode<synchronous>, transform_indices = @transform_3, window_bounds = array<i64: 1, 128>}, {pipeline_mode = #tpu.pipeline_mode<synchronous>, transform_indices = @transform_4, window_bounds = array<i64: 1, 128>}]} {
    %c0_i32 = arith.constant 0 : i32
    %0 = arith.cmpi eq, %arg0, %c0_i32 : i32
    %1 = arith.extui %0 : i1 to i32
    %c0_i32_0 = arith.constant 0 : i32
    %2 = arith.cmpi ne, %1, %c0_i32_0 : i32
    scf.if %2 {
      %cst_20 = arith.constant 0.000000e+00 : f32
      %54 = vector.broadcast %cst_20 : f32 to vector<1x128xf32>
      %c0_21 = arith.constant 0 : index
      %c0_22 = arith.constant 0 : index
      %55 = vector.load %arg5[%c0_21, %c0_22] : memref<1x128xf32, #tpu.memory_space<vmem>>, vector<1x128xf32>
      tpu.vector_store %arg5[%c0_21, %c0_22], %54 {strides = array<i32>} : memref<1x128xf32, #tpu.memory_space<vmem>>, vector<1x128xf32>,
    } else {
    }
    %c0 = arith.constant 0 : index
    %c0_1 = arith.constant 0 : index
    %3 = vector.load %arg1[%c0, %c0_1] : memref<1216x128xf32, #tpu.memory_space<vmem>>, vector<1216x128xf32>
    %4 = arith.truncf %3 : vector<1216x128xf32> to vector<1216x128xbf16>
    %c0_2 = arith.constant 0 : index
    %c0_3 = arith.constant 0 : index
    %5 = vector.load %arg2[%c0_2, %c0_3] : memref<128x128xf32, #tpu.memory_space<vmem>>, vector<128x128xf32>
    %6 = arith.truncf %5 : vector<128x128xf32> to vector<128x128xbf16>
    %cst = arith.constant dense<0.000000e+00> : vector<1216x128xf32>
    %7 = tpu.matmul %4, %6, %cst {dimension_numbers = #tpu.dot_dimension_numbers<[1], [0], [0], [1], [0, 0, 1, 1], [], []>} : vector<1216x128xbf16>, vector<128x128xbf16>, vector<1216x128xf32> -> vector<1216x128xf32>
    %c0_4 = arith.constant 0 : index
    %c0_5 = arith.constant 0 : index
    %8 = vector.load %arg3[%c0_4, %c0_5] : memref<1x128xf32, #tpu.memory_space<vmem>>, vector<1x128xf32>
    %9 = vector.broadcast %8 : vector<1x128xf32> to vector<1216x128xf32>
    %10 = arith.addf %7, %9 : vector<1216x128xf32>
    %11 = math.tanh %10 : vector<1216x128xf32>
    %c0_6 = arith.constant 0 : index
    %c0_7 = arith.constant 0 : index
    %12 = vector.load %arg4[%c0_6, %c0_7] : memref<1x128xf32, #tpu.memory_space<vmem>>, vector<1x128xf32>
    %13 = vector.broadcast %12 : vector<1x128xf32> to vector<1216x128xf32>
    %14 = arith.mulf %11, %13 : vector<1216x128xf32>
    %cst_8 = arith.constant dense<0.000000e+00> : vector<1216xf32>
    %15 = vector.multi_reduction <add>, %14, %cst_8 [1] : vector<1216x128xf32> to vector<1216xf32>
    %16 = vector.shape_cast %15 : vector<1216xf32> to vector<1216x1xf32>
    %c1216_i32 = arith.constant 1216 : i32
    %17 = arith.muli %arg0, %c1216_i32 : i32
    %18 = tpu.iota {dimensions = array<i32: 0>} : vector<1216x1xi32>
    %19 = vector.broadcast %17 : i32 to vector<1216x1xi32>
    %20 = arith.addi %19, %18 : vector<1216x1xi32>
    %c1200_i32 = arith.constant 1200 : i32
    %21 = vector.broadcast %c1200_i32 : i32 to vector<1216x1xi32>
    %22 = arith.cmpi slt, %20, %21 : vector<1216x1xi32>
    %c4_i32 = arith.constant 4 : i32
    %c0_i32_9 = arith.constant 0 : i32
    %23 = arith.cmpi eq, %c4_i32, %c0_i32_9 : i32
    %c1_i32 = arith.constant 1 : i32
    %24 = arith.select %23, %c1_i32, %c4_i32 : i32
    %25 = vector.broadcast %24 : i32 to vector<1216x1xi32>
    %26 = arith.remsi %20, %25 : vector<1216x1xi32>
    %c0_i32_10 = arith.constant 0 : i32
    %27 = vector.broadcast %c0_i32_10 : i32 to vector<1216x1xi32>
    %28 = arith.cmpi ne, %26, %27 : vector<1216x1xi32>
    %c0_i32_11 = arith.constant 0 : i32
    %29 = vector.broadcast %c0_i32_11 : i32 to vector<1216x1xi32>
    %30 = arith.cmpi slt, %26, %29 : vector<1216x1xi32>
    %c0_i32_12 = arith.constant 0 : i32
    %31 = arith.cmpi slt, %24, %c0_i32_12 : i32
    %32 = vector.broadcast %31 : i1 to vector<1216x1xi1>
    %33 = vector.broadcast %32 : vector<1216x1xi1> to vector<1216x1xi1>
    %34 = arith.xori %30, %33 : vector<1216x1xi1>
    %35 = arith.andi %34, %28 : vector<1216x1xi1>
    %36 = vector.broadcast %24 : i32 to vector<1216x1xi32>
    %37 = arith.addi %26, %36 : vector<1216x1xi32>
    %38 = arith.select %35, %37, %26 : vector<1216x1xi1>, vector<1216x1xi32>
    %39 = tpu.iota {dimensions = array<i32: 1>} : vector<1216x128xi32>
    %40 = vector.broadcast %38 : vector<1216x1xi32> to vector<1216x128xi32>
    %41 = arith.cmpi eq, %40, %39 : vector<1216x128xi32>
    %42 = vector.broadcast %22 : vector<1216x1xi1> to vector<1216x128xi1>
    %43 = arith.andi %42, %41 : vector<1216x128xi1>
    %cst_13 = arith.constant 1.000000e+00 : f32
    %cst_14 = arith.constant 0.000000e+00 : f32
    %44 = vector.broadcast %cst_13 : f32 to vector<1216x128xf32>
    %45 = vector.broadcast %cst_14 : f32 to vector<1216x128xf32>
    %46 = arith.select %43, %44, %45 : vector<1216x128xi1>, vector<1216x128xf32>
    %c0_15 = arith.constant 0 : index
    %c0_16 = arith.constant 0 : index
    %47 = vector.load %arg5[%c0_15, %c0_16] : memref<1x128xf32, #tpu.memory_space<vmem>>, vector<1x128xf32>
    %48 = vector.broadcast %16 : vector<1216x1xf32> to vector<1216x128xf32>
    %49 = arith.mulf %46, %48 : vector<1216x128xf32>
    %cst_17 = arith.constant dense<0.000000e+00> : vector<128xf32>
    %50 = vector.multi_reduction <add>, %49, %cst_17 [0] : vector<1216x128xf32> to vector<128xf32>
    %51 = vector.shape_cast %50 : vector<128xf32> to vector<1x128xf32>
    %52 = arith.addf %47, %51 : vector<1x128xf32>
    %c0_18 = arith.constant 0 : index
    %c0_19 = arith.constant 0 : index
    %53 = vector.load %arg5[%c0_18, %c0_19] : memref<1x128xf32, #tpu.memory_space<vmem>>, vector<1x128xf32>
    tpu.vector_store %arg5[%c0_18, %c0_19], %52 {strides = array<i32>} : memref<1x128xf32, #tpu.memory_space<vmem>>, vector<1x128xf32>,
    return
  }
  func.func @transform_0(%arg0: i32) -> (i32, i32) {
    %c0_i32 = arith.constant 0 : i32
    %c0_i32_0 = arith.constant 0 : i32
    return %arg0, %c0_i32 : i32, i32
  }
  func.func @transform_1(%arg0: i32) -> (i32, i32) {
    %c0_i32 = arith.constant 0 : i32
    %c0_i32_0 = arith.constant 0 : i32
    %c0_i32_1 = arith.constant 0 : i32
    return %c0_i32, %c0_i32_0 : i32, i32
  }
  func.func @transform_2(%arg0: i32) -> (i32, i32) {
    %c0_i32 = arith.constant 0 : i32
    %c0_i32_0 = arith.constant 0 : i32
    %c0_i32_1 = arith.constant 0 : i32
    return %c0_i32, %c0_i32_0 : i32, i32
  }
  func.func @transform_3(%arg0: i32) -> (i32, i32) {
    %c0_i32 = arith.constant 0 : i32
    %c0_i32_0 = arith.constant 0 : i32
    %c0_i32_1 = arith.constant 0 : i32
    return %c0_i32, %c0_i32_0 : i32, i32
  }
  func.func @transform_4(%arg0: i32) -> (i32, i32) {
    %c0_i32 = arith.constant 0 : i32
    %c0_i32_0 = arith.constant 0 : i32
    %c0_i32_1 = arith.constant 0 : i32
    return %c0_i32, %c0_i32_0 : i32, i32
  }
}

</mosaic_0001>

<llo_original>
// kernel: tpu_custom_call.1
$region0: #{tpu_custom_call.1}
  #allocation0 [shape = 'u32[]', space=smem, size = 0x4, offset = 0x4, fixed_abs, tag = 'smem constant byte address 0x4 - core index']
  #allocation1 [shape = 'u32[144,128]{1,0:T(1,128)}', space=vmem, size = 0x12000, scoped, tag = 'internal scratch']
  %s0 = inlined_call_operand.hbm [shape: f32[1216,128], index: 0, kind: input, shape index: {}]
  %s1 = inlined_call_operand.hbm [shape: f32[128,128], index: 1, kind: input, shape index: {}]
  %s2 = inlined_call_operand.vmem [shape: f32[1,128], index: 2, kind: input, shape index: {}]
  %s3 = inlined_call_operand.vmem [shape: f32[1,128], index: 3, kind: input, shape index: {}]
  %s4 = inlined_call_operand.hbm [shape: f32[1,128], index: 4, kind: output, shape index: {}]
  %s5 = sld [smem:[#allocation0]]
  $region38: #{tpu_custom_call.1} parent=0
    _
  %s7 = ssub.s32 1, %s5
  %s8 = scalar_select 0, %s7, %s5
  $region1: #{tpu_custom_call.1} parent=0
    #allocation2 [shape = 'u8[622592]{0}', space=vmem, size = 0x98000, scoped, tag = 'input window, operand 0, single buffered']
    #allocation3 [shape = 's32[1]{0}', space=sflag, size = 0x4, scoped, tag = 'scoped memory for tpu_custom_call.1']
    #allocation4 [shape = 's32[1]{0}', space=sflag, size = 0x4, scoped, tag = 'scoped memory for tpu_custom_call.1']
    #allocation5 [shape = 'u8[65536]{0}', space=vmem, size = 0x10000, scoped, tag = 'input window, operand 1, single buffered']
    #allocation6 [shape = 's32[1]{0}', space=sflag, size = 0x4, scoped, tag = 'scoped memory for tpu_custom_call.1']
    #allocation7 [shape = 'u8[512]{0}', space=vmem, size = 0x400, scoped, tag = 'output window, operand 0, single buffered']
    %9 = vsyncpa [#allocation3], 0
    %10 = vsyncpa [#allocation6], 0
    %11 = vsyncpa [#allocation4], 0
    // Predicated region
    $region2: #{tpu_custom_call.1} parent=1 // pred_check
      _
    $region3: #{tpu_custom_call.1} parent=1 // pred_check_branch
      %13 = sbr.rel (0) target = $region5
    $region4: #{tpu_custom_call.1} parent=1 // pred_region
      %s15 = ssub.s32 19456, 19456
      %16 = vsyncadd [#allocation3], %s15
      %s17 = sshll.u32 [#allocation2], 4
      %s18 = int_to_ptr.vmem [resolvable:$true] %s17
      %23 = dma.hbm_to_vmem [thread:$0]  %s0, 19456, %s18, [#allocation3], 128, 128, 8
    $region5: #{tpu_custom_call.1} parent=1 // pred_fallthru
      _
    // Predicated region
    $region6: #{tpu_custom_call.1} parent=1 // pred_check
      _
    $region7: #{tpu_custom_call.1} parent=1 // pred_check_branch
      %25 = sbr.rel (0) target = $region9
    $region8: #{tpu_custom_call.1} parent=1 // pred_region
      %s27 = ssub.s32 2048, 2048
      %28 = vsyncadd [#allocation6], %s27
      %s29 = sshll.u32 [#allocation5], 4
      %s30 = int_to_ptr.vmem [resolvable:$true] %s29
      %35 = dma.hbm_to_vmem [thread:$0]  %s1, 2048, %s30, [#allocation6], 128, 128, 8
    $region9: #{tpu_custom_call.1} parent=1 // pred_fallthru
      _
    // Predicated region
    $region10: #{tpu_custom_call.1} parent=1 // pred_check
      _
    $region11: #{tpu_custom_call.1} parent=1 // pred_check_branch
      %37 = sbr.rel (0) target = $region13
    $region12: #{tpu_custom_call.1} parent=1 // pred_region
      _
    $region13: #{tpu_custom_call.1} parent=1 // pred_fallthru
      _
    // Predicated region
    $region14: #{tpu_custom_call.1} parent=1 // pred_check
      _
    $region15: #{tpu_custom_call.1} parent=1 // pred_check_branch
      %39 = sbr.rel (0) target = $region17
    $region16: #{tpu_custom_call.1} parent=1 // pred_region
      _
    $region17: #{tpu_custom_call.1} parent=1 // pred_fallthru
      _
    // Predicated region
    $region18: #{tpu_custom_call.1} parent=1 // pred_check
      _
    $region19: #{tpu_custom_call.1} parent=1 // pred_check_branch
      %41 = sbr.rel (0) target = $region21
    $region20: #{tpu_custom_call.1} parent=1 // pred_region
      %42 = dma.done [#allocation3], 19456
    $region21: #{tpu_custom_call.1} parent=1 // pred_fallthru
      _
    // Predicated region
    $region22: #{tpu_custom_call.1} parent=1 // pred_check
      _
    $region23: #{tpu_custom_call.1} parent=1 // pred_check_branch
      %44 = sbr.rel (0) target = $region25
    $region24: #{tpu_custom_call.1} parent=1 // pred_region
      %45 = dma.done [#allocation6], 2048
    $region25: #{tpu_custom_call.1} parent=1 // pred_fallthru
      _
    %p47 = scmp.eq.s32.totalorder 0, 0
    // Predicated region
    $region26: #{tpu_custom_call.1} parent=1 // pred_check
      %p48 = pneg %p47
    $region27: #{tpu_custom_call.1} parent=1 // pred_check_branch
      %50 = sbr.rel (%p48) target = $region29
    $region28: #{tpu_custom_call.1} parent=1 // pred_region
      %51 = vst [vmem:[#allocation7] sm:$0x1] 0.0
    $region29: #{tpu_custom_call.1} parent=1 // pred_fallthru
      _
    %v52 = vld [vmem:[#allocation2] sm:$0xff]
    %v53 = vld [vmem:[#allocation2 + $0x8] sm:$0xff]
    %v54 = vld [vmem:[#allocation2 + $0x10] sm:$0xff]
    %v55 = vld [vmem:[#allocation2 + $0x18] sm:$0xff]
    %v56 = vld [vmem:[#allocation2 + $0x20] sm:$0xff]
    %v57 = vld [vmem:[#allocation2 + $0x28] sm:$0xff]
    %v58 = vld [vmem:[#allocation2 + $0x30] sm:$0xff]
    %v59 = vld [vmem:[#allocation2 + $0x38] sm:$0xff]
    %v60 = vld [vmem:[#allocation2 + $0x40] sm:$0xff]
    %v61 = vld [vmem:[#allocation2 + $0x48] sm:$0xff]
    %v62 = vld [vmem:[#allocation2 + $0x50] sm:$0xff]
    %v63 = vld [vmem:[#allocation2 + $0x58] sm:$0xff]
    %v64 = vld [vmem:[#allocation2 + $0x60] sm:$0xff]
    %v65 = vld [vmem:[#allocation2 + $0x68] sm:$0xff]
    %v66 = vld [vmem:[#allocation2 + $0x70] sm:$0xff]
    %v67 = vld [vmem:[#allocation2 + $0x78] sm:$0xff]
    %v68 = vld [vmem:[#allocation2 + $0x80] sm:$0xff]
    %v69 = vld [vmem:[#allocation2 + $0x88] sm:$0xff]
    %v70 = vld [vmem:[#allocation2 + $0x90] sm:$0xff]
    %v71 = vld [vmem:[#allocation2 + $0x98] sm:$0xff]
    %v72 = vld [vmem:[#allocation2 + $0xa0] sm:$0xff]
    %v73 = vld [vmem:[#allocation2 + $0xa8] sm:$0xff]
    %v74 = vld [vmem:[#allocation2 + $0xb0] sm:$0xff]
    %v75 = vld [vmem:[#allocation2 + $0xb8] sm:$0xff]
    %v76 = vld [vmem:[#allocation2 + $0xc0] sm:$0xff]
    %v77 = vld [vmem:[#allocation2 + $0xc8] sm:$0xff]
    %v78 = vld [vmem:[#allocation2 + $0xd0] sm:$0xff]
    %v79 = vld [vmem:[#allocation2 + $0xd8] sm:$0xff]
    %v80 = vld [vmem:[#allocation2 + $0xe0] sm:$0xff]
    %v81 = vld [vmem:[#allocation2 + $0xe8] sm:$0xff]
    %v82 = vld [vmem:[#allocation2 + $0xf0] sm:$0xff]
    %v83 = vld [vmem:[#allocation2 + $0xf8] sm:$0xff]
    %v84 = vld [vmem:[#allocation2 + $0x100] sm:$0xff]
    %v85 = vld [vmem:[#allocation2 + $0x108] sm:$0xff]
    %v86 = vld [vmem:[#allocation2 + $0x110] sm:$0xff]
    %v87 = vld [vmem:[#allocation2 + $0x118] sm:$0xff]
    %v88 = vld [vmem:[#allocation2 + $0x120] sm:$0xff]
    %v89 = vld [vmem:[#allocation2 + $0x128] sm:$0xff]
    %v90 = vld [vmem:[#allocation2 + $0x130] sm:$0xff]
    %v91 = vld [vmem:[#allocation2 + $0x138] sm:$0xff]
    %v92 = vld [vmem:[#allocation2 + $0x140] sm:$0xff]
    %v93 = vld [vmem:[#allocation2 + $0x148] sm:$0xff]
    %v94 = vld [vmem:[#allocation2 + $0x150] sm:$0xff]
    %v95 = vld [vmem:[#allocation2 + $0x158] sm:$0xff]
    %v96 = vld [vmem:[#allocation2 + $0x160] sm:$0xff]
    %v97 = vld [vmem:[#allocation2 + $0x168] sm:$0xff]
    %v98 = vld [vmem:[#allocation2 + $0x170] sm:$0xff]
    %v99 = vld [vmem:[#allocation2 + $0x178] sm:$0xff]
    %v100 = vld [vmem:[#allocation2 + $0x180] sm:$0xff]
    %v101 = vld [vmem:[#allocation2 + $0x188] sm:$0xff]
    %v102 = vld [vmem:[#allocation2 + $0x190] sm:$0xff]
    %v103 = vld [vmem:[#allocation2 + $0x198] sm:$0xff]
    %v104 = vld [vmem:[#allocation2 + $0x1a0] sm:$0xff]
    %v105 = vld [vmem:[#allocation2 + $0x1a8] sm:$0xff]
    %v106 = vld [vmem:[#allocation2 + $0x1b0] sm:$0xff]
    %v107 = vld [vmem:[#allocation2 + $0x1b8] sm:$0xff]
    %v108 = vld [vmem:[#allocation2 + $0x1c0] sm:$0xff]
    %v109 = vld [vmem:[#allocation2 + $0x1c8] sm:$0xff]
    %v110 = vld [vmem:[#allocation2 + $0x1d0] sm:$0xff]
    %v111 = vld [vmem:[#allocation2 + $0x1d8] sm:$0xff]
    %v112 = vld [vmem:[#allocation2 + $0x1e0] sm:$0xff]
    %v113 = vld [vmem:[#allocation2 + $0x1e8] sm:$0xff]
    %v114 = vld [vmem:[#allocation2 + $0x1f0] sm:$0xff]
    %v115 = vld [vmem:[#allocation2 + $0x1f8] sm:$0xff]
    %v116 = vld [vmem:[#allocation2 + $0x200] sm:$0xff]
    %v117 = vld [vmem:[#allocation2 + $0x208] sm:$0xff]
    %v118 = vld [vmem:[#allocation2 + $0x210] sm:$0xff]
    %v119 = vld [vmem:[#allocation2 + $0x218] sm:$0xff]
    %v120 = vld [vmem:[#allocation2 + $0x220] sm:$0xff]
    %v121 = vld [vmem:[#allocation2 + $0x228] sm:$0xff]
    %v122 = vld [vmem:[#allocation2 + $0x230] sm:$0xff]
    %v123 = vld [vmem:[#allocation2 + $0x238] sm:$0xff]
    %v124 = vld [vmem:[#allocation2 + $0x240] sm:$0xff]
    %v125 = vld [vmem:[#allocation2 + $0x248] sm:$0xff]
    %v126 = vld [vmem:[#allocation2 + $0x250] sm:$0xff]
    %v127 = vld [vmem:[#allocation2 + $0x258] sm:$0xff]
    %v128 = vld [vmem:[#allocation2 + $0x260] sm:$0xff]
    %v129 = vld [vmem:[#allocation2 + $0x268] sm:$0xff]
    %v130 = vld [vmem:[#allocation2 + $0x270] sm:$0xff]
    %v131 = vld [vmem:[#allocation2 + $0x278] sm:$0xff]
    %v132 = vld [vmem:[#allocation2 + $0x280] sm:$0xff]
    %v133 = vld [vmem:[#allocation2 + $0x288] sm:$0xff]
    %v134 = vld [vmem:[#allocation2 + $0x290] sm:$0xff]
    %v135 = vld [vmem:[#allocation2 + $0x298] sm:$0xff]
    %v136 = vld [vmem:[#allocation2 + $0x2a0] sm:$0xff]
    %v137 = vld [vmem:[#allocation2 + $0x2a8] sm:$0xff]
    %v138 = vld [vmem:[#allocation2 + $0x2b0] sm:$0xff]
    %v139 = vld [vmem:[#allocation2 + $0x2b8] sm:$0xff]
    %v140 = vld [vmem:[#allocation2 + $0x2c0] sm:$0xff]
    %v141 = vld [vmem:[#allocation2 + $0x2c8] sm:$0xff]
    %v142 = vld [vmem:[#allocation2 + $0x2d0] sm:$0xff]
    %v143 = vld [vmem:[#allocation2 + $0x2d8] sm:$0xff]
    %v144 = vld [vmem:[#allocation2 + $0x2e0] sm:$0xff]
    %v145 = vld [vmem:[#allocation2 + $0x2e8] sm:$0xff]
    %v146 = vld [vmem:[#allocation2 + $0x2f0] sm:$0xff]
    %v147 = vld [vmem:[#allocation2 + $0x2f8] sm:$0xff]
    %v148 = vld [vmem:[#allocation2 + $0x300] sm:$0xff]
    %v149 = vld [vmem:[#allocation2 + $0x308] sm:$0xff]
    %v150 = vld [vmem:[#allocation2 + $0x310] sm:$0xff]
    %v151 = vld [vmem:[#allocation2 + $0x318] sm:$0xff]
    %v152 = vld [vmem:[#allocation2 + $0x320] sm:$0xff]
    %v153 = vld [vmem:[#allocation2 + $0x328] sm:$0xff]
    %v154 = vld [vmem:[#allocation2 + $0x330] sm:$0xff]
    %v155 = vld [vmem:[#allocation2 + $0x338] sm:$0xff]
    %v156 = vld [vmem:[#allocation2 + $0x340] sm:$0xff]
    %v157 = vld [vmem:[#allocation2 + $0x348] sm:$0xff]
    %v158 = vld [vmem:[#allocation2 + $0x350] sm:$0xff]
    %v159 = vld [vmem:[#allocation2 + $0x358] sm:$0xff]
    %v160 = vld [vmem:[#allocation2 + $0x360] sm:$0xff]
    %v161 = vld [vmem:[#allocation2 + $0x368] sm:$0xff]
    %v162 = vld [vmem:[#allocation2 + $0x370] sm:$0xff]
    %v163 = vld [vmem:[#allocation2 + $0x378] sm:$0xff]
    %v164 = vld [vmem:[#allocation2 + $0x380] sm:$0xff]
    %v165 = vld [vmem:[#allocation2 + $0x388] sm:$0xff]
    %v166 = vld [vmem:[#allocation2 + $0x390] sm:$0xff]
    %v167 = vld [vmem:[#allocation2 + $0x398] sm:$0xff]
    %v168 = vld [vmem:[#allocation2 + $0x3a0] sm:$0xff]
    %v169 = vld [vmem:[#allocation2 + $0x3a8] sm:$0xff]
    %v170 = vld [vmem:[#allocation2 + $0x3b0] sm:$0xff]
    %v171 = vld [vmem:[#allocation2 + $0x3b8] sm:$0xff]
    %v172 = vld [vmem:[#allocation2 + $0x3c0] sm:$0xff]
    %v173 = vld [vmem:[#allocation2 + $0x3c8] sm:$0xff]
    %v174 = vld [vmem:[#allocation2 + $0x3d0] sm:$0xff]
    %v175 = vld [vmem:[#allocation2 + $0x3d8] sm:$0xff]
    %v176 = vld [vmem:[#allocation2 + $0x3e0] sm:$0xff]
    %v177 = vld [vmem:[#allocation2 + $0x3e8] sm:$0xff]
    %v178 = vld [vmem:[#allocation2 + $0x3f0] sm:$0xff]
    %v179 = vld [vmem:[#allocation2 + $0x3f8] sm:$0xff]
    %v180 = vld [vmem:[#allocation2 + $0x400] sm:$0xff]
    %v181 = vld [vmem:[#allocation2 + $0x408] sm:$0xff]
    %v182 = vld [vmem:[#allocation2 + $0x410] sm:$0xff]
    %v183 = vld [vmem:[#allocation2 + $0x418] sm:$0xff]
    %v184 = vld [vmem:[#allocation2 + $0x420] sm:$0xff]
    %v185 = vld [vmem:[#allocation2 + $0x428] sm:$0xff]
    %v186 = vld [vmem:[#allocation2 + $0x430] sm:$0xff]
    %v187 = vld [vmem:[#allocation2 + $0x438] sm:$0xff]
    %v188 = vld [vmem:[#allocation2 + $0x440] sm:$0xff]
    %v189 = vld [vmem:[#allocation2 + $0x448] sm:$0xff]
    %v190 = vld [vmem:[#allocation2 + $0x450] sm:$0xff]
    %v191 = vld [vmem:[#allocation2 + $0x458] sm:$0xff]
    %v192 = vld [vmem:[#allocation2 + $0x460] sm:$0xff]
    %v193 = vld [vmem:[#allocation2 + $0x468] sm:$0xff]
    %v194 = vld [vmem:[#allocation2 + $0x470] sm:$0xff]
    %v195 = vld [vmem:[#allocation2 + $0x478] sm:$0xff]
    %v196 = vld [vmem:[#allocation2 + $0x480] sm:$0xff]
    %v197 = vld [vmem:[#allocation2 + $0x488] sm:$0xff]
    %v198 = vld [vmem:[#allocation2 + $0x490] sm:$0xff]
    %v199 = vld [vmem:[#allocation2 + $0x498] sm:$0xff]
    %v200 = vld [vmem:[#allocation2 + $0x4a0] sm:$0xff]
    %v201 = vld [vmem:[#allocation2 + $0x4a8] sm:$0xff]
    %v202 = vld [vmem:[#allocation2 + $0x4b0] sm:$0xff]
    %v203 = vld [vmem:[#allocation2 + $0x4b8] sm:$0xff]
    %v204 = vpack.c.bf16 %v53, %v52
    %v205 = vpack.c.bf16 %v55, %v54
    %v206 = vpack.c.bf16 %v57, %v56
    %v207 = vpack.c.bf16 %v59, %v58
    %v208 = vpack.c.bf16 %v61, %v60
    %v209 = vpack.c.bf16 %v63, %v62
    %v210 = vpack.c.bf16 %v65, %v64
    %v211 = vpack.c.bf16 %v67, %v66
    %v212 = vpack.c.bf16 %v69, %v68
    %v213 = vpack.c.bf16 %v71, %v70
    %v214 = vpack.c.bf16 %v73, %v72
    %v215 = vpack.c.bf16 %v75, %v74
    %v216 = vpack.c.bf16 %v77, %v76
    %v217 = vpack.c.bf16 %v79, %v78
    %v218 = vpack.c.bf16 %v81, %v80
    %v219 = vpack.c.bf16 %v83, %v82
    %v220 = vpack.c.bf16 %v85, %v84
    %v221 = vpack.c.bf16 %v87, %v86
    %v222 = vpack.c.bf16 %v89, %v88
    %v223 = vpack.c.bf16 %v91, %v90
    %v224 = vpack.c.bf16 %v93, %v92
    %v225 = vpack.c.bf16 %v95, %v94
    %v226 = vpack.c.bf16 %v97, %v96
    %v227 = vpack.c.bf16 %v99, %v98
    %v228 = vpack.c.bf16 %v101, %v100
    %v229 = vpack.c.bf16 %v103, %v102
    %v230 = vpack.c.bf16 %v105, %v104
    %v231 = vpack.c.bf16 %v107, %v106
    %v232 = vpack.c.bf16 %v109, %v108
    %v233 = vpack.c.bf16 %v111, %v110
    %v234 = vpack.c.bf16 %v113, %v112
    %v235 = vpack.c.bf16 %v115, %v114
    %v236 = vpack.c.bf16 %v117, %v116
    %v237 = vpack.c.bf16 %v119, %v118
    %v238 = vpack.c.bf16 %v121, %v120
    %v239 = vpack.c.bf16 %v123, %v122
    %v240 = vpack.c.bf16 %v125, %v124
    %v241 = vpack.c.bf16 %v127, %v126
    %v242 = vpack.c.bf16 %v129, %v128
    %v243 = vpack.c.bf16 %v131, %v130
    %v244 = vpack.c.bf16 %v133, %v132
    %v245 = vpack.c.bf16 %v135, %v134
    %v246 = vpack.c.bf16 %v137, %v136
    %v247 = vpack.c.bf16 %v139, %v138
    %v248 = vpack.c.bf16 %v141, %v140
    %v249 = vpack.c.bf16 %v143, %v142
    %v250 = vpack.c.bf16 %v145, %v144
    %v251 = vpack.c.bf16 %v147, %v146
    %v252 = vpack.c.bf16 %v149, %v148
    %v253 = vpack.c.bf16 %v151, %v150
    %v254 = vpack.c.bf16 %v153, %v152
    %v255 = vpack.c.bf16 %v155, %v154
    %v256 = vpack.c.bf16 %v157, %v156
    %v257 = vpack.c.bf16 %v159, %v158
    %v258 = vpack.c.bf16 %v161, %v160
    %v259 = vpack.c.bf16 %v163, %v162
    %v260 = vpack.c.bf16 %v165, %v164
    %v261 = vpack.c.bf16 %v167, %v166
    %v262 = vpack.c.bf16 %v169, %v168
    %v263 = vpack.c.bf16 %v171, %v170
    %v264 = vpack.c.bf16 %v173, %v172
    %v265 = vpack.c.bf16 %v175, %v174
    %v266 = vpack.c.bf16 %v177, %v176
    %v267 = vpack.c.bf16 %v179, %v178
    %v268 = vpack.c.bf16 %v181, %v180
    %v269 = vpack.c.bf16 %v183, %v182
    %v270 = vpack.c.bf16 %v185, %v184
    %v271 = vpack.c.bf16 %v187, %v186
    %v272 = vpack.c.bf16 %v189, %v188
    %v273 = vpack.c.bf16 %v191, %v190
    %v274 = vpack.c.bf16 %v193, %v192
    %v275 = vpack.c.bf16 %v195, %v194
    %v276 = vpack.c.bf16 %v197, %v196
    %v277 = vpack.c.bf16 %v199, %v198
    %v278 = vpack.c.bf16 %v201, %v200
    %v279 = vpack.c.bf16 %v203, %v202
    %v280 = vld [vmem:[#allocation5] sm:$0xff]
    %v281 = vld [vmem:[#allocation5 + $0x8] sm:$0xff]
    %v282 = vld [vmem:[#allocation5 + $0x10] sm:$0xff]
    %v283 = vld [vmem:[#allocation5 + $0x18] sm:$0xff]
    %v284 = vld [vmem:[#allocation5 + $0x20] sm:$0xff]
    %v285 = vld [vmem:[#allocation5 + $0x28] sm:$0xff]
    %v286 = vld [vmem:[#allocation5 + $0x30] sm:$0xff]
    %v287 = vld [vmem:[#allocation5 + $0x38] sm:$0xff]
    %v288 = vld [vmem:[#allocation5 + $0x40] sm:$0xff]
    %v289 = vld [vmem:[#allocation5 + $0x48] sm:$0xff]
    %v290 = vld [vmem:[#allocation5 + $0x50] sm:$0xff]
    %v291 = vld [vmem:[#allocation5 + $0x58] sm:$0xff]
    %v292 = vld [vmem:[#allocation5 + $0x60] sm:$0xff]
    %v293 = vld [vmem:[#allocation5 + $0x68] sm:$0xff]
    %v294 = vld [vmem:[#allocation5 + $0x70] sm:$0xff]
    %v295 = vld [vmem:[#allocation5 + $0x78] sm:$0xff]
    %v296 = vpack.c.bf16 %v281, %v280
    %v297 = vpack.c.bf16 %v283, %v282
    %v298 = vpack.c.bf16 %v285, %v284
    %v299 = vpack.c.bf16 %v287, %v286
    %v300 = vpack.c.bf16 %v289, %v288
    %v301 = vpack.c.bf16 %v291, %v290
    %v302 = vpack.c.bf16 %v293, %v292
    %v303 = vpack.c.bf16 %v295, %v294
    %v304 = vld [vmem:[%s2] sm:$0x1]
    %v306 = vlaneseq
    %v307 = vshrl.u32 %v306, 7
    %v308 = vsub.s32 0, %v307
    %v309 = vrot.slane %v304, %v308
    %311 = vmatprep.subr.bf16.mxu0 0
    %312 = vmatpush1.bf16.msra.mxu0 %v296
    %313 = vmatprep.subr.bf16.mxu0 0
    %314 = vmatpush1.bf16.msra.mxu0 %v297
    %315 = vmatprep.subr.bf16.mxu0 0
    %316 = vmatpush1.bf16.msra.mxu0 %v298
    %317 = vmatprep.subr.bf16.mxu0 0
    %318 = vmatpush1.bf16.msra.mxu0 %v299
    %319 = vmatprep.subr.bf16.mxu0 0
    %320 = vmatpush1.bf16.msra.mxu0 %v300
    %321 = vmatprep.subr.bf16.mxu0 0
    %322 = vmatpush1.bf16.msra.mxu0 %v301
    %323 = vmatprep.subr.bf16.mxu0 0
    %324 = vmatpush1.bf16.msra.mxu0 %v302
    %325 = vmatprep.subr.bf16.mxu0 0
    %326 = vmatpush1.bf16.msra.mxu0 %v303
    %327 = vmatprep.subr.bf16.mxu0 0
    %328 = vmatpush1.bf16.msra.mxu0 0
    %329 = vmatprep.subr.bf16.mxu0 0
    %330 = vmatpush1.bf16.msra.mxu0 0
    %331 = vmatprep.subr.bf16.mxu0 0
    %332 = vmatpush1.bf16.msra.mxu0 0
    %333 = vmatprep.subr.bf16.mxu0 0
    %334 = vmatpush1.bf16.msra.mxu0 0
    %335 = vmatprep.subr.bf16.mxu0 0
    %336 = vmatpush1.bf16.msra.mxu0 0
    %337 = vmatprep.subr.bf16.mxu0 0
    %338 = vmatpush1.bf16.msra.mxu0 0
    %339 = vmatprep.subr.bf16.mxu0 0
    %340 = vmatpush1.bf16.msra.mxu0 0
    %341 = vmatprep.subr.bf16.mxu0 0
    %342 = vmatpush1.bf16.msra.mxu0 0
    %343 = vmatprep.mubr.bf16.mxu0 0
    %344 = vmatmul.mubr.bf16.gmra.mrb[0].mxu0 %v204
    %v345 = vpop.f32.mrb[0].mxu0
    %v346 = vadd.f32 %v309, %v345
    %v347 = vpop.f32.mrb[0].mxu0
    %v348 = vpop.f32.mrb[0].mxu0
    %v349 = vadd.f32 %v309, %v348
    %v350 = vpop.f32.mrb[0].mxu0
    %351 = vmatprep.mubr.bf16.mxu0 0
    %352 = vmatmul.mubr.bf16.gmra.mrb[0].mxu0 %v205
    %v353 = vpop.f32.mrb[0].mxu0
    %v354 = vadd.f32 %v309, %v353
    %v355 = vpop.f32.mrb[0].mxu0
    %v356 = vpop.f32.mrb[0].mxu0
    %v357 = vadd.f32 %v309, %v356
    %v358 = vpop.f32.mrb[0].mxu0
    %359 = vmatprep.mubr.bf16.mxu0 0
    %360 = vmatmul.mubr.bf16.gmra.mrb[0].mxu0 %v206
    %v361 = vpop.f32.mrb[0].mxu0
    %v362 = vadd.f32 %v309, %v361
    %v363 = vpop.f32.mrb[0].mxu0
    %v364 = vpop.f32.mrb[0].mxu0
    %v365 = vadd.f32 %v309, %v364
    %v366 = vpop.f32.mrb[0].mxu0
    %367 = vmatprep.mubr.bf16.mxu0 0
    %368 = vmatmul.mubr.bf16.gmra.mrb[0].mxu0 %v207
    %v369 = vpop.f32.mrb[0].mxu0
    %v370 = vadd.f32 %v309, %v369
    %v371 = vpop.f32.mrb[0].mxu0
    %v372 = vpop.f32.mrb[0].mxu0
    %v373 = vadd.f32 %v309, %v372
    %v374 = vpop.f32.mrb[0].mxu0
    %375 = vmatprep.mubr.bf16.mxu0 0
    %376 = vmatmul.mubr.bf16.gmra.mrb[0].mxu0 %v208
    %v377 = vpop.f32.mrb[0].mxu0
    %v378 = vadd.f32 %v309, %v377
    %v379 = vpop.f32.mrb[0].mxu0
    %v380 = vpop.f32.mrb[0].mxu0
    %v381 = vadd.f32 %v309, %v380
    %v382 = vpop.f32.mrb[0].mxu0
    %383 = vmatprep.mubr.bf16.mxu0 0
    %384 = vmatmul.mubr.bf16.gmra.mrb[0].mxu0 %v209
    %v385 = vpop.f32.mrb[0].mxu0
    %v386 = vadd.f32 %v309, %v385
    %v387 = vpop.f32.mrb[0].mxu0
    %v388 = vpop.f32.mrb[0].mxu0
    %v389 = vadd.f32 %v309, %v388
    %v390 = vpop.f32.mrb[0].mxu0
    %391 = vmatprep.mubr.bf16.mxu0 0
    %392 = vmatmul.mubr.bf16.gmra.mrb[0].mxu0 %v210
    %v393 = vpop.f32.mrb[0].mxu0
    %v394 = vadd.f32 %v309, %v393
    %v395 = vpop.f32.mrb[0].mxu0
    %v396 = vpop.f32.mrb[0].mxu0
    %v397 = vadd.f32 %v309, %v396
    %v398 = vpop.f32.mrb[0].mxu0
    %399 = vmatprep.mubr.bf16.mxu0 0
    %400 = vmatmul.mubr.bf16.gmra.mrb[0].mxu0 %v211
    %v401 = vpop.f32.mrb[0].mxu0
    %v402 = vadd.f32 %v309, %v401
    %v403 = vpop.f32.mrb[0].mxu0
    %v404 = vpop.f32.mrb[0].mxu0
    %v405 = vadd.f32 %v309, %v404
    %v406 = vpop.f32.mrb[0].mxu0
    %407 = vmatprep.mubr.bf16.mxu0 0
    %408 = vmatmul.mubr.bf16.gmra.mrb[0].mxu0 %v212
    %v409 = vpop.f32.mrb[0].mxu0
    %v410 = vadd.f32 %v309, %v409
    %v411 = vpop.f32.mrb[0].mxu0
    %v412 = vpop.f32.mrb[0].mxu0
    %v413 = vadd.f32 %v309, %v412
    %v414 = vpop.f32.mrb[0].mxu0
    %415 = vmatprep.mubr.bf16.mxu0 0
    %416 = vmatmul.mubr.bf16.gmra.mrb[0].mxu0 %v213
    %v417 = vpop.f32.mrb[0].mxu0
    %v418 = vadd.f32 %v309, %v417
    %v419 = vpop.f32.mrb[0].mxu0
    %v420 = vpop.f32.mrb[0].mxu0
    %v421 = vadd.f32 %v309, %v420
    %v422 = vpop.f32.mrb[0].mxu0
    %423 = vmatprep.mubr.bf16.mxu0 0
    %424 = vmatmul.mubr.bf16.gmra.mrb[0].mxu0 %v214
    %v425 = vpop.f32.mrb[0].mxu0
    %v426 = vadd.f32 %v309, %v425
    %v427 = vpop.f32.mrb[0].mxu0
    %v428 = vpop.f32.mrb[0].mxu0
    %v429 = vadd.f32 %v309, %v428
    %v430 = vpop.f32.mrb[0].mxu0
    %431 = vmatprep.mubr.bf16.mxu0 0
    %432 = vmatmul.mubr.bf16.gmra.mrb[0].mxu0 %v215
    %v433 = vpop.f32.mrb[0].mxu0
    %v434 = vadd.f32 %v309, %v433
    %v435 = vpop.f32.mrb[0].mxu0
    %v436 = vpop.f32.mrb[0].mxu0
    %v437 = vadd.f32 %v309, %v436
    %v438 = vpop.f32.mrb[0].mxu0
    %439 = vmatprep.mubr.bf16.mxu0 0
    %440 = vmatmul.mubr.bf16.gmra.mrb[0].mxu0 %v216
    %v441 = vpop.f32.mrb[0].mxu0
    %v442 = vadd.f32 %v309, %v441
    %v443 = vpop.f32.mrb[0].mxu0
    %v444 = vpop.f32.mrb[0].mxu0
    %v445 = vadd.f32 %v309, %v444
    %v446 = vpop.f32.mrb[0].mxu0
    %447 = vmatprep.mubr.bf16.mxu0 0
    %448 = vmatmul.mubr.bf16.gmra.mrb[0].mxu0 %v217
    %v449 = vpop.f32.mrb[0].mxu0
    %v450 = vadd.f32 %v309, %v449
    %v451 = vpop.f32.mrb[0].mxu0
    %v452 = vpop.f32.mrb[0].mxu0
    %v453 = vadd.f32 %v309, %v452
    %v454 = vpop.f32.mrb[0].mxu0
    %455 = vmatprep.mubr.bf16.mxu0 0
    %456 = vmatmul.mubr.bf16.gmra.mrb[0].mxu0 %v218
    %v457 = vpop.f32.mrb[0].mxu0
    %v458 = vadd.f32 %v309, %v457
    %v459 = vpop.f32.mrb[0].mxu0
    %v460 = vpop.f32.mrb[0].mxu0
    %v461 = vadd.f32 %v309, %v460
    %v462 = vpop.f32.mrb[0].mxu0
    %463 = vmatprep.mubr.bf16.mxu0 0
    %464 = vmatmul.mubr.bf16.gmra.mrb[0].mxu0 %v219
    %v465 = vpop.f32.mrb[0].mxu0
    %v466 = vadd.f32 %v309, %v465
    %v467 = vpop.f32.mrb[0].mxu0
    %v468 = vpop.f32.mrb[0].mxu0
    %v469 = vadd.f32 %v309, %v468
    %v470 = vpop.f32.mrb[0].mxu0
    %471 = vmatprep.mubr.bf16.mxu0 0
    %472 = vmatmul.mubr.bf16.gmra.mrb[0].mxu0 %v220
    %v473 = vpop.f32.mrb[0].mxu0
    %v474 = vadd.f32 %v309, %v473
    %v475 = vpop.f32.mrb[0].mxu0
    %v476 = vpop.f32.mrb[0].mxu0
    %v477 = vadd.f32 %v309, %v476
    %v478 = vpop.f32.mrb[0].mxu0
    %479 = vmatprep.mubr.bf16.mxu0 0
    %480 = vmatmul.mubr.bf16.gmra.mrb[0].mxu0 %v221
    %v481 = vpop.f32.mrb[0].mxu0
    %v482 = vadd.f32 %v309, %v481
    %v483 = vpop.f32.mrb[0].mxu0
    %v484 = vpop.f32.mrb[0].mxu0
    %v485 = vadd.f32 %v309, %v484
    %v486 = vpop.f32.mrb[0].mxu0
    %487 = vmatprep.mubr.bf16.mxu0 0
    %488 = vmatmul.mubr.bf16.gmra.mrb[0].mxu0 %v222
    %v489 = vpop.f32.mrb[0].mxu0
    %v490 = vadd.f32 %v309, %v489
    %v491 = vpop.f32.mrb[0].mxu0
    %v492 = vpop.f32.mrb[0].mxu0
    %v493 = vadd.f32 %v309, %v492
    %v494 = vpop.f32.mrb[0].mxu0
    %495 = vmatprep.mubr.bf16.mxu0 0
    %496 = vmatmul.mubr.bf16.gmra.mrb[0].mxu0 %v223
    %v497 = vpop.f32.mrb[0].mxu0
    %v498 = vadd.f32 %v309, %v497
    %v499 = vpop.f32.mrb[0].mxu0
    %v500 = vpop.f32.mrb[0].mxu0
    %v501 = vadd.f32 %v309, %v500
    %v502 = vpop.f32.mrb[0].mxu0
    %503 = vmatprep.mubr.bf16.mxu0 0
    %504 = vmatmul.mubr.bf16.gmra.mrb[0].mxu0 %v224
    %v505 = vpop.f32.mrb[0].mxu0
    %v506 = vadd.f32 %v309, %v505
    %v507 = vpop.f32.mrb[0].mxu0
    %v508 = vpop.f32.mrb[0].mxu0
    %v509 = vadd.f32 %v309, %v508
    %v510 = vpop.f32.mrb[0].mxu0
    %511 = vmatprep.mubr.bf16.mxu0 0
    %512 = vmatmul.mubr.bf16.gmra.mrb[0].mxu0 %v225
    %v513 = vpop.f32.mrb[0].mxu0
    %v514 = vadd.f32 %v309, %v513
    %v515 = vpop.f32.mrb[0].mxu0
    %v516 = vpop.f32.mrb[0].mxu0
    %v517 = vadd.f32 %v309, %v516
    %v518 = vpop.f32.mrb[0].mxu0
    %519 = vmatprep.mubr.bf16.mxu0 0
    %520 = vmatmul.mubr.bf16.gmra.mrb[0].mxu0 %v226
    %v521 = vpop.f32.mrb[0].mxu0
    %v522 = vadd.f32 %v309, %v521
    %v523 = vpop.f32.mrb[0].mxu0
    %v524 = vpop.f32.mrb[0].mxu0
    %v525 = vadd.f32 %v309, %v524
    %v526 = vpop.f32.mrb[0].mxu0
    %527 = vmatprep.mubr.bf16.mxu0 0
    %528 = vmatmul.mubr.bf16.gmra.mrb[0].mxu0 %v227
    %v529 = vpop.f32.mrb[0].mxu0
    %v530 = vadd.f32 %v309, %v529
    %v531 = vpop.f32.mrb[0].mxu0
    %v532 = vpop.f32.mrb[0].mxu0
    %v533 = vadd.f32 %v309, %v532
    %v534 = vpop.f32.mrb[0].mxu0
    %535 = vmatprep.mubr.bf16.mxu0 0
    %536 = vmatmul.mubr.bf16.gmra.mrb[0].mxu0 %v228
    %v537 = vpop.f32.mrb[0].mxu0
    %v538 = vadd.f32 %v309, %v537
    %v539 = vpop.f32.mrb[0].mxu0
    %v540 = vpop.f32.mrb[0].mxu0
    %v541 = vadd.f32 %v309, %v540
    %v542 = vpop.f32.mrb[0].mxu0
    %543 = vmatprep.mubr.bf16.mxu0 0
    %544 = vmatmul.mubr.bf16.gmra.mrb[0].mxu0 %v229
    %v545 = vpop.f32.mrb[0].mxu0
    %v546 = vadd.f32 %v309, %v545
    %v547 = vpop.f32.mrb[0].mxu0
    %v548 = vpop.f32.mrb[0].mxu0
    %v549 = vadd.f32 %v309, %v548
    %v550 = vpop.f32.mrb[0].mxu0
    %551 = vmatprep.mubr.bf16.mxu0 0
    %552 = vmatmul.mubr.bf16.gmra.mrb[0].mxu0 %v230
    %v553 = vpop.f32.mrb[0].mxu0
    %v554 = vadd.f32 %v309, %v553
    %v555 = vpop.f32.mrb[0].mxu0
    %v556 = vpop.f32.mrb[0].mxu0
    %v557 = vadd.f32 %v309, %v556
    %v558 = vpop.f32.mrb[0].mxu0
    %559 = vmatprep.mubr.bf16.mxu0 0
    %560 = vmatmul.mubr.bf16.gmra.mrb[0].mxu0 %v231
    %v561 = vpop.f32.mrb[0].mxu0
    %v562 = vadd.f32 %v309, %v561
    %v563 = vpop.f32.mrb[0].mxu0
    %v564 = vpop.f32.mrb[0].mxu0
    %v565 = vadd.f32 %v309, %v564
    %v566 = vpop.f32.mrb[0].mxu0
    %567 = vmatprep.mubr.bf16.mxu0 0
    %568 = vmatmul.mubr.bf16.gmra.mrb[0].mxu0 %v232
    %v569 = vpop.f32.mrb[0].mxu0
    %v570 = vadd.f32 %v309, %v569
    %v571 = vpop.f32.mrb[0].mxu0
    %v572 = vpop.f32.mrb[0].mxu0
    %v573 = vadd.f32 %v309, %v572
    %v574 = vpop.f32.mrb[0].mxu0
    %575 = vmatprep.mubr.bf16.mxu0 0
    %576 = vmatmul.mubr.bf16.gmra.mrb[0].mxu0 %v233
    %v577 = vpop.f32.mrb[0].mxu0
    %v578 = vadd.f32 %v309, %v577
    %v579 = vpop.f32.mrb[0].mxu0
    %v580 = vpop.f32.mrb[0].mxu0
    %v581 = vadd.f32 %v309, %v580
    %v582 = vpop.f32.mrb[0].mxu0
    %583 = vmatprep.mubr.bf16.mxu0 0
    %584 = vmatmul.mubr.bf16.gmra.mrb[0].mxu0 %v234
    %v585 = vpop.f32.mrb[0].mxu0
    %v586 = vadd.f32 %v309, %v585
    %v587 = vpop.f32.mrb[0].mxu0
    %v588 = vpop.f32.mrb[0].mxu0
    %v589 = vadd.f32 %v309, %v588
    %v590 = vpop.f32.mrb[0].mxu0
    %591 = vmatprep.mubr.bf16.mxu0 0
    %592 = vmatmul.mubr.bf16.gmra.mrb[0].mxu0 %v235
    %v593 = vpop.f32.mrb[0].mxu0
    %v594 = vadd.f32 %v309, %v593
    %v595 = vpop.f32.mrb[0].mxu0
    %v596 = vpop.f32.mrb[0].mxu0
    %v597 = vadd.f32 %v309, %v596
    %v598 = vpop.f32.mrb[0].mxu0
    %599 = vmatprep.mubr.bf16.mxu0 0
    %600 = vmatmul.mubr.bf16.gmra.mrb[0].mxu0 %v236
    %v601 = vpop.f32.mrb[0].mxu0
    %v602 = vadd.f32 %v309, %v601
    %v603 = vpop.f32.mrb[0].mxu0
    %v604 = vpop.f32.mrb[0].mxu0
    %v605 = vadd.f32 %v309, %v604
    %v606 = vpop.f32.mrb[0].mxu0
    %607 = vmatprep.mubr.bf16.mxu0 0
    %608 = vmatmul.mubr.bf16.gmra.mrb[0].mxu0 %v237
    %v609 = vpop.f32.mrb[0].mxu0
    %v610 = vadd.f32 %v309, %v609
    %v611 = vpop.f32.mrb[0].mxu0
    %v612 = vpop.f32.mrb[0].mxu0
    %v613 = vadd.f32 %v309, %v612
    %v614 = vpop.f32.mrb[0].mxu0
    %615 = vmatprep.mubr.bf16.mxu0 0
    %616 = vmatmul.mubr.bf16.gmra.mrb[0].mxu0 %v238
    %v617 = vpop.f32.mrb[0].mxu0
    %v618 = vadd.f32 %v309, %v617
    %v619 = vpop.f32.mrb[0].mxu0
    %v620 = vpop.f32.mrb[0].mxu0
    %v621 = vadd.f32 %v309, %v620
    %v622 = vpop.f32.mrb[0].mxu0
    %623 = vmatprep.mubr.bf16.mxu0 0
    %624 = vmatmul.mubr.bf16.gmra.mrb[0].mxu0 %v239
    %v625 = vpop.f32.mrb[0].mxu0
    %v626 = vadd.f32 %v309, %v625
    %v627 = vpop.f32.mrb[0].mxu0
    %v628 = vpop.f32.mrb[0].mxu0
    %v629 = vadd.f32 %v309, %v628
    %v630 = vpop.f32.mrb[0].mxu0
    %631 = vmatprep.mubr.bf16.mxu0 0
    %632 = vmatmul.mubr.bf16.gmra.mrb[0].mxu0 %v240
    %v633 = vpop.f32.mrb[0].mxu0
    %v634 = vadd.f32 %v309, %v633
    %v635 = vpop.f32.mrb[0].mxu0
    %v636 = vpop.f32.mrb[0].mxu0
    %v637 = vadd.f32 %v309, %v636
    %v638 = vpop.f32.mrb[0].mxu0
    %639 = vmatprep.mubr.bf16.mxu0 0
    %640 = vmatmul.mubr.bf16.gmra.mrb[0].mxu0 %v241
    %v641 = vpop.f32.mrb[0].mxu0
    %v642 = vadd.f32 %v309, %v641
    %v643 = vpop.f32.mrb[0].mxu0
    %v644 = vpop.f32.mrb[0].mxu0
    %v645 = vadd.f32 %v309, %v644
    %v646 = vpop.f32.mrb[0].mxu0
    %647 = vmatprep.mubr.bf16.mxu0 0
    %648 = vmatmul.mubr.bf16.gmra.mrb[0].mxu0 %v242
    %v649 = vpop.f32.mrb[0].mxu0
    %v650 = vadd.f32 %v309, %v649
    %v651 = vpop.f32.mrb[0].mxu0
    %v652 = vpop.f32.mrb[0].mxu0
    %v653 = vadd.f32 %v309, %v652
    %v654 = vpop.f32.mrb[0].mxu0
    %655 = vmatprep.mubr.bf16.mxu0 0
    %656 = vmatmul.mubr.bf16.gmra.mrb[0].mxu0 %v243
    %v657 = vpop.f32.mrb[0].mxu0
    %v658 = vadd.f32 %v309, %v657
    %v659 = vpop.f32.mrb[0].mxu0
    %v660 = vpop.f32.mrb[0].mxu0
    %v661 = vadd.f32 %v309, %v660
    %v662 = vpop.f32.mrb[0].mxu0
    %663 = vmatprep.mubr.bf16.mxu0 0
    %664 = vmatmul.mubr.bf16.gmra.mrb[0].mxu0 %v244
    %v665 = vpop.f32.mrb[0].mxu0
    %v666 = vadd.f32 %v309, %v665
    %v667 = vpop.f32.mrb[0].mxu0
    %v668 = vpop.f32.mrb[0].mxu0
    %v669 = vadd.f32 %v309, %v668
    %v670 = vpop.f32.mrb[0].mxu0
    %671 = vmatprep.mubr.bf16.mxu0 0
    %672 = vmatmul.mubr.bf16.gmra.mrb[0].mxu0 %v245
    %v673 = vpop.f32.mrb[0].mxu0
    %v674 = vadd.f32 %v309, %v673
    %v675 = vpop.f32.mrb[0].mxu0
    %v676 = vpop.f32.mrb[0].mxu0
    %v677 = vadd.f32 %v309, %v676
    %v678 = vpop.f32.mrb[0].mxu0
    %679 = vmatprep.mubr.bf16.mxu0 0
    %680 = vmatmul.mubr.bf16.gmra.mrb[0].mxu0 %v246
    %v681 = vpop.f32.mrb[0].mxu0
    %v682 = vadd.f32 %v309, %v681
    %v683 = vpop.f32.mrb[0].mxu0
    %v684 = vpop.f32.mrb[0].mxu0
    %v685 = vadd.f32 %v309, %v684
    %v686 = vpop.f32.mrb[0].mxu0
    %687 = vmatprep.mubr.bf16.mxu0 0
    %688 = vmatmul.mubr.bf16.gmra.mrb[0].mxu0 %v247
    %v689 = vpop.f32.mrb[0].mxu0
    %v690 = vadd.f32 %v309, %v689
    %v691 = vpop.f32.mrb[0].mxu0
    %v692 = vpop.f32.mrb[0].mxu0
    %v693 = vadd.f32 %v309, %v692
    %v694 = vpop.f32.mrb[0].mxu0
    %695 = vmatprep.mubr.bf16.mxu0 0
    %696 = vmatmul.mubr.bf16.gmra.mrb[0].mxu0 %v248
    %v697 = vpop.f32.mrb[0].mxu0
    %v698 = vadd.f32 %v309, %v697
    %v699 = vpop.f32.mrb[0].mxu0
    %v700 = vpop.f32.mrb[0].mxu0
    %v701 = vadd.f32 %v309, %v700
    %v702 = vpop.f32.mrb[0].mxu0
    %703 = vmatprep.mubr.bf16.mxu0 0
    %704 = vmatmul.mubr.bf16.gmra.mrb[0].mxu0 %v249
    %v705 = vpop.f32.mrb[0].mxu0
    %v706 = vadd.f32 %v309, %v705
    %v707 = vpop.f32.mrb[0].mxu0
    %v708 = vpop.f32.mrb[0].mxu0
    %v709 = vadd.f32 %v309, %v708
    %v710 = vpop.f32.mrb[0].mxu0
    %711 = vmatprep.mubr.bf16.mxu0 0
    %712 = vmatmul.mubr.bf16.gmra.mrb[0].mxu0 %v250
    %v713 = vpop.f32.mrb[0].mxu0
    %v714 = vadd.f32 %v309, %v713
    %v715 = vpop.f32.mrb[0].mxu0
    %v716 = vpop.f32.mrb[0].mxu0
    %v717 = vadd.f32 %v309, %v716
    %v718 = vpop.f32.mrb[0].mxu0
    %719 = vmatprep.mubr.bf16.mxu0 0
    %720 = vmatmul.mubr.bf16.gmra.mrb[0].mxu0 %v251
    %v721 = vpop.f32.mrb[0].mxu0
    %v722 = vadd.f32 %v309, %v721
    %v723 = vpop.f32.mrb[0].mxu0
    %v724 = vpop.f32.mrb[0].mxu0
    %v725 = vadd.f32 %v309, %v724
    %v726 = vpop.f32.mrb[0].mxu0
    %727 = vmatprep.mubr.bf16.mxu0 0
    %728 = vmatmul.mubr.bf16.gmra.mrb[0].mxu0 %v252
    %v729 = vpop.f32.mrb[0].mxu0
    %v730 = vadd.f32 %v309, %v729
    %v731 = vpop.f32.mrb[0].mxu0
    %v732 = vpop.f32.mrb[0].mxu0
    %v733 = vadd.f32 %v309, %v732
    %v734 = vpop.f32.mrb[0].mxu0
    %735 = vmatprep.mubr.bf16.mxu0 0
    %736 = vmatmul.mubr.bf16.gmra.mrb[0].mxu0 %v253
    %v737 = vpop.f32.mrb[0].mxu0
    %v738 = vadd.f32 %v309, %v737
    %v739 = vpop.f32.mrb[0].mxu0
    %v740 = vpop.f32.mrb[0].mxu0
    %v741 = vadd.f32 %v309, %v740
    %v742 = vpop.f32.mrb[0].mxu0
    %743 = vmatprep.mubr.bf16.mxu0 0
    %744 = vmatmul.mubr.bf16.gmra.mrb[0].mxu0 %v254
    %v745 = vpop.f32.mrb[0].mxu0
    %v746 = vadd.f32 %v309, %v745
    %v747 = vpop.f32.mrb[0].mxu0
    %v748 = vpop.f32.mrb[0].mxu0
    %v749 = vadd.f32 %v309, %v748
    %v750 = vpop.f32.mrb[0].mxu0
    %751 = vmatprep.mubr.bf16.mxu0 0
    %752 = vmatmul.mubr.bf16.gmra.mrb[0].mxu0 %v255
    %v753 = vpop.f32.mrb[0].mxu0
    %v754 = vadd.f32 %v309, %v753
    %v755 = vpop.f32.mrb[0].mxu0
    %v756 = vpop.f32.mrb[0].mxu0
    %v757 = vadd.f32 %v309, %v756
    %v758 = vpop.f32.mrb[0].mxu0
    %759 = vmatprep.mubr.bf16.mxu0 0
    %760 = vmatmul.mubr.bf16.gmra.mrb[0].mxu0 %v256
    %v761 = vpop.f32.mrb[0].mxu0
    %v762 = vadd.f32 %v309, %v761
    %v763 = vpop.f32.mrb[0].mxu0
    %v764 = vpop.f32.mrb[0].mxu0
    %v765 = vadd.f32 %v309, %v764
    %v766 = vpop.f32.mrb[0].mxu0
    %767 = vmatprep.mubr.bf16.mxu0 0
    %768 = vmatmul.mubr.bf16.gmra.mrb[0].mxu0 %v257
    %v769 = vpop.f32.mrb[0].mxu0
    %v770 = vadd.f32 %v309, %v769
    %v771 = vpop.f32.mrb[0].mxu0
    %v772 = vpop.f32.mrb[0].mxu0
    %v773 = vadd.f32 %v309, %v772
    %v774 = vpop.f32.mrb[0].mxu0
    %775 = vmatprep.mubr.bf16.mxu0 0
    %776 = vmatmul.mubr.bf16.gmra.mrb[0].mxu0 %v258
    %v777 = vpop.f32.mrb[0].mxu0
    %v778 = vadd.f32 %v309, %v777
    %v779 = vpop.f32.mrb[0].mxu0
    %v780 = vpop.f32.mrb[0].mxu0
    %v781 = vadd.f32 %v309, %v780
    %v782 = vpop.f32.mrb[0].mxu0
    %783 = vmatprep.mubr.bf16.mxu0 0
    %784 = vmatmul.mubr.bf16.gmra.mrb[0].mxu0 %v259
    %v785 = vpop.f32.mrb[0].mxu0
    %v786 = vadd.f32 %v309, %v785
    %v787 = vpop.f32.mrb[0].mxu0
    %v788 = vpop.f32.mrb[0].mxu0
    %v789 = vadd.f32 %v309, %v788
    %v790 = vpop.f32.mrb[0].mxu0
    %791 = vmatprep.mubr.bf16.mxu0 0
    %792 = vmatmul.mubr.bf16.gmra.mrb[0].mxu0 %v260
    %v793 = vpop.f32.mrb[0].mxu0
    %v794 = vadd.f32 %v309, %v793
    %v795 = vpop.f32.mrb[0].mxu0
    %v796 = vpop.f32.mrb[0].mxu0
    %v797 = vadd.f32 %v309, %v796
    %v798 = vpop.f32.mrb[0].mxu0
    %799 = vmatprep.mubr.bf16.mxu0 0
    %800 = vmatmul.mubr.bf16.gmra.mrb[0].mxu0 %v261
    %v801 = vpop.f32.mrb[0].mxu0
    %v802 = vadd.f32 %v309, %v801
    %v803 = vpop.f32.mrb[0].mxu0
    %v804 = vpop.f32.mrb[0].mxu0
    %v805 = vadd.f32 %v309, %v804
    %v806 = vpop.f32.mrb[0].mxu0
    %807 = vmatprep.mubr.bf16.mxu0 0
    %808 = vmatmul.mubr.bf16.gmra.mrb[0].mxu0 %v262
    %v809 = vpop.f32.mrb[0].mxu0
    %v810 = vadd.f32 %v309, %v809
    %v811 = vpop.f32.mrb[0].mxu0
    %v812 = vpop.f32.mrb[0].mxu0
    %v813 = vadd.f32 %v309, %v812
    %v814 = vpop.f32.mrb[0].mxu0
    %815 = vmatprep.mubr.bf16.mxu0 0
    %816 = vmatmul.mubr.bf16.gmra.mrb[0].mxu0 %v263
    %v817 = vpop.f32.mrb[0].mxu0
    %v818 = vadd.f32 %v309, %v817
    %v819 = vpop.f32.mrb[0].mxu0
    %v820 = vpop.f32.mrb[0].mxu0
    %v821 = vadd.f32 %v309, %v820
    %v822 = vpop.f32.mrb[0].mxu0
    %823 = vmatprep.mubr.bf16.mxu0 0
    %824 = vmatmul.mubr.bf16.gmra.mrb[0].mxu0 %v264
    %v825 = vpop.f32.mrb[0].mxu0
    %v826 = vadd.f32 %v309, %v825
    %v827 = vpop.f32.mrb[0].mxu0
    %v828 = vpop.f32.mrb[0].mxu0
    %v829 = vadd.f32 %v309, %v828
    %v830 = vpop.f32.mrb[0].mxu0
    %831 = vmatprep.mubr.bf16.mxu0 0
    %832 = vmatmul.mubr.bf16.gmra.mrb[0].mxu0 %v265
    %v833 = vpop.f32.mrb[0].mxu0
    %v834 = vadd.f32 %v309, %v833
    %v835 = vpop.f32.mrb[0].mxu0
    %v836 = vpop.f32.mrb[0].mxu0
    %v837 = vadd.f32 %v309, %v836
    %v838 = vpop.f32.mrb[0].mxu0
    %839 = vmatprep.mubr.bf16.mxu0 0
    %840 = vmatmul.mubr.bf16.gmra.mrb[0].mxu0 %v266
    %v841 = vpop.f32.mrb[0].mxu0
    %v842 = vadd.f32 %v309, %v841
    %v843 = vpop.f32.mrb[0].mxu0
    %v844 = vpop.f32.mrb[0].mxu0
    %v845 = vadd.f32 %v309, %v844
    %v846 = vpop.f32.mrb[0].mxu0
    %847 = vmatprep.mubr.bf16.mxu0 0
    %848 = vmatmul.mubr.bf16.gmra.mrb[0].mxu0 %v267
    %v849 = vpop.f32.mrb[0].mxu0
    %v850 = vadd.f32 %v309, %v849
    %v851 = vpop.f32.mrb[0].mxu0
    %v852 = vpop.f32.mrb[0].mxu0
    %v853 = vadd.f32 %v309, %v852
    %v854 = vpop.f32.mrb[0].mxu0
    %855 = vmatprep.mubr.bf16.mxu0 0
    %856 = vmatmul.mubr.bf16.gmra.mrb[0].mxu0 %v268
    %v857 = vpop.f32.mrb[0].mxu0
    %v858 = vadd.f32 %v309, %v857
    %v859 = vpop.f32.mrb[0].mxu0
    %v860 = vpop.f32.mrb[0].mxu0
    %v861 = vadd.f32 %v309, %v860
    %v862 = vpop.f32.mrb[0].mxu0
    %863 = vmatprep.mubr.bf16.mxu0 0
    %864 = vmatmul.mubr.bf16.gmra.mrb[0].mxu0 %v269
    %v865 = vpop.f32.mrb[0].mxu0
    %v866 = vadd.f32 %v309, %v865
    %v867 = vpop.f32.mrb[0].mxu0
    %v868 = vpop.f32.mrb[0].mxu0
    %v869 = vadd.f32 %v309, %v868
    %v870 = vpop.f32.mrb[0].mxu0
    %871 = vmatprep.mubr.bf16.mxu0 0
    %872 = vmatmul.mubr.bf16.gmra.mrb[0].mxu0 %v270
    %v873 = vpop.f32.mrb[0].mxu0
    %v874 = vadd.f32 %v309, %v873
    %v875 = vpop.f32.mrb[0].mxu0
    %v876 = vpop.f32.mrb[0].mxu0
    %v877 = vadd.f32 %v309, %v876
    %v878 = vpop.f32.mrb[0].mxu0
    %879 = vmatprep.mubr.bf16.mxu0 0
    %880 = vmatmul.mubr.bf16.gmra.mrb[0].mxu0 %v271
    %v881 = vpop.f32.mrb[0].mxu0
    %v882 = vadd.f32 %v309, %v881
    %v883 = vpop.f32.mrb[0].mxu0
    %v884 = vpop.f32.mrb[0].mxu0
    %v885 = vadd.f32 %v309, %v884
    %v886 = vpop.f32.mrb[0].mxu0
    %887 = vmatprep.mubr.bf16.mxu0 0
    %888 = vmatmul.mubr.bf16.gmra.mrb[0].mxu0 %v272
    %v889 = vpop.f32.mrb[0].mxu0
    %v890 = vadd.f32 %v309, %v889
    %v891 = vpop.f32.mrb[0].mxu0
    %v892 = vpop.f32.mrb[0].mxu0
    %v893 = vadd.f32 %v309, %v892
    %v894 = vpop.f32.mrb[0].mxu0
    %895 = vmatprep.mubr.bf16.mxu0 0
    %896 = vmatmul.mubr.bf16.gmra.mrb[0].mxu0 %v273
    %v897 = vpop.f32.mrb[0].mxu0
    %v898 = vadd.f32 %v309, %v897
    %v899 = vpop.f32.mrb[0].mxu0
    %v900 = vpop.f32.mrb[0].mxu0
    %v901 = vadd.f32 %v309, %v900
    %v902 = vpop.f32.mrb[0].mxu0
    %903 = vmatprep.mubr.bf16.mxu0 0
    %904 = vmatmul.mubr.bf16.gmra.mrb[0].mxu0 %v274
    %v905 = vpop.f32.mrb[0].mxu0
    %v906 = vadd.f32 %v309, %v905
    %v907 = vpop.f32.mrb[0].mxu0
    %v908 = vpop.f32.mrb[0].mxu0
    %v909 = vadd.f32 %v309, %v908
    %v910 = vpop.f32.mrb[0].mxu0
    %911 = vmatprep.mubr.bf16.mxu0 0
    %912 = vmatmul.mubr.bf16.gmra.mrb[0].mxu0 %v275
    %v913 = vpop.f32.mrb[0].mxu0
    %v914 = vadd.f32 %v309, %v913
    %v915 = vpop.f32.mrb[0].mxu0
    %v916 = vpop.f32.mrb[0].mxu0
    %v917 = vadd.f32 %v309, %v916
    %v918 = vpop.f32.mrb[0].mxu0
    %919 = vmatprep.mubr.bf16.mxu0 0
    %920 = vmatmul.mubr.bf16.gmra.mrb[0].mxu0 %v276
    %v921 = vpop.f32.mrb[0].mxu0
    %v922 = vadd.f32 %v309, %v921
    %v923 = vpop.f32.mrb[0].mxu0
    %v924 = vpop.f32.mrb[0].mxu0
    %v925 = vadd.f32 %v309, %v924
    %v926 = vpop.f32.mrb[0].mxu0
    %927 = vmatprep.mubr.bf16.mxu0 0
    %928 = vmatmul.mubr.bf16.gmra.mrb[0].mxu0 %v277
    %v929 = vpop.f32.mrb[0].mxu0
    %v930 = vadd.f32 %v309, %v929
    %v931 = vpop.f32.mrb[0].mxu0
    %v932 = vpop.f32.mrb[0].mxu0
    %v933 = vadd.f32 %v309, %v932
    %v934 = vpop.f32.mrb[0].mxu0
    %935 = vmatprep.mubr.bf16.mxu0 0
    %936 = vmatmul.mubr.bf16.gmra.mrb[0].mxu0 %v278
    %v937 = vpop.f32.mrb[0].mxu0
    %v938 = vadd.f32 %v309, %v937
    %v939 = vpop.f32.mrb[0].mxu0
    %v940 = vpop.f32.mrb[0].mxu0
    %v941 = vadd.f32 %v309, %v940
    %v942 = vpop.f32.mrb[0].mxu0
    %943 = vmatprep.mubr.bf16.mxu0 0
    %944 = vmatmul.mubr.bf16.gmra.mrb[0].mxu0 %v279
    %v945 = vpop.f32.mrb[0].mxu0
    %v946 = vadd.f32 %v309, %v945
    %v947 = vpop.f32.mrb[0].mxu0
    %v948 = vpop.f32.mrb[0].mxu0
    %v949 = vadd.f32 %v309, %v948
    %v950 = vpop.f32.mrb[0].mxu0
    %951 = vdwg.mxu0
    %v952 = vtanh.pop %v346
    %v953 = vtanh.pop %v349
    %v954 = vtanh.pop %v354
    %v955 = vtanh.pop %v357
    %v956 = vtanh.pop %v362
    %v957 = vtanh.pop %v365
    %v958 = vtanh.pop %v370
    %v959 = vtanh.pop %v373
    %v960 = vtanh.pop %v378
    %v961 = vtanh.pop %v381
    %v962 = vtanh.pop %v386
    %v963 = vtanh.pop %v389
    %v964 = vtanh.pop %v394
    %v965 = vtanh.pop %v397
    %v966 = vtanh.pop %v402
    %v967 = vtanh.pop %v405
    %v968 = vtanh.pop %v410
    %v969 = vtanh.pop %v413
    %v970 = vtanh.pop %v418
    %v971 = vtanh.pop %v421
    %v972 = vtanh.pop %v426
    %v973 = vtanh.pop %v429
    %v974 = vtanh.pop %v434
    %v975 = vtanh.pop %v437
    %v976 = vtanh.pop %v442
    %v977 = vtanh.pop %v445
    %v978 = vtanh.pop %v450
    %v979 = vtanh.pop %v453
    %v980 = vtanh.pop %v458
    %v981 = vtanh.pop %v461
    %v982 = vtanh.pop %v466
    %v983 = vtanh.pop %v469
    %v984 = vtanh.pop %v474
    %v985 = vtanh.pop %v477
    %v986 = vtanh.pop %v482
    %v987 = vtanh.pop %v485
    %v988 = vtanh.pop %v490
    %v989 = vtanh.pop %v493
    %v990 = vtanh.pop %v498
    %v991 = vtanh.pop %v501
    %v992 = vtanh.pop %v506
    %v993 = vtanh.pop %v509
    %v994 = vtanh.pop %v514
    %v995 = vtanh.pop %v517
    %v996 = vtanh.pop %v522
    %v997 = vtanh.pop %v525
    %v998 = vtanh.pop %v530
    %v999 = vtanh.pop %v533
    %v1000 = vtanh.pop %v538
    %v1001 = vtanh.pop %v541
    %v1002 = vtanh.pop %v546
    %v1003 = vtanh.pop %v549
    %v1004 = vtanh.pop %v554
    %v1005 = vtanh.pop %v557
    %v1006 = vtanh.pop %v562
    %v1007 = vtanh.pop %v565
    %v1008 = vtanh.pop %v570
    %v1009 = vtanh.pop %v573
    %v1010 = vtanh.pop %v578
    %v1011 = vtanh.pop %v581
    %v1012 = vtanh.pop %v586
    %v1013 = vtanh.pop %v589
    %v1014 = vtanh.pop %v594
    %v1015 = vtanh.pop %v597
    %v1016 = vtanh.pop %v602
    %v1017 = vtanh.pop %v605
    %v1018 = vtanh.pop %v610
    %v1019 = vtanh.pop %v613
    %v1020 = vtanh.pop %v618
    %v1021 = vtanh.pop %v621
    %v1022 = vtanh.pop %v626
    %v1023 = vtanh.pop %v629
    %v1024 = vtanh.pop %v634
    %v1025 = vtanh.pop %v637
    %v1026 = vtanh.pop %v642
    %v1027 = vtanh.pop %v645
    %v1028 = vtanh.pop %v650
    %v1029 = vtanh.pop %v653
    %v1030 = vtanh.pop %v658
    %v1031 = vtanh.pop %v661
    %v1032 = vtanh.pop %v666
    %v1033 = vtanh.pop %v669
    %v1034 = vtanh.pop %v674
    %v1035 = vtanh.pop %v677
    %v1036 = vtanh.pop %v682
    %v1037 = vtanh.pop %v685
    %v1038 = vtanh.pop %v690
    %v1039 = vtanh.pop %v693
    %v1040 = vtanh.pop %v698
    %v1041 = vtanh.pop %v701
    %v1042 = vtanh.pop %v706
    %v1043 = vtanh.pop %v709
    %v1044 = vtanh.pop %v714
    %v1045 = vtanh.pop %v717
    %v1046 = vtanh.pop %v722
    %v1047 = vtanh.pop %v725
    %v1048 = vtanh.pop %v730
    %v1049 = vtanh.pop %v733
    %v1050 = vtanh.pop %v738
    %v1051 = vtanh.pop %v741
    %v1052 = vtanh.pop %v746
    %v1053 = vtanh.pop %v749
    %v1054 = vtanh.pop %v754
    %v1055 = vtanh.pop %v757
    %v1056 = vtanh.pop %v762
    %v1057 = vtanh.pop %v765
    %v1058 = vtanh.pop %v770
    %v1059 = vtanh.pop %v773
    %v1060 = vtanh.pop %v778
    %v1061 = vtanh.pop %v781
    %v1062 = vtanh.pop %v786
    %v1063 = vtanh.pop %v789
    %v1064 = vtanh.pop %v794
    %v1065 = vtanh.pop %v797
    %v1066 = vtanh.pop %v802
    %v1067 = vtanh.pop %v805
    %v1068 = vtanh.pop %v810
    %v1069 = vtanh.pop %v813
    %v1070 = vtanh.pop %v818
    %v1071 = vtanh.pop %v821
    %v1072 = vtanh.pop %v826
    %v1073 = vtanh.pop %v829
    %v1074 = vtanh.pop %v834
    %v1075 = vtanh.pop %v837
    %v1076 = vtanh.pop %v842
    %v1077 = vtanh.pop %v845
    %v1078 = vtanh.pop %v850
    %v1079 = vtanh.pop %v853
    %v1080 = vtanh.pop %v858
    %v1081 = vtanh.pop %v861
    %v1082 = vtanh.pop %v866
    %v1083 = vtanh.pop %v869
    %v1084 = vtanh.pop %v874
    %v1085 = vtanh.pop %v877
    %v1086 = vtanh.pop %v882
    %v1087 = vtanh.pop %v885
    %v1088 = vtanh.pop %v890
    %v1089 = vtanh.pop %v893
    %v1090 = vtanh.pop %v898
    %v1091 = vtanh.pop %v901
    %v1092 = vtanh.pop %v906
    %v1093 = vtanh.pop %v909
    %v1094 = vtanh.pop %v914
    %v1095 = vtanh.pop %v917
    %v1096 = vtanh.pop %v922
    %v1097 = vtanh.pop %v925
    %v1098 = vtanh.pop %v930
    %v1099 = vtanh.pop %v933
    %v1100 = vtanh.pop %v938
    %v1101 = vtanh.pop %v941
    %v1102 = vtanh.pop %v946
    %v1103 = vtanh.pop %v949
    %v1104 = vld [vmem:[%s3] sm:$0x1]
    %v1106 = vlaneseq
    %v1107 = vshrl.u32 %v1106, 7
    %v1108 = vsub.s32 0, %v1107
    %v1109 = vrot.slane %v1104, %v1108
    %v1111 = vmul.f32 %v952, %v1109
    %v1112 = vmul.f32 %v953, %v1109
    %v1113 = vmul.f32 %v954, %v1109
    %v1114 = vmul.f32 %v955, %v1109
    %v1115 = vmul.f32 %v956, %v1109
    %v1116 = vmul.f32 %v957, %v1109
    %v1117 = vmul.f32 %v958, %v1109
    %v1118 = vmul.f32 %v959, %v1109
    %v1119 = vmul.f32 %v960, %v1109
    %v1120 = vmul.f32 %v961, %v1109
    %v1121 = vmul.f32 %v962, %v1109
    %v1122 = vmul.f32 %v963, %v1109
    %v1123 = vmul.f32 %v964, %v1109
    %v1124 = vmul.f32 %v965, %v1109
    %v1125 = vmul.f32 %v966, %v1109
    %v1126 = vmul.f32 %v967, %v1109
    %v1127 = vmul.f32 %v968, %v1109
    %v1128 = vmul.f32 %v969, %v1109
    %v1129 = vmul.f32 %v970, %v1109
    %v1130 = vmul.f32 %v971, %v1109
    %v1131 = vmul.f32 %v972, %v1109
    %v1132 = vmul.f32 %v973, %v1109
    %v1133 = vmul.f32 %v974, %v1109
    %v1134 = vmul.f32 %v975, %v1109
    %v1135 = vmul.f32 %v976, %v1109
    %v1136 = vmul.f32 %v977, %v1109
    %v1137 = vmul.f32 %v978, %v1109
    %v1138 = vmul.f32 %v979, %v1109
    %v1139 = vmul.f32 %v980, %v1109
    %v1140 = vmul.f32 %v981, %v1109
    %v1141 = vmul.f32 %v982, %v1109
    %v1142 = vmul.f32 %v983, %v1109
    %v1143 = vmul.f32 %v984, %v1109
    %v1144 = vmul.f32 %v985, %v1109
    %v1145 = vmul.f32 %v986, %v1109
    %v1146 = vmul.f32 %v987, %v1109
    %v1147 = vmul.f32 %v988, %v1109
    %v1148 = vmul.f32 %v989, %v1109
    %v1149 = vmul.f32 %v990, %v1109
    %v1150 = vmul.f32 %v991, %v1109
    %v1151 = vmul.f32 %v992, %v1109
    %v1152 = vmul.f32 %v993, %v1109
    %v1153 = vmul.f32 %v994, %v1109
    %v1154 = vmul.f32 %v995, %v1109
    %v1155 = vmul.f32 %v996, %v1109
    %v1156 = vmul.f32 %v997, %v1109
    %v1157 = vmul.f32 %v998, %v1109
    %v1158 = vmul.f32 %v999, %v1109
    %v1159 = vmul.f32 %v1000, %v1109
    %v1160 = vmul.f32 %v1001, %v1109
    %v1161 = vmul.f32 %v1002, %v1109
    %v1162 = vmul.f32 %v1003, %v1109
    %v1163 = vmul.f32 %v1004, %v1109
    %v1164 = vmul.f32 %v1005, %v1109
    %v1165 = vmul.f32 %v1006, %v1109
    %v1166 = vmul.f32 %v1007, %v1109
    %v1167 = vmul.f32 %v1008, %v1109
    %v1168 = vmul.f32 %v1009, %v1109
    %v1169 = vmul.f32 %v1010, %v1109
    %v1170 = vmul.f32 %v1011, %v1109
    %v1171 = vmul.f32 %v1012, %v1109
    %v1172 = vmul.f32 %v1013, %v1109
    %v1173 = vmul.f32 %v1014, %v1109
    %v1174 = vmul.f32 %v1015, %v1109
    %v1175 = vmul.f32 %v1016, %v1109
    %v1176 = vmul.f32 %v1017, %v1109
    %v1177 = vmul.f32 %v1018, %v1109
    %v1178 = vmul.f32 %v1019, %v1109
    %v1179 = vmul.f32 %v1020, %v1109
    %v1180 = vmul.f32 %v1021, %v1109
    %v1181 = vmul.f32 %v1022, %v1109
    %v1182 = vmul.f32 %v1023, %v1109
    %v1183 = vmul.f32 %v1024, %v1109
    %v1184 = vmul.f32 %v1025, %v1109
    %v1185 = vmul.f32 %v1026, %v1109
    %v1186 = vmul.f32 %v1027, %v1109
    %v1187 = vmul.f32 %v1028, %v1109
    %v1188 = vmul.f32 %v1029, %v1109
    %v1189 = vmul.f32 %v1030, %v1109
    %v1190 = vmul.f32 %v1031, %v1109
    %v1191 = vmul.f32 %v1032, %v1109
    %v1192 = vmul.f32 %v1033, %v1109
    %v1193 = vmul.f32 %v1034, %v1109
    %v1194 = vmul.f32 %v1035, %v1109
    %v1195 = vmul.f32 %v1036, %v1109
    %v1196 = vmul.f32 %v1037, %v1109
    %v1197 = vmul.f32 %v1038, %v1109
    %v1198 = vmul.f32 %v1039, %v1109
    %v1199 = vmul.f32 %v1040, %v1109
    %v1200 = vmul.f32 %v1041, %v1109
    %v1201 = vmul.f32 %v1042, %v1109
    %v1202 = vmul.f32 %v1043, %v1109
    %v1203 = vmul.f32 %v1044, %v1109
    %v1204 = vmul.f32 %v1045, %v1109
    %v1205 = vmul.f32 %v1046, %v1109
    %v1206 = vmul.f32 %v1047, %v1109
    %v1207 = vmul.f32 %v1048, %v1109
    %v1208 = vmul.f32 %v1049, %v1109
    %v1209 = vmul.f32 %v1050, %v1109
    %v1210 = vmul.f32 %v1051, %v1109
    %v1211 = vmul.f32 %v1052, %v1109
    %v1212 = vmul.f32 %v1053, %v1109
    %v1213 = vmul.f32 %v1054, %v1109
    %v1214 = vmul.f32 %v1055, %v1109
    %v1215 = vmul.f32 %v1056, %v1109
    %v1216 = vmul.f32 %v1057, %v1109
    %v1217 = vmul.f32 %v1058, %v1109
    %v1218 = vmul.f32 %v1059, %v1109
    %v1219 = vmul.f32 %v1060, %v1109
    %v1220 = vmul.f32 %v1061, %v1109
    %v1221 = vmul.f32 %v1062, %v1109
    %v1222 = vmul.f32 %v1063, %v1109
    %v1223 = vmul.f32 %v1064, %v1109
    %v1224 = vmul.f32 %v1065, %v1109
    %v1225 = vmul.f32 %v1066, %v1109
    %v1226 = vmul.f32 %v1067, %v1109
    %v1227 = vmul.f32 %v1068, %v1109
    %v1228 = vmul.f32 %v1069, %v1109
    %v1229 = vmul.f32 %v1070, %v1109
    %v1230 = vmul.f32 %v1071, %v1109
    %v1231 = vmul.f32 %v1072, %v1109
    %v1232 = vmul.f32 %v1073, %v1109
    %v1233 = vmul.f32 %v1074, %v1109
    %v1234 = vmul.f32 %v1075, %v1109
    %v1235 = vmul.f32 %v1076, %v1109
    %v1236 = vmul.f32 %v1077, %v1109
    %v1237 = vmul.f32 %v1078, %v1109
    %v1238 = vmul.f32 %v1079, %v1109
    %v1239 = vmul.f32 %v1080, %v1109
    %v1240 = vmul.f32 %v1081, %v1109
    %v1241 = vmul.f32 %v1082, %v1109
    %v1242 = vmul.f32 %v1083, %v1109
    %v1243 = vmul.f32 %v1084, %v1109
    %v1244 = vmul.f32 %v1085, %v1109
    %v1245 = vmul.f32 %v1086, %v1109
    %v1246 = vmul.f32 %v1087, %v1109
    %v1247 = vmul.f32 %v1088, %v1109
    %v1248 = vmul.f32 %v1089, %v1109
    %v1249 = vmul.f32 %v1090, %v1109
    %v1250 = vmul.f32 %v1091, %v1109
    %v1251 = vmul.f32 %v1092, %v1109
    %v1252 = vmul.f32 %v1093, %v1109
    %v1253 = vmul.f32 %v1094, %v1109
    %v1254 = vmul.f32 %v1095, %v1109
    %v1255 = vmul.f32 %v1096, %v1109
    %v1256 = vmul.f32 %v1097, %v1109
    %v1257 = vmul.f32 %v1098, %v1109
    %v1258 = vmul.f32 %v1099, %v1109
    %v1259 = vmul.f32 %v1100, %v1109
    %v1260 = vmul.f32 %v1101, %v1109
    %v1261 = vmul.f32 %v1102, %v1109
    %v1262 = vmul.f32 %v1103, %v1109
    %1263 = vadd.xlane.f32.xlu0 %v1111
    %v1264 = vpop.xlane.xlu0 %1263
    %1265 = vadd.xlane.f32.xlu0 %v1112
    %v1266 = vpop.xlane.xlu0 %1265
    %1267 = vadd.xlane.f32.xlu0 %v1113
    %v1268 = vpop.xlane.xlu0 %1267
    %1269 = vadd.xlane.f32.xlu0 %v1114
    %v1270 = vpop.xlane.xlu0 %1269
    %1271 = vadd.xlane.f32.xlu0 %v1115
    %v1272 = vpop.xlane.xlu0 %1271
    %1273 = vadd.xlane.f32.xlu0 %v1116
    %v1274 = vpop.xlane.xlu0 %1273
    %1275 = vadd.xlane.f32.xlu0 %v1117
    %v1276 = vpop.xlane.xlu0 %1275
    %1277 = vadd.xlane.f32.xlu0 %v1118
    %v1278 = vpop.xlane.xlu0 %1277
    %1279 = vadd.xlane.f32.xlu0 %v1119
    %v1280 = vpop.xlane.xlu0 %1279
    %1281 = vadd.xlane.f32.xlu0 %v1120
    %v1282 = vpop.xlane.xlu0 %1281
    %1283 = vadd.xlane.f32.xlu0 %v1121
    %v1284 = vpop.xlane.xlu0 %1283
    %1285 = vadd.xlane.f32.xlu0 %v1122
    %v1286 = vpop.xlane.xlu0 %1285
    %1287 = vadd.xlane.f32.xlu0 %v1123
    %v1288 = vpop.xlane.xlu0 %1287
    %1289 = vadd.xlane.f32.xlu0 %v1124
    %v1290 = vpop.xlane.xlu0 %1289
    %1291 = vadd.xlane.f32.xlu0 %v1125
    %v1292 = vpop.xlane.xlu0 %1291
    %1293 = vadd.xlane.f32.xlu0 %v1126
    %v1294 = vpop.xlane.xlu0 %1293
    %1295 = vadd.xlane.f32.xlu0 %v1127
    %v1296 = vpop.xlane.xlu0 %1295
    %1297 = vadd.xlane.f32.xlu0 %v1128
    %v1298 = vpop.xlane.xlu0 %1297
    %1299 = vadd.xlane.f32.xlu0 %v1129
    %v1300 = vpop.xlane.xlu0 %1299
    %1301 = vadd.xlane.f32.xlu0 %v1130
    %v1302 = vpop.xlane.xlu0 %1301
    %1303 = vadd.xlane.f32.xlu0 %v1131
    %v1304 = vpop.xlane.xlu0 %1303
    %1305 = vadd.xlane.f32.xlu0 %v1132
    %v1306 = vpop.xlane.xlu0 %1305
    %1307 = vadd.xlane.f32.xlu0 %v1133
    %v1308 = vpop.xlane.xlu0 %1307
    %1309 = vadd.xlane.f32.xlu0 %v1134
    %v1310 = vpop.xlane.xlu0 %1309
    %1311 = vadd.xlane.f32.xlu0 %v1135
    %v1312 = vpop.xlane.xlu0 %1311
    %1313 = vadd.xlane.f32.xlu0 %v1136
    %v1314 = vpop.xlane.xlu0 %1313
    %1315 = vadd.xlane.f32.xlu0 %v1137
    %v1316 = vpop.xlane.xlu0 %1315
    %1317 = vadd.xlane.f32.xlu0 %v1138
    %v1318 = vpop.xlane.xlu0 %1317
    %1319 = vadd.xlane.f32.xlu0 %v1139
    %v1320 = vpop.xlane.xlu0 %1319
    %1321 = vadd.xlane.f32.xlu0 %v1140
    %v1322 = vpop.xlane.xlu0 %1321
    %1323 = vadd.xlane.f32.xlu0 %v1141
    %v1324 = vpop.xlane.xlu0 %1323
    %1325 = vadd.xlane.f32.xlu0 %v1142
    %v1326 = vpop.xlane.xlu0 %1325
    %1327 = vadd.xlane.f32.xlu0 %v1143
    %v1328 = vpop.xlane.xlu0 %1327
    %1329 = vadd.xlane.f32.xlu0 %v1144
    %v1330 = vpop.xlane.xlu0 %1329
    %1331 = vadd.xlane.f32.xlu0 %v1145
    %v1332 = vpop.xlane.xlu0 %1331
    %1333 = vadd.xlane.f32.xlu0 %v1146
    %v1334 = vpop.xlane.xlu0 %1333
    %1335 = vadd.xlane.f32.xlu0 %v1147
    %v1336 = vpop.xlane.xlu0 %1335
    %1337 = vadd.xlane.f32.xlu0 %v1148
    %v1338 = vpop.xlane.xlu0 %1337
    %1339 = vadd.xlane.f32.xlu0 %v1149
    %v1340 = vpop.xlane.xlu0 %1339
    %1341 = vadd.xlane.f32.xlu0 %v1150
    %v1342 = vpop.xlane.xlu0 %1341
    %1343 = vadd.xlane.f32.xlu0 %v1151
    %v1344 = vpop.xlane.xlu0 %1343
    %1345 = vadd.xlane.f32.xlu0 %v1152
    %v1346 = vpop.xlane.xlu0 %1345
    %1347 = vadd.xlane.f32.xlu0 %v1153
    %v1348 = vpop.xlane.xlu0 %1347
    %1349 = vadd.xlane.f32.xlu0 %v1154
    %v1350 = vpop.xlane.xlu0 %1349
    %1351 = vadd.xlane.f32.xlu0 %v1155
    %v1352 = vpop.xlane.xlu0 %1351
    %1353 = vadd.xlane.f32.xlu0 %v1156
    %v1354 = vpop.xlane.xlu0 %1353
    %1355 = vadd.xlane.f32.xlu0 %v1157
    %v1356 = vpop.xlane.xlu0 %1355
    %1357 = vadd.xlane.f32.xlu0 %v1158
    %v1358 = vpop.xlane.xlu0 %1357
    %1359 = vadd.xlane.f32.xlu0 %v1159
    %v1360 = vpop.xlane.xlu0 %1359
    %1361 = vadd.xlane.f32.xlu0 %v1160
    %v1362 = vpop.xlane.xlu0 %1361
    %1363 = vadd.xlane.f32.xlu0 %v1161
    %v1364 = vpop.xlane.xlu0 %1363
    %1365 = vadd.xlane.f32.xlu0 %v1162
    %v1366 = vpop.xlane.xlu0 %1365
    %1367 = vadd.xlane.f32.xlu0 %v1163
    %v1368 = vpop.xlane.xlu0 %1367
    %1369 = vadd.xlane.f32.xlu0 %v1164
    %v1370 = vpop.xlane.xlu0 %1369
    %1371 = vadd.xlane.f32.xlu0 %v1165
    %v1372 = vpop.xlane.xlu0 %1371
    %1373 = vadd.xlane.f32.xlu0 %v1166
    %v1374 = vpop.xlane.xlu0 %1373
    %1375 = vadd.xlane.f32.xlu0 %v1167
    %v1376 = vpop.xlane.xlu0 %1375
    %1377 = vadd.xlane.f32.xlu0 %v1168
    %v1378 = vpop.xlane.xlu0 %1377
    %1379 = vadd.xlane.f32.xlu0 %v1169
    %v1380 = vpop.xlane.xlu0 %1379
    %1381 = vadd.xlane.f32.xlu0 %v1170
    %v1382 = vpop.xlane.xlu0 %1381
    %1383 = vadd.xlane.f32.xlu0 %v1171
    %v1384 = vpop.xlane.xlu0 %1383
    %1385 = vadd.xlane.f32.xlu0 %v1172
    %v1386 = vpop.xlane.xlu0 %1385
    %1387 = vadd.xlane.f32.xlu0 %v1173
    %v1388 = vpop.xlane.xlu0 %1387
    %1389 = vadd.xlane.f32.xlu0 %v1174
    %v1390 = vpop.xlane.xlu0 %1389
    %1391 = vadd.xlane.f32.xlu0 %v1175
    %v1392 = vpop.xlane.xlu0 %1391
    %1393 = vadd.xlane.f32.xlu0 %v1176
    %v1394 = vpop.xlane.xlu0 %1393
    %1395 = vadd.xlane.f32.xlu0 %v1177
    %v1396 = vpop.xlane.xlu0 %1395
    %1397 = vadd.xlane.f32.xlu0 %v1178
    %v1398 = vpop.xlane.xlu0 %1397
    %1399 = vadd.xlane.f32.xlu0 %v1179
    %v1400 = vpop.xlane.xlu0 %1399
    %1401 = vadd.xlane.f32.xlu0 %v1180
    %v1402 = vpop.xlane.xlu0 %1401
    %1403 = vadd.xlane.f32.xlu0 %v1181
    %v1404 = vpop.xlane.xlu0 %1403
    %1405 = vadd.xlane.f32.xlu0 %v1182
    %v1406 = vpop.xlane.xlu0 %1405
    %1407 = vadd.xlane.f32.xlu0 %v1183
    %v1408 = vpop.xlane.xlu0 %1407
    %1409 = vadd.xlane.f32.xlu0 %v1184
    %v1410 = vpop.xlane.xlu0 %1409
    %1411 = vadd.xlane.f32.xlu0 %v1185
    %v1412 = vpop.xlane.xlu0 %1411
    %1413 = vadd.xlane.f32.xlu0 %v1186
    %v1414 = vpop.xlane.xlu0 %1413
    %1415 = vadd.xlane.f32.xlu0 %v1187
    %v1416 = vpop.xlane.xlu0 %1415
    %1417 = vadd.xlane.f32.xlu0 %v1188
    %v1418 = vpop.xlane.xlu0 %1417
    %1419 = vadd.xlane.f32.xlu0 %v1189
    %v1420 = vpop.xlane.xlu0 %1419
    %1421 = vadd.xlane.f32.xlu0 %v1190
    %v1422 = vpop.xlane.xlu0 %1421
    %1423 = vadd.xlane.f32.xlu0 %v1191
    %v1424 = vpop.xlane.xlu0 %1423
    %1425 = vadd.xlane.f32.xlu0 %v1192
    %v1426 = vpop.xlane.xlu0 %1425
    %1427 = vadd.xlane.f32.xlu0 %v1193
    %v1428 = vpop.xlane.xlu0 %1427
    %1429 = vadd.xlane.f32.xlu0 %v1194
    %v1430 = vpop.xlane.xlu0 %1429
    %1431 = vadd.xlane.f32.xlu0 %v1195
    %v1432 = vpop.xlane.xlu0 %1431
    %1433 = vadd.xlane.f32.xlu0 %v1196
    %v1434 = vpop.xlane.xlu0 %1433
    %1435 = vadd.xlane.f32.xlu0 %v1197
    %v1436 = vpop.xlane.xlu0 %1435
    %1437 = vadd.xlane.f32.xlu0 %v1198
    %v1438 = vpop.xlane.xlu0 %1437
    %1439 = vadd.xlane.f32.xlu0 %v1199
    %v1440 = vpop.xlane.xlu0 %1439
    %1441 = vadd.xlane.f32.xlu0 %v1200
    %v1442 = vpop.xlane.xlu0 %1441
    %1443 = vadd.xlane.f32.xlu0 %v1201
    %v1444 = vpop.xlane.xlu0 %1443
    %1445 = vadd.xlane.f32.xlu0 %v1202
    %v1446 = vpop.xlane.xlu0 %1445
    %1447 = vadd.xlane.f32.xlu0 %v1203
    %v1448 = vpop.xlane.xlu0 %1447
    %1449 = vadd.xlane.f32.xlu0 %v1204
    %v1450 = vpop.xlane.xlu0 %1449
    %1451 = vadd.xlane.f32.xlu0 %v1205
    %v1452 = vpop.xlane.xlu0 %1451
    %1453 = vadd.xlane.f32.xlu0 %v1206
    %v1454 = vpop.xlane.xlu0 %1453
    %1455 = vadd.xlane.f32.xlu0 %v1207
    %v1456 = vpop.xlane.xlu0 %1455
    %1457 = vadd.xlane.f32.xlu0 %v1208
    %v1458 = vpop.xlane.xlu0 %1457
    %1459 = vadd.xlane.f32.xlu0 %v1209
    %v1460 = vpop.xlane.xlu0 %1459
    %1461 = vadd.xlane.f32.xlu0 %v1210
    %v1462 = vpop.xlane.xlu0 %1461
    %1463 = vadd.xlane.f32.xlu0 %v1211
    %v1464 = vpop.xlane.xlu0 %1463
    %1465 = vadd.xlane.f32.xlu0 %v1212
    %v1466 = vpop.xlane.xlu0 %1465
    %1467 = vadd.xlane.f32.xlu0 %v1213
    %v1468 = vpop.xlane.xlu0 %1467
    %1469 = vadd.xlane.f32.xlu0 %v1214
    %v1470 = vpop.xlane.xlu0 %1469
    %1471 = vadd.xlane.f32.xlu0 %v1215
    %v1472 = vpop.xlane.xlu0 %1471
    %1473 = vadd.xlane.f32.xlu0 %v1216
    %v1474 = vpop.xlane.xlu0 %1473
    %1475 = vadd.xlane.f32.xlu0 %v1217
    %v1476 = vpop.xlane.xlu0 %1475
    %1477 = vadd.xlane.f32.xlu0 %v1218
    %v1478 = vpop.xlane.xlu0 %1477
    %1479 = vadd.xlane.f32.xlu0 %v1219
    %v1480 = vpop.xlane.xlu0 %1479
    %1481 = vadd.xlane.f32.xlu0 %v1220
    %v1482 = vpop.xlane.xlu0 %1481
    %1483 = vadd.xlane.f32.xlu0 %v1221
    %v1484 = vpop.xlane.xlu0 %1483
    %1485 = vadd.xlane.f32.xlu0 %v1222
    %v1486 = vpop.xlane.xlu0 %1485
    %1487 = vadd.xlane.f32.xlu0 %v1223
    %v1488 = vpop.xlane.xlu0 %1487
    %1489 = vadd.xlane.f32.xlu0 %v1224
    %v1490 = vpop.xlane.xlu0 %1489
    %1491 = vadd.xlane.f32.xlu0 %v1225
    %v1492 = vpop.xlane.xlu0 %1491
    %1493 = vadd.xlane.f32.xlu0 %v1226
    %v1494 = vpop.xlane.xlu0 %1493
    %1495 = vadd.xlane.f32.xlu0 %v1227
    %v1496 = vpop.xlane.xlu0 %1495
    %1497 = vadd.xlane.f32.xlu0 %v1228
    %v1498 = vpop.xlane.xlu0 %1497
    %1499 = vadd.xlane.f32.xlu0 %v1229
    %v1500 = vpop.xlane.xlu0 %1499
    %1501 = vadd.xlane.f32.xlu0 %v1230
    %v1502 = vpop.xlane.xlu0 %1501
    %1503 = vadd.xlane.f32.xlu0 %v1231
    %v1504 = vpop.xlane.xlu0 %1503
    %1505 = vadd.xlane.f32.xlu0 %v1232
    %v1506 = vpop.xlane.xlu0 %1505
    %1507 = vadd.xlane.f32.xlu0 %v1233
    %v1508 = vpop.xlane.xlu0 %1507
    %1509 = vadd.xlane.f32.xlu0 %v1234
    %v1510 = vpop.xlane.xlu0 %1509
    %1511 = vadd.xlane.f32.xlu0 %v1235
    %v1512 = vpop.xlane.xlu0 %1511
    %1513 = vadd.xlane.f32.xlu0 %v1236
    %v1514 = vpop.xlane.xlu0 %1513
    %1515 = vadd.xlane.f32.xlu0 %v1237
    %v1516 = vpop.xlane.xlu0 %1515
    %1517 = vadd.xlane.f32.xlu0 %v1238
    %v1518 = vpop.xlane.xlu0 %1517
    %1519 = vadd.xlane.f32.xlu0 %v1239
    %v1520 = vpop.xlane.xlu0 %1519
    %1521 = vadd.xlane.f32.xlu0 %v1240
    %v1522 = vpop.xlane.xlu0 %1521
    %1523 = vadd.xlane.f32.xlu0 %v1241
    %v1524 = vpop.xlane.xlu0 %1523
    %1525 = vadd.xlane.f32.xlu0 %v1242
    %v1526 = vpop.xlane.xlu0 %1525
    %1527 = vadd.xlane.f32.xlu0 %v1243
    %v1528 = vpop.xlane.xlu0 %1527
    %1529 = vadd.xlane.f32.xlu0 %v1244
    %v1530 = vpop.xlane.xlu0 %1529
    %1531 = vadd.xlane.f32.xlu0 %v1245
    %v1532 = vpop.xlane.xlu0 %1531
    %1533 = vadd.xlane.f32.xlu0 %v1246
    %v1534 = vpop.xlane.xlu0 %1533
    %1535 = vadd.xlane.f32.xlu0 %v1247
    %v1536 = vpop.xlane.xlu0 %1535
    %1537 = vadd.xlane.f32.xlu0 %v1248
    %v1538 = vpop.xlane.xlu0 %1537
    %1539 = vadd.xlane.f32.xlu0 %v1249
    %v1540 = vpop.xlane.xlu0 %1539
    %1541 = vadd.xlane.f32.xlu0 %v1250
    %v1542 = vpop.xlane.xlu0 %1541
    %1543 = vadd.xlane.f32.xlu0 %v1251
    %v1544 = vpop.xlane.xlu0 %1543
    %1545 = vadd.xlane.f32.xlu0 %v1252
    %v1546 = vpop.xlane.xlu0 %1545
    %1547 = vadd.xlane.f32.xlu0 %v1253
    %v1548 = vpop.xlane.xlu0 %1547
    %1549 = vadd.xlane.f32.xlu0 %v1254
    %v1550 = vpop.xlane.xlu0 %1549
    %1551 = vadd.xlane.f32.xlu0 %v1255
    %v1552 = vpop.xlane.xlu0 %1551
    %1553 = vadd.xlane.f32.xlu0 %v1256
    %v1554 = vpop.xlane.xlu0 %1553
    %1555 = vadd.xlane.f32.xlu0 %v1257
    %v1556 = vpop.xlane.xlu0 %1555
    %1557 = vadd.xlane.f32.xlu0 %v1258
    %v1558 = vpop.xlane.xlu0 %1557
    %1559 = vadd.xlane.f32.xlu0 %v1259
    %v1560 = vpop.xlane.xlu0 %1559
    %1561 = vadd.xlane.f32.xlu0 %v1260
    %v1562 = vpop.xlane.xlu0 %1561
    %1563 = vadd.xlane.f32.xlu0 %v1261
    %v1564 = vpop.xlane.xlu0 %1563
    %1565 = vadd.xlane.f32.xlu0 %v1262
    %v1566 = vpop.xlane.xlu0 %1565
    %s1567 = smul.u32 0, 1216
    %v1568 = vlaneseq
    %v1569 = vshrl.u32 %v1568, 7
    %v1570 = vadd.s32 %v1569, 8
    %v1571 = vadd.s32 %v1569, 16
    %v1572 = vadd.s32 %v1569, 24
    %v1573 = vadd.s32 %v1569, 32
    %v1574 = vadd.s32 %v1569, 40
    %v1575 = vadd.s32 %v1569, 48
    %v1576 = vadd.s32 %v1569, 56
    %v1577 = vadd.s32 %v1569, 64
    %v1578 = vadd.s32 %v1569, 72
    %v1579 = vadd.s32 %v1569, 80
    %v1580 = vadd.s32 %v1569, 88
    %v1581 = vadd.s32 %v1569, 96
    %v1582 = vadd.s32 %v1569, 104
    %v1583 = vadd.s32 %v1569, 112
    %v1584 = vadd.s32 %v1569, 120
    %v1585 = vadd.s32 %v1569, 128
    %v1586 = vadd.s32 %v1569, 136
    %v1587 = vadd.s32 %v1569, 144
    %v1588 = vadd.s32 %v1569, 152
    %v1589 = vadd.s32 %v1569, 160
    %v1590 = vadd.s32 %v1569, 168
    %v1591 = vadd.s32 %v1569, 176
    %v1592 = vadd.s32 %v1569, 184
    %v1593 = vadd.s32 %v1569, 192
    %v1594 = vadd.s32 %v1569, 200
    %v1595 = vadd.s32 %v1569, 208
    %v1596 = vadd.s32 %v1569, 216
    %v1597 = vadd.s32 %v1569, 224
    %v1598 = vadd.s32 %v1569, 232
    %v1599 = vadd.s32 %v1569, 240
    %v1600 = vadd.s32 %v1569, 248
    %v1601 = vadd.s32 %v1569, 256
    %v1602 = vadd.s32 %v1569, 264
    %v1603 = vadd.s32 %v1569, 272
    %v1604 = vadd.s32 %v1569, 280
    %v1605 = vadd.s32 %v1569, 288
    %v1606 = vadd.s32 %v1569, 296
    %v1607 = vadd.s32 %v1569, 304
    %v1608 = vadd.s32 %v1569, 312
    %v1609 = vadd.s32 %v1569, 320
    %v1610 = vadd.s32 %v1569, 328
    %v1611 = vadd.s32 %v1569, 336
    %v1612 = vadd.s32 %v1569, 344
    %v1613 = vadd.s32 %v1569, 352
    %v1614 = vadd.s32 %v1569, 360
    %v1615 = vadd.s32 %v1569, 368
    %v1616 = vadd.s32 %v1569, 376
    %v1617 = vadd.s32 %v1569, 384
    %v1618 = vadd.s32 %v1569, 392
    %v1619 = vadd.s32 %v1569, 400
    %v1620 = vadd.s32 %v1569, 408
    %v1621 = vadd.s32 %v1569, 416
    %v1622 = vadd.s32 %v1569, 424
    %v1623 = vadd.s32 %v1569, 432
    %v1624 = vadd.s32 %v1569, 440
    %v1625 = vadd.s32 %v1569, 448
    %v1626 = vadd.s32 %v1569, 456
    %v1627 = vadd.s32 %v1569, 464
    %v1628 = vadd.s32 %v1569, 472
    %v1629 = vadd.s32 %v1569, 480
    %v1630 = vadd.s32 %v1569, 488
    %v1631 = vadd.s32 %v1569, 496
    %v1632 = vadd.s32 %v1569, 504
    %v1633 = vadd.s32 %v1569, 512
    %v1634 = vadd.s32 %v1569, 520
    %v1635 = vadd.s32 %v1569, 528
    %v1636 = vadd.s32 %v1569, 536
    %v1637 = vadd.s32 %v1569, 544
    %v1638 = vadd.s32 %v1569, 552
    %v1639 = vadd.s32 %v1569, 560
    %v1640 = vadd.s32 %v1569, 568
    %v1641 = vadd.s32 %v1569, 576
    %v1642 = vadd.s32 %v1569, 584
    %v1643 = vadd.s32 %v1569, 592
    %v1644 = vadd.s32 %v1569, 600
    %v1645 = vadd.s32 %v1569, 608
    %v1646 = vadd.s32 %v1569, 616
    %v1647 = vadd.s32 %v1569, 624
    %v1648 = vadd.s32 %v1569, 632
    %v1649 = vadd.s32 %v1569, 640
    %v1650 = vadd.s32 %v1569, 648
    %v1651 = vadd.s32 %v1569, 656
    %v1652 = vadd.s32 %v1569, 664
    %v1653 = vadd.s32 %v1569, 672
    %v1654 = vadd.s32 %v1569, 680
    %v1655 = vadd.s32 %v1569, 688
    %v1656 = vadd.s32 %v1569, 696
    %v1657 = vadd.s32 %v1569, 704
    %v1658 = vadd.s32 %v1569, 712
    %v1659 = vadd.s32 %v1569, 720
    %v1660 = vadd.s32 %v1569, 728
    %v1661 = vadd.s32 %v1569, 736
    %v1662 = vadd.s32 %v1569, 744
    %v1663 = vadd.s32 %v1569, 752
    %v1664 = vadd.s32 %v1569, 760
    %v1665 = vadd.s32 %v1569, 768
    %v1666 = vadd.s32 %v1569, 776
    %v1667 = vadd.s32 %v1569, 784
    %v1668 = vadd.s32 %v1569, 792
    %v1669 = vadd.s32 %v1569, 800
    %v1670 = vadd.s32 %v1569, 808
    %v1671 = vadd.s32 %v1569, 816
    %v1672 = vadd.s32 %v1569, 824
    %v1673 = vadd.s32 %v1569, 832
    %v1674 = vadd.s32 %v1569, 840
    %v1675 = vadd.s32 %v1569, 848
    %v1676 = vadd.s32 %v1569, 856
    %v1677 = vadd.s32 %v1569, 864
    %v1678 = vadd.s32 %v1569, 872
    %v1679 = vadd.s32 %v1569, 880
    %v1680 = vadd.s32 %v1569, 888
    %v1681 = vadd.s32 %v1569, 896
    %v1682 = vadd.s32 %v1569, 904
    %v1683 = vadd.s32 %v1569, 912
    %v1684 = vadd.s32 %v1569, 920
    %v1685 = vadd.s32 %v1569, 928
    %v1686 = vadd.s32 %v1569, 936
    %v1687 = vadd.s32 %v1569, 944
    %v1688 = vadd.s32 %v1569, 952
    %v1689 = vadd.s32 %v1569, 960
    %v1690 = vadd.s32 %v1569, 968
    %v1691 = vadd.s32 %v1569, 976
    %v1692 = vadd.s32 %v1569, 984
    %v1693 = vadd.s32 %v1569, 992
    %v1694 = vadd.s32 %v1569, 1000
    %v1695 = vadd.s32 %v1569, 1008
    %v1696 = vadd.s32 %v1569, 1016
    %v1697 = vadd.s32 %v1569, 1024
    %v1698 = vadd.s32 %v1569, 1032
    %v1699 = vadd.s32 %v1569, 1040
    %v1700 = vadd.s32 %v1569, 1048
    %v1701 = vadd.s32 %v1569, 1056
    %v1702 = vadd.s32 %v1569, 1064
    %v1703 = vadd.s32 %v1569, 1072
    %v1704 = vadd.s32 %v1569, 1080
    %v1705 = vadd.s32 %v1569, 1088
    %v1706 = vadd.s32 %v1569, 1096
    %v1707 = vadd.s32 %v1569, 1104
    %v1708 = vadd.s32 %v1569, 1112
    %v1709 = vadd.s32 %v1569, 1120
    %v1710 = vadd.s32 %v1569, 1128
    %v1711 = vadd.s32 %v1569, 1136
    %v1712 = vadd.s32 %v1569, 1144
    %v1713 = vadd.s32 %v1569, 1152
    %v1714 = vadd.s32 %v1569, 1160
    %v1715 = vadd.s32 %v1569, 1168
    %v1716 = vadd.s32 %v1569, 1176
    %v1717 = vadd.s32 %v1569, 1184
    %v1718 = vadd.s32 %v1569, 1192
    %v1719 = vadd.s32 %v1569, 1200
    %v1720 = vadd.s32 %v1569, 1208
    %v1721 = vstv %s1567
    %v1722 = vadd.s32 %v1721, %v1569
    %v1723 = vadd.s32 %v1721, %v1570
    %v1724 = vadd.s32 %v1721, %v1571
    %v1725 = vadd.s32 %v1721, %v1572
    %v1726 = vadd.s32 %v1721, %v1573
    %v1727 = vadd.s32 %v1721, %v1574
    %v1728 = vadd.s32 %v1721, %v1575
    %v1729 = vadd.s32 %v1721, %v1576
    %v1730 = vadd.s32 %v1721, %v1577
    %v1731 = vadd.s32 %v1721, %v1578
    %v1732 = vadd.s32 %v1721, %v1579
    %v1733 = vadd.s32 %v1721, %v1580
    %v1734 = vadd.s32 %v1721, %v1581
    %v1735 = vadd.s32 %v1721, %v1582
    %v1736 = vadd.s32 %v1721, %v1583
    %v1737 = vadd.s32 %v1721, %v1584
    %v1738 = vadd.s32 %v1721, %v1585
    %v1739 = vadd.s32 %v1721, %v1586
    %v1740 = vadd.s32 %v1721, %v1587
    %v1741 = vadd.s32 %v1721, %v1588
    %v1742 = vadd.s32 %v1721, %v1589
    %v1743 = vadd.s32 %v1721, %v1590
    %v1744 = vadd.s32 %v1721, %v1591
    %v1745 = vadd.s32 %v1721, %v1592
    %v1746 = vadd.s32 %v1721, %v1593
    %v1747 = vadd.s32 %v1721, %v1594
    %v1748 = vadd.s32 %v1721, %v1595
    %v1749 = vadd.s32 %v1721, %v1596
    %v1750 = vadd.s32 %v1721, %v1597
    %v1751 = vadd.s32 %v1721, %v1598
    %v1752 = vadd.s32 %v1721, %v1599
    %v1753 = vadd.s32 %v1721, %v1600
    %v1754 = vadd.s32 %v1721, %v1601
    %v1755 = vadd.s32 %v1721, %v1602
    %v1756 = vadd.s32 %v1721, %v1603
    %v1757 = vadd.s32 %v1721, %v1604
    %v1758 = vadd.s32 %v1721, %v1605
    %v1759 = vadd.s32 %v1721, %v1606
    %v1760 = vadd.s32 %v1721, %v1607
    %v1761 = vadd.s32 %v1721, %v1608
    %v1762 = vadd.s32 %v1721, %v1609
    %v1763 = vadd.s32 %v1721, %v1610
    %v1764 = vadd.s32 %v1721, %v1611
    %v1765 = vadd.s32 %v1721, %v1612
    %v1766 = vadd.s32 %v1721, %v1613
    %v1767 = vadd.s32 %v1721, %v1614
    %v1768 = vadd.s32 %v1721, %v1615
    %v1769 = vadd.s32 %v1721, %v1616
    %v1770 = vadd.s32 %v1721, %v1617
    %v1771 = vadd.s32 %v1721, %v1618
    %v1772 = vadd.s32 %v1721, %v1619
    %v1773 = vadd.s32 %v1721, %v1620
    %v1774 = vadd.s32 %v1721, %v1621
    %v1775 = vadd.s32 %v1721, %v1622
    %v1776 = vadd.s32 %v1721, %v1623
    %v1777 = vadd.s32 %v1721, %v1624
    %v1778 = vadd.s32 %v1721, %v1625
    %v1779 = vadd.s32 %v1721, %v1626
    %v1780 = vadd.s32 %v1721, %v1627
    %v1781 = vadd.s32 %v1721, %v1628
    %v1782 = vadd.s32 %v1721, %v1629
    %v1783 = vadd.s32 %v1721, %v1630
    %v1784 = vadd.s32 %v1721, %v1631
    %v1785 = vadd.s32 %v1721, %v1632
    %v1786 = vadd.s32 %v1721, %v1633
    %v1787 = vadd.s32 %v1721, %v1634
    %v1788 = vadd.s32 %v1721, %v1635
    %v1789 = vadd.s32 %v1721, %v1636
    %v1790 = vadd.s32 %v1721, %v1637
    %v1791 = vadd.s32 %v1721, %v1638
    %v1792 = vadd.s32 %v1721, %v1639
    %v1793 = vadd.s32 %v1721, %v1640
    %v1794 = vadd.s32 %v1721, %v1641
    %v1795 = vadd.s32 %v1721, %v1642
    %v1796 = vadd.s32 %v1721, %v1643
    %v1797 = vadd.s32 %v1721, %v1644
    %v1798 = vadd.s32 %v1721, %v1645
    %v1799 = vadd.s32 %v1721, %v1646
    %v1800 = vadd.s32 %v1721, %v1647
    %v1801 = vadd.s32 %v1721, %v1648
    %v1802 = vadd.s32 %v1721, %v1649
    %v1803 = vadd.s32 %v1721, %v1650
    %v1804 = vadd.s32 %v1721, %v1651
    %v1805 = vadd.s32 %v1721, %v1652
    %v1806 = vadd.s32 %v1721, %v1653
    %v1807 = vadd.s32 %v1721, %v1654
    %v1808 = vadd.s32 %v1721, %v1655
    %v1809 = vadd.s32 %v1721, %v1656
    %v1810 = vadd.s32 %v1721, %v1657
    %v1811 = vadd.s32 %v1721, %v1658
    %v1812 = vadd.s32 %v1721, %v1659
    %v1813 = vadd.s32 %v1721, %v1660
    %v1814 = vadd.s32 %v1721, %v1661
    %v1815 = vadd.s32 %v1721, %v1662
    %v1816 = vadd.s32 %v1721, %v1663
    %v1817 = vadd.s32 %v1721, %v1664
    %v1818 = vadd.s32 %v1721, %v1665
    %v1819 = vadd.s32 %v1721, %v1666
    %v1820 = vadd.s32 %v1721, %v1667
    %v1821 = vadd.s32 %v1721, %v1668
    %v1822 = vadd.s32 %v1721, %v1669
    %v1823 = vadd.s32 %v1721, %v1670
    %v1824 = vadd.s32 %v1721, %v1671
    %v1825 = vadd.s32 %v1721, %v1672
    %v1826 = vadd.s32 %v1721, %v1673
    %v1827 = vadd.s32 %v1721, %v1674
    %v1828 = vadd.s32 %v1721, %v1675
    %v1829 = vadd.s32 %v1721, %v1676
    %v1830 = vadd.s32 %v1721, %v1677
    %v1831 = vadd.s32 %v1721, %v1678
    %v1832 = vadd.s32 %v1721, %v1679
    %v1833 = vadd.s32 %v1721, %v1680
    %v1834 = vadd.s32 %v1721, %v1681
    %v1835 = vadd.s32 %v1721, %v1682
    %v1836 = vadd.s32 %v1721, %v1683
    %v1837 = vadd.s32 %v1721, %v1684
    %v1838 = vadd.s32 %v1721, %v1685
    %v1839 = vadd.s32 %v1721, %v1686
    %v1840 = vadd.s32 %v1721, %v1687
    %v1841 = vadd.s32 %v1721, %v1688
    %v1842 = vadd.s32 %v1721, %v1689
    %v1843 = vadd.s32 %v1721, %v1690
    %v1844 = vadd.s32 %v1721, %v1691
    %v1845 = vadd.s32 %v1721, %v1692
    %v1846 = vadd.s32 %v1721, %v1693
    %v1847 = vadd.s32 %v1721, %v1694
    %v1848 = vadd.s32 %v1721, %v1695
    %v1849 = vadd.s32 %v1721, %v1696
    %v1850 = vadd.s32 %v1721, %v1697
    %v1851 = vadd.s32 %v1721, %v1698
    %v1852 = vadd.s32 %v1721, %v1699
    %v1853 = vadd.s32 %v1721, %v1700
    %v1854 = vadd.s32 %v1721, %v1701
    %v1855 = vadd.s32 %v1721, %v1702
    %v1856 = vadd.s32 %v1721, %v1703
    %v1857 = vadd.s32 %v1721, %v1704
    %v1858 = vadd.s32 %v1721, %v1705
    %v1859 = vadd.s32 %v1721, %v1706
    %v1860 = vadd.s32 %v1721, %v1707
    %v1861 = vadd.s32 %v1721, %v1708
    %v1862 = vadd.s32 %v1721, %v1709
    %v1863 = vadd.s32 %v1721, %v1710
    %v1864 = vadd.s32 %v1721, %v1711
    %v1865 = vadd.s32 %v1721, %v1712
    %v1866 = vadd.s32 %v1721, %v1713
    %v1867 = vadd.s32 %v1721, %v1714
    %v1868 = vadd.s32 %v1721, %v1715
    %v1869 = vadd.s32 %v1721, %v1716
    %v1870 = vadd.s32 %v1721, %v1717
    %v1871 = vadd.s32 %v1721, %v1718
    %v1872 = vadd.s32 %v1721, %v1719
    %v1873 = vadd.s32 %v1721, %v1720
    %vm1874 = vcmp.lt.s32.totalorder %v1722, 1200
    %vm1875 = vcmp.lt.s32.totalorder %v1723, 1200
    %vm1876 = vcmp.lt.s32.totalorder %v1724, 1200
    %vm1877 = vcmp.lt.s32.totalorder %v1725, 1200
    %vm1878 = vcmp.lt.s32.totalorder %v1726, 1200
    %vm1879 = vcmp.lt.s32.totalorder %v1727, 1200
    %vm1880 = vcmp.lt.s32.totalorder %v1728, 1200
    %vm1881 = vcmp.lt.s32.totalorder %v1729, 1200
    %vm1882 = vcmp.lt.s32.totalorder %v1730, 1200
    %vm1883 = vcmp.lt.s32.totalorder %v1731, 1200
    %vm1884 = vcmp.lt.s32.totalorder %v1732, 1200
    %vm1885 = vcmp.lt.s32.totalorder %v1733, 1200
    %vm1886 = vcmp.lt.s32.totalorder %v1734, 1200
    %vm1887 = vcmp.lt.s32.totalorder %v1735, 1200
    %vm1888 = vcmp.lt.s32.totalorder %v1736, 1200
    %vm1889 = vcmp.lt.s32.totalorder %v1737, 1200
    %vm1890 = vcmp.lt.s32.totalorder %v1738, 1200
    %vm1891 = vcmp.lt.s32.totalorder %v1739, 1200
    %vm1892 = vcmp.lt.s32.totalorder %v1740, 1200
    %vm1893 = vcmp.lt.s32.totalorder %v1741, 1200
    %vm1894 = vcmp.lt.s32.totalorder %v1742, 1200
    %vm1895 = vcmp.lt.s32.totalorder %v1743, 1200
    %vm1896 = vcmp.lt.s32.totalorder %v1744, 1200
    %vm1897 = vcmp.lt.s32.totalorder %v1745, 1200
    %vm1898 = vcmp.lt.s32.totalorder %v1746, 1200
    %vm1899 = vcmp.lt.s32.totalorder %v1747, 1200
    %vm1900 = vcmp.lt.s32.totalorder %v1748, 1200
    %vm1901 = vcmp.lt.s32.totalorder %v1749, 1200
    %vm1902 = vcmp.lt.s32.totalorder %v1750, 1200
    %vm1903 = vcmp.lt.s32.totalorder %v1751, 1200
    %vm1904 = vcmp.lt.s32.totalorder %v1752, 1200
    %vm1905 = vcmp.lt.s32.totalorder %v1753, 1200
    %vm1906 = vcmp.lt.s32.totalorder %v1754, 1200
    %vm1907 = vcmp.lt.s32.totalorder %v1755, 1200
    %vm1908 = vcmp.lt.s32.totalorder %v1756, 1200
    %vm1909 = vcmp.lt.s32.totalorder %v1757, 1200
    %vm1910 = vcmp.lt.s32.totalorder %v1758, 1200
    %vm1911 = vcmp.lt.s32.totalorder %v1759, 1200
    %vm1912 = vcmp.lt.s32.totalorder %v1760, 1200
    %vm1913 = vcmp.lt.s32.totalorder %v1761, 1200
    %vm1914 = vcmp.lt.s32.totalorder %v1762, 1200
    %vm1915 = vcmp.lt.s32.totalorder %v1763, 1200
    %vm1916 = vcmp.lt.s32.totalorder %v1764, 1200
    %vm1917 = vcmp.lt.s32.totalorder %v1765, 1200
    %vm1918 = vcmp.lt.s32.totalorder %v1766, 1200
    %vm1919 = vcmp.lt.s32.totalorder %v1767, 1200
    %vm1920 = vcmp.lt.s32.totalorder %v1768, 1200
    %vm1921 = vcmp.lt.s32.totalorder %v1769, 1200
    %vm1922 = vcmp.lt.s32.totalorder %v1770, 1200
    %vm1923 = vcmp.lt.s32.totalorder %v1771, 1200
    %vm1924 = vcmp.lt.s32.totalorder %v1772, 1200
    %vm1925 = vcmp.lt.s32.totalorder %v1773, 1200
    %vm1926 = vcmp.lt.s32.totalorder %v1774, 1200
    %vm1927 = vcmp.lt.s32.totalorder %v1775, 1200
    %vm1928 = vcmp.lt.s32.totalorder %v1776, 1200
    %vm1929 = vcmp.lt.s32.totalorder %v1777, 1200
    %vm1930 = vcmp.lt.s32.totalorder %v1778, 1200
    %vm1931 = vcmp.lt.s32.totalorder %v1779, 1200
    %vm1932 = vcmp.lt.s32.totalorder %v1780, 1200
    %vm1933 = vcmp.lt.s32.totalorder %v1781, 1200
    %vm1934 = vcmp.lt.s32.totalorder %v1782, 1200
    %vm1935 = vcmp.lt.s32.totalorder %v1783, 1200
    %vm1936 = vcmp.lt.s32.totalorder %v1784, 1200
    %vm1937 = vcmp.lt.s32.totalorder %v1785, 1200
    %vm1938 = vcmp.lt.s32.totalorder %v1786, 1200
    %vm1939 = vcmp.lt.s32.totalorder %v1787, 1200
    %vm1940 = vcmp.lt.s32.totalorder %v1788, 1200
    %vm1941 = vcmp.lt.s32.totalorder %v1789, 1200
    %vm1942 = vcmp.lt.s32.totalorder %v1790, 1200
    %vm1943 = vcmp.lt.s32.totalorder %v1791, 1200
    %vm1944 = vcmp.lt.s32.totalorder %v1792, 1200
    %vm1945 = vcmp.lt.s32.totalorder %v1793, 1200
    %vm1946 = vcmp.lt.s32.totalorder %v1794, 1200
    %vm1947 = vcmp.lt.s32.totalorder %v1795, 1200
    %vm1948 = vcmp.lt.s32.totalorder %v1796, 1200
    %vm1949 = vcmp.lt.s32.totalorder %v1797, 1200
    %vm1950 = vcmp.lt.s32.totalorder %v1798, 1200
    %vm1951 = vcmp.lt.s32.totalorder %v1799, 1200
    %vm1952 = vcmp.lt.s32.totalorder %v1800, 1200
    %vm1953 = vcmp.lt.s32.totalorder %v1801, 1200
    %vm1954 = vcmp.lt.s32.totalorder %v1802, 1200
    %vm1955 = vcmp.lt.s32.totalorder %v1803, 1200
    %vm1956 = vcmp.lt.s32.totalorder %v1804, 1200
    %vm1957 = vcmp.lt.s32.totalorder %v1805, 1200
    %vm1958 = vcmp.lt.s32.totalorder %v1806, 1200
    %vm1959 = vcmp.lt.s32.totalorder %v1807, 1200
    %vm1960 = vcmp.lt.s32.totalorder %v1808, 1200
    %vm1961 = vcmp.lt.s32.totalorder %v1809, 1200
    %vm1962 = vcmp.lt.s32.totalorder %v1810, 1200
    %vm1963 = vcmp.lt.s32.totalorder %v1811, 1200
    %vm1964 = vcmp.lt.s32.totalorder %v1812, 1200
    %vm1965 = vcmp.lt.s32.totalorder %v1813, 1200
    %vm1966 = vcmp.lt.s32.totalorder %v1814, 1200
    %vm1967 = vcmp.lt.s32.totalorder %v1815, 1200
    %vm1968 = vcmp.lt.s32.totalorder %v1816, 1200
    %vm1969 = vcmp.lt.s32.totalorder %v1817, 1200
    %vm1970 = vcmp.lt.s32.totalorder %v1818, 1200
    %vm1971 = vcmp.lt.s32.totalorder %v1819, 1200
    %vm1972 = vcmp.lt.s32.totalorder %v1820, 1200
    %vm1973 = vcmp.lt.s32.totalorder %v1821, 1200
    %vm1974 = vcmp.lt.s32.totalorder %v1822, 1200
    %vm1975 = vcmp.lt.s32.totalorder %v1823, 1200
    %vm1976 = vcmp.lt.s32.totalorder %v1824, 1200
    %vm1977 = vcmp.lt.s32.totalorder %v1825, 1200
    %vm1978 = vcmp.lt.s32.totalorder %v1826, 1200
    %vm1979 = vcmp.lt.s32.totalorder %v1827, 1200
    %vm1980 = vcmp.lt.s32.totalorder %v1828, 1200
    %vm1981 = vcmp.lt.s32.totalorder %v1829, 1200
    %vm1982 = vcmp.lt.s32.totalorder %v1830, 1200
    %vm1983 = vcmp.lt.s32.totalorder %v1831, 1200
    %vm1984 = vcmp.lt.s32.totalorder %v1832, 1200
    %vm1985 = vcmp.lt.s32.totalorder %v1833, 1200
    %vm1986 = vcmp.lt.s32.totalorder %v1834, 1200
    %vm1987 = vcmp.lt.s32.totalorder %v1835, 1200
    %vm1988 = vcmp.lt.s32.totalorder %v1836, 1200
    %vm1989 = vcmp.lt.s32.totalorder %v1837, 1200
    %vm1990 = vcmp.lt.s32.totalorder %v1838, 1200
    %vm1991 = vcmp.lt.s32.totalorder %v1839, 1200
    %vm1992 = vcmp.lt.s32.totalorder %v1840, 1200
    %vm1993 = vcmp.lt.s32.totalorder %v1841, 1200
    %vm1994 = vcmp.lt.s32.totalorder %v1842, 1200
    %vm1995 = vcmp.lt.s32.totalorder %v1843, 1200
    %vm1996 = vcmp.lt.s32.totalorder %v1844, 1200
    %vm1997 = vcmp.lt.s32.totalorder %v1845, 1200
    %vm1998 = vcmp.lt.s32.totalorder %v1846, 1200
    %vm1999 = vcmp.lt.s32.totalorder %v1847, 1200
    %vm2000 = vcmp.lt.s32.totalorder %v1848, 1200
    %vm2001 = vcmp.lt.s32.totalorder %v1849, 1200
    %vm2002 = vcmp.lt.s32.totalorder %v1850, 1200
    %vm2003 = vcmp.lt.s32.totalorder %v1851, 1200
    %vm2004 = vcmp.lt.s32.totalorder %v1852, 1200
    %vm2005 = vcmp.lt.s32.totalorder %v1853, 1200
    %vm2006 = vcmp.lt.s32.totalorder %v1854, 1200
    %vm2007 = vcmp.lt.s32.totalorder %v1855, 1200
    %vm2008 = vcmp.lt.s32.totalorder %v1856, 1200
    %vm2009 = vcmp.lt.s32.totalorder %v1857, 1200
    %vm2010 = vcmp.lt.s32.totalorder %v1858, 1200
    %vm2011 = vcmp.lt.s32.totalorder %v1859, 1200
    %vm2012 = vcmp.lt.s32.totalorder %v1860, 1200
    %vm2013 = vcmp.lt.s32.totalorder %v1861, 1200
    %vm2014 = vcmp.lt.s32.totalorder %v1862, 1200
    %vm2015 = vcmp.lt.s32.totalorder %v1863, 1200
    %vm2016 = vcmp.lt.s32.totalorder %v1864, 1200
    %vm2017 = vcmp.lt.s32.totalorder %v1865, 1200
    %vm2018 = vcmp.lt.s32.totalorder %v1866, 1200
    %vm2019 = vcmp.lt.s32.totalorder %v1867, 1200
    %vm2020 = vcmp.lt.s32.totalorder %v1868, 1200
    %vm2021 = vcmp.lt.s32.totalorder %v1869, 1200
    %vm2022 = vcmp.lt.s32.totalorder %v1870, 1200
    %vm2023 = vcmp.lt.s32.totalorder %v1871, 1200
    %vm2024 = vcmp.lt.s32.totalorder %v1872, 1200
    %vm2025 = vcmp.lt.s32.totalorder %v1873, 1200
    %vm2026 = vcmp.lt.s32.totalorder %v1722, 0
    %v2027 = vsub.s32 0, %v1722
    %v2028 = vsel %vm2026, %v2027, %v1722
    %v2029 = vshrl.u32 %v2028, 2
    %v2030 = vand.u32 %v2028, 3
    %v2031 = vsub.s32 0, %v2030
    %v2032 = vsel %vm2026, %v2031, %v2030
    %vm2033 = vcmp.lt.s32.totalorder %v1723, 0
    %v2034 = vsub.s32 0, %v1723
    %v2035 = vsel %vm2033, %v2034, %v1723
    %v2036 = vshrl.u32 %v2035, 2
    %v2037 = vand.u32 %v2035, 3
    %v2038 = vsub.s32 0, %v2037
    %v2039 = vsel %vm2033, %v2038, %v2037
    %vm2040 = vcmp.lt.s32.totalorder %v1724, 0
    %v2041 = vsub.s32 0, %v1724
    %v2042 = vsel %vm2040, %v2041, %v1724
    %v2043 = vshrl.u32 %v2042, 2
    %v2044 = vand.u32 %v2042, 3
    %v2045 = vsub.s32 0, %v2044
    %v2046 = vsel %vm2040, %v2045, %v2044
    %vm2047 = vcmp.lt.s32.totalorder %v1725, 0
    %v2048 = vsub.s32 0, %v1725
    %v2049 = vsel %vm2047, %v2048, %v1725
    %v2050 = vshrl.u32 %v2049, 2
    %v2051 = vand.u32 %v2049, 3
    %v2052 = vsub.s32 0, %v2051
    %v2053 = vsel %vm2047, %v2052, %v2051
    %vm2054 = vcmp.lt.s32.totalorder %v1726, 0
    %v2055 = vsub.s32 0, %v1726
    %v2056 = vsel %vm2054, %v2055, %v1726
    %v2057 = vshrl.u32 %v2056, 2
    %v2058 = vand.u32 %v2056, 3
    %v2059 = vsub.s32 0, %v2058
    %v2060 = vsel %vm2054, %v2059, %v2058
    %vm2061 = vcmp.lt.s32.totalorder %v1727, 0
    %v2062 = vsub.s32 0, %v1727
    %v2063 = vsel %vm2061, %v2062, %v1727
    %v2064 = vshrl.u32 %v2063, 2
    %v2065 = vand.u32 %v2063, 3
    %v2066 = vsub.s32 0, %v2065
    %v2067 = vsel %vm2061, %v2066, %v2065
    %vm2068 = vcmp.lt.s32.totalorder %v1728, 0
    %v2069 = vsub.s32 0, %v1728
    %v2070 = vsel %vm2068, %v2069, %v1728
    %v2071 = vshrl.u32 %v2070, 2
    %v2072 = vand.u32 %v2070, 3
    %v2073 = vsub.s32 0, %v2072
    %v2074 = vsel %vm2068, %v2073, %v2072
    %vm2075 = vcmp.lt.s32.totalorder %v1729, 0
    %v2076 = vsub.s32 0, %v1729
    %v2077 = vsel %vm2075, %v2076, %v1729
    %v2078 = vshrl.u32 %v2077, 2
    %v2079 = vand.u32 %v2077, 3
    %v2080 = vsub.s32 0, %v2079
    %v2081 = vsel %vm2075, %v2080, %v2079
    %vm2082 = vcmp.lt.s32.totalorder %v1730, 0
    %v2083 = vsub.s32 0, %v1730
    %v2084 = vsel %vm2082, %v2083, %v1730
    %v2085 = vshrl.u32 %v2084, 2
    %v2086 = vand.u32 %v2084, 3
    %v2087 = vsub.s32 0, %v2086
    %v2088 = vsel %vm2082, %v2087, %v2086
    %vm2089 = vcmp.lt.s32.totalorder %v1731, 0
    %v2090 = vsub.s32 0, %v1731
    %v2091 = vsel %vm2089, %v2090, %v1731
    %v2092 = vshrl.u32 %v2091, 2
    %v2093 = vand.u32 %v2091, 3
    %v2094 = vsub.s32 0, %v2093
    %v2095 = vsel %vm2089, %v2094, %v2093
    %vm2096 = vcmp.lt.s32.totalorder %v1732, 0
    %v2097 = vsub.s32 0, %v1732
    %v2098 = vsel %vm2096, %v2097, %v1732
    %v2099 = vshrl.u32 %v2098, 2
    %v2100 = vand.u32 %v2098, 3
    %v2101 = vsub.s32 0, %v2100
    %v2102 = vsel %vm2096, %v2101, %v2100
    %vm2103 = vcmp.lt.s32.totalorder %v1733, 0
    %v2104 = vsub.s32 0, %v1733
    %v2105 = vsel %vm2103, %v2104, %v1733
    %v2106 = vshrl.u32 %v2105, 2
    %v2107 = vand.u32 %v2105, 3
    %v2108 = vsub.s32 0, %v2107
    %v2109 = vsel %vm2103, %v2108, %v2107
    %vm2110 = vcmp.lt.s32.totalorder %v1734, 0
    %v2111 = vsub.s32 0, %v1734
    %v2112 = vsel %vm2110, %v2111, %v1734
    %v2113 = vshrl.u32 %v2112, 2
    %v2114 = vand.u32 %v2112, 3
    %v2115 = vsub.s32 0, %v2114
    %v2116 = vsel %vm2110, %v2115, %v2114
    %vm2117 = vcmp.lt.s32.totalorder %v1735, 0
    %v2118 = vsub.s32 0, %v1735
    %v2119 = vsel %vm2117, %v2118, %v1735
    %v2120 = vshrl.u32 %v2119, 2
    %v2121 = vand.u32 %v2119, 3
    %v2122 = vsub.s32 0, %v2121
    %v2123 = vsel %vm2117, %v2122, %v2121
    %vm2124 = vcmp.lt.s32.totalorder %v1736, 0
    %v2125 = vsub.s32 0, %v1736
    %v2126 = vsel %vm2124, %v2125, %v1736
    %v2127 = vshrl.u32 %v2126, 2
    %v2128 = vand.u32 %v2126, 3
    %v2129 = vsub.s32 0, %v2128
    %v2130 = vsel %vm2124, %v2129, %v2128
    %vm2131 = vcmp.lt.s32.totalorder %v1737, 0
    %v2132 = vsub.s32 0, %v1737
    %v2133 = vsel %vm2131, %v2132, %v1737
    %v2134 = vshrl.u32 %v2133, 2
    %v2135 = vand.u32 %v2133, 3
    %v2136 = vsub.s32 0, %v2135
    %v2137 = vsel %vm2131, %v2136, %v2135
    %vm2138 = vcmp.lt.s32.totalorder %v1738, 0
    %v2139 = vsub.s32 0, %v1738
    %v2140 = vsel %vm2138, %v2139, %v1738
    %v2141 = vshrl.u32 %v2140, 2
    %v2142 = vand.u32 %v2140, 3
    %v2143 = vsub.s32 0, %v2142
    %v2144 = vsel %vm2138, %v2143, %v2142
    %vm2145 = vcmp.lt.s32.totalorder %v1739, 0
    %v2146 = vsub.s32 0, %v1739
    %v2147 = vsel %vm2145, %v2146, %v1739
    %v2148 = vshrl.u32 %v2147, 2
    %v2149 = vand.u32 %v2147, 3
    %v2150 = vsub.s32 0, %v2149
    %v2151 = vsel %vm2145, %v2150, %v2149
    %vm2152 = vcmp.lt.s32.totalorder %v1740, 0
    %v2153 = vsub.s32 0, %v1740
    %v2154 = vsel %vm2152, %v2153, %v1740
    %v2155 = vshrl.u32 %v2154, 2
    %v2156 = vand.u32 %v2154, 3
    %v2157 = vsub.s32 0, %v2156
    %v2158 = vsel %vm2152, %v2157, %v2156
    %vm2159 = vcmp.lt.s32.totalorder %v1741, 0
    %v2160 = vsub.s32 0, %v1741
    %v2161 = vsel %vm2159, %v2160, %v1741
    %v2162 = vshrl.u32 %v2161, 2
    %v2163 = vand.u32 %v2161, 3
    %v2164 = vsub.s32 0, %v2163
    %v2165 = vsel %vm2159, %v2164, %v2163
    %vm2166 = vcmp.lt.s32.totalorder %v1742, 0
    %v2167 = vsub.s32 0, %v1742
    %v2168 = vsel %vm2166, %v2167, %v1742
    %v2169 = vshrl.u32 %v2168, 2
    %v2170 = vand.u32 %v2168, 3
    %v2171 = vsub.s32 0, %v2170
    %v2172 = vsel %vm2166, %v2171, %v2170
    %vm2173 = vcmp.lt.s32.totalorder %v1743, 0
    %v2174 = vsub.s32 0, %v1743
    %v2175 = vsel %vm2173, %v2174, %v1743
    %v2176 = vshrl.u32 %v2175, 2
    %v2177 = vand.u32 %v2175, 3
    %v2178 = vsub.s32 0, %v2177
    %v2179 = vsel %vm2173, %v2178, %v2177
    %vm2180 = vcmp.lt.s32.totalorder %v1744, 0
    %v2181 = vsub.s32 0, %v1744
    %v2182 = vsel %vm2180, %v2181, %v1744
    %v2183 = vshrl.u32 %v2182, 2
    %v2184 = vand.u32 %v2182, 3
    %v2185 = vsub.s32 0, %v2184
    %v2186 = vsel %vm2180, %v2185, %v2184
    %vm2187 = vcmp.lt.s32.totalorder %v1745, 0
    %v2188 = vsub.s32 0, %v1745
    %v2189 = vsel %vm2187, %v2188, %v1745
    %v2190 = vshrl.u32 %v2189, 2
    %v2191 = vand.u32 %v2189, 3
    %v2192 = vsub.s32 0, %v2191
    %v2193 = vsel %vm2187, %v2192, %v2191
    %vm2194 = vcmp.lt.s32.totalorder %v1746, 0
    %v2195 = vsub.s32 0, %v1746
    %v2196 = vsel %vm2194, %v2195, %v1746
    %v2197 = vshrl.u32 %v2196, 2
    %v2198 = vand.u32 %v2196, 3
    %v2199 = vsub.s32 0, %v2198
    %v2200 = vsel %vm2194, %v2199, %v2198
    %vm2201 = vcmp.lt.s32.totalorder %v1747, 0
    %v2202 = vsub.s32 0, %v1747
    %v2203 = vsel %vm2201, %v2202, %v1747
    %v2204 = vshrl.u32 %v2203, 2
    %v2205 = vand.u32 %v2203, 3
    %v2206 = vsub.s32 0, %v2205
    %v2207 = vsel %vm2201, %v2206, %v2205
    %vm2208 = vcmp.lt.s32.totalorder %v1748, 0
    %v2209 = vsub.s32 0, %v1748
    %v2210 = vsel %vm2208, %v2209, %v1748
    %v2211 = vshrl.u32 %v2210, 2
    %v2212 = vand.u32 %v2210, 3
    %v2213 = vsub.s32 0, %v2212
    %v2214 = vsel %vm2208, %v2213, %v2212
    %vm2215 = vcmp.lt.s32.totalorder %v1749, 0
    %v2216 = vsub.s32 0, %v1749
    %v2217 = vsel %vm2215, %v2216, %v1749
    %v2218 = vshrl.u32 %v2217, 2
    %v2219 = vand.u32 %v2217, 3
    %v2220 = vsub.s32 0, %v2219
    %v2221 = vsel %vm2215, %v2220, %v2219
    %vm2222 = vcmp.lt.s32.totalorder %v1750, 0
    %v2223 = vsub.s32 0, %v1750
    %v2224 = vsel %vm2222, %v2223, %v1750
    %v2225 = vshrl.u32 %v2224, 2
    %v2226 = vand.u32 %v2224, 3
    %v2227 = vsub.s32 0, %v2226
    %v2228 = vsel %vm2222, %v2227, %v2226
    %vm2229 = vcmp.lt.s32.totalorder %v1751, 0
    %v2230 = vsub.s32 0, %v1751
    %v2231 = vsel %vm2229, %v2230, %v1751
    %v2232 = vshrl.u32 %v2231, 2
    %v2233 = vand.u32 %v2231, 3
    %v2234 = vsub.s32 0, %v2233
    %v2235 = vsel %vm2229, %v2234, %v2233
    %vm2236 = vcmp.lt.s32.totalorder %v1752, 0
    %v2237 = vsub.s32 0, %v1752
    %v2238 = vsel %vm2236, %v2237, %v1752
    %v2239 = vshrl.u32 %v2238, 2
    %v2240 = vand.u32 %v2238, 3
    %v2241 = vsub.s32 0, %v2240
    %v2242 = vsel %vm2236, %v2241, %v2240
    %vm2243 = vcmp.lt.s32.totalorder %v1753, 0
    %v2244 = vsub.s32 0, %v1753
    %v2245 = vsel %vm2243, %v2244, %v1753
    %v2246 = vshrl.u32 %v2245, 2
    %v2247 = vand.u32 %v2245, 3
    %v2248 = vsub.s32 0, %v2247
    %v2249 = vsel %vm2243, %v2248, %v2247
    %vm2250 = vcmp.lt.s32.totalorder %v1754, 0
    %v2251 = vsub.s32 0, %v1754
    %v2252 = vsel %vm2250, %v2251, %v1754
    %v2253 = vshrl.u32 %v2252, 2
    %v2254 = vand.u32 %v2252, 3
    %v2255 = vsub.s32 0, %v2254
    %v2256 = vsel %vm2250, %v2255, %v2254
    %vm2257 = vcmp.lt.s32.totalorder %v1755, 0
    %v2258 = vsub.s32 0, %v1755
    %v2259 = vsel %vm2257, %v2258, %v1755
    %v2260 = vshrl.u32 %v2259, 2
    %v2261 = vand.u32 %v2259, 3
    %v2262 = vsub.s32 0, %v2261
    %v2263 = vsel %vm2257, %v2262, %v2261
    %vm2264 = vcmp.lt.s32.totalorder %v1756, 0
    %v2265 = vsub.s32 0, %v1756
    %v2266 = vsel %vm2264, %v2265, %v1756
    %v2267 = vshrl.u32 %v2266, 2
    %v2268 = vand.u32 %v2266, 3
    %v2269 = vsub.s32 0, %v2268
    %v2270 = vsel %vm2264, %v2269, %v2268
    %vm2271 = vcmp.lt.s32.totalorder %v1757, 0
    %v2272 = vsub.s32 0, %v1757
    %v2273 = vsel %vm2271, %v2272, %v1757
    %v2274 = vshrl.u32 %v2273, 2
    %v2275 = vand.u32 %v2273, 3
    %v2276 = vsub.s32 0, %v2275
    %v2277 = vsel %vm2271, %v2276, %v2275
    %vm2278 = vcmp.lt.s32.totalorder %v1758, 0
    %v2279 = vsub.s32 0, %v1758
    %v2280 = vsel %vm2278, %v2279, %v1758
    %v2281 = vshrl.u32 %v2280, 2
    %v2282 = vand.u32 %v2280, 3
    %v2283 = vsub.s32 0, %v2282
    %v2284 = vsel %vm2278, %v2283, %v2282
    %vm2285 = vcmp.lt.s32.totalorder %v1759, 0
    %v2286 = vsub.s32 0, %v1759
    %v2287 = vsel %vm2285, %v2286, %v1759
    %v2288 = vshrl.u32 %v2287, 2
    %v2289 = vand.u32 %v2287, 3
    %v2290 = vsub.s32 0, %v2289
    %v2291 = vsel %vm2285, %v2290, %v2289
    %vm2292 = vcmp.lt.s32.totalorder %v1760, 0
    %v2293 = vsub.s32 0, %v1760
    %v2294 = vsel %vm2292, %v2293, %v1760
    %v2295 = vshrl.u32 %v2294, 2
    %v2296 = vand.u32 %v2294, 3
    %v2297 = vsub.s32 0, %v2296
    %v2298 = vsel %vm2292, %v2297, %v2296
    %vm2299 = vcmp.lt.s32.totalorder %v1761, 0
    %v2300 = vsub.s32 0, %v1761
    %v2301 = vsel %vm2299, %v2300, %v1761
    %v2302 = vshrl.u32 %v2301, 2
    %v2303 = vand.u32 %v2301, 3
    %v2304 = vsub.s32 0, %v2303
    %v2305 = vsel %vm2299, %v2304, %v2303
    %vm2306 = vcmp.lt.s32.totalorder %v1762, 0
    %v2307 = vsub.s32 0, %v1762
    %v2308 = vsel %vm2306, %v2307, %v1762
    %v2309 = vshrl.u32 %v2308, 2
    %v2310 = vand.u32 %v2308, 3
    %v2311 = vsub.s32 0, %v2310
    %v2312 = vsel %vm2306, %v2311, %v2310
    %vm2313 = vcmp.lt.s32.totalorder %v1763, 0
    %v2314 = vsub.s32 0, %v1763
    %v2315 = vsel %vm2313, %v2314, %v1763
    %v2316 = vshrl.u32 %v2315, 2
    %v2317 = vand.u32 %v2315, 3
    %v2318 = vsub.s32 0, %v2317
    %v2319 = vsel %vm2313, %v2318, %v2317
    %vm2320 = vcmp.lt.s32.totalorder %v1764, 0
    %v2321 = vsub.s32 0, %v1764
    %v2322 = vsel %vm2320, %v2321, %v1764
    %v2323 = vshrl.u32 %v2322, 2
    %v2324 = vand.u32 %v2322, 3
    %v2325 = vsub.s32 0, %v2324
    %v2326 = vsel %vm2320, %v2325, %v2324
    %vm2327 = vcmp.lt.s32.totalorder %v1765, 0
    %v2328 = vsub.s32 0, %v1765
    %v2329 = vsel %vm2327, %v2328, %v1765
    %v2330 = vshrl.u32 %v2329, 2
    %v2331 = vand.u32 %v2329, 3
    %v2332 = vsub.s32 0, %v2331
    %v2333 = vsel %vm2327, %v2332, %v2331
    %vm2334 = vcmp.lt.s32.totalorder %v1766, 0
    %v2335 = vsub.s32 0, %v1766
    %v2336 = vsel %vm2334, %v2335, %v1766
    %v2337 = vshrl.u32 %v2336, 2
    %v2338 = vand.u32 %v2336, 3
    %v2339 = vsub.s32 0, %v2338
    %v2340 = vsel %vm2334, %v2339, %v2338
    %vm2341 = vcmp.lt.s32.totalorder %v1767, 0
    %v2342 = vsub.s32 0, %v1767
    %v2343 = vsel %vm2341, %v2342, %v1767
    %v2344 = vshrl.u32 %v2343, 2
    %v2345 = vand.u32 %v2343, 3
    %v2346 = vsub.s32 0, %v2345
    %v2347 = vsel %vm2341, %v2346, %v2345
    %vm2348 = vcmp.lt.s32.totalorder %v1768, 0
    %v2349 = vsub.s32 0, %v1768
    %v2350 = vsel %vm2348, %v2349, %v1768
    %v2351 = vshrl.u32 %v2350, 2
    %v2352 = vand.u32 %v2350, 3
    %v2353 = vsub.s32 0, %v2352
    %v2354 = vsel %vm2348, %v2353, %v2352
    %vm2355 = vcmp.lt.s32.totalorder %v1769, 0
    %v2356 = vsub.s32 0, %v1769
    %v2357 = vsel %vm2355, %v2356, %v1769
    %v2358 = vshrl.u32 %v2357, 2
    %v2359 = vand.u32 %v2357, 3
    %v2360 = vsub.s32 0, %v2359
    %v2361 = vsel %vm2355, %v2360, %v2359
    %vm2362 = vcmp.lt.s32.totalorder %v1770, 0
    %v2363 = vsub.s32 0, %v1770
    %v2364 = vsel %vm2362, %v2363, %v1770
    %v2365 = vshrl.u32 %v2364, 2
    %v2366 = vand.u32 %v2364, 3
    %v2367 = vsub.s32 0, %v2366
    %v2368 = vsel %vm2362, %v2367, %v2366
    %vm2369 = vcmp.lt.s32.totalorder %v1771, 0
    %v2370 = vsub.s32 0, %v1771
    %v2371 = vsel %vm2369, %v2370, %v1771
    %v2372 = vshrl.u32 %v2371, 2
    %v2373 = vand.u32 %v2371, 3
    %v2374 = vsub.s32 0, %v2373
    %v2375 = vsel %vm2369, %v2374, %v2373
    %vm2376 = vcmp.lt.s32.totalorder %v1772, 0
    %v2377 = vsub.s32 0, %v1772
    %v2378 = vsel %vm2376, %v2377, %v1772
    %v2379 = vshrl.u32 %v2378, 2
    %v2380 = vand.u32 %v2378, 3
    %v2381 = vsub.s32 0, %v2380
    %v2382 = vsel %vm2376, %v2381, %v2380
    %vm2383 = vcmp.lt.s32.totalorder %v1773, 0
    %v2384 = vsub.s32 0, %v1773
    %v2385 = vsel %vm2383, %v2384, %v1773
    %v2386 = vshrl.u32 %v2385, 2
    %v2387 = vand.u32 %v2385, 3
    %v2388 = vsub.s32 0, %v2387
    %v2389 = vsel %vm2383, %v2388, %v2387
    %vm2390 = vcmp.lt.s32.totalorder %v1774, 0
    %v2391 = vsub.s32 0, %v1774
    %v2392 = vsel %vm2390, %v2391, %v1774
    %v2393 = vshrl.u32 %v2392, 2
    %v2394 = vand.u32 %v2392, 3
    %v2395 = vsub.s32 0, %v2394
    %v2396 = vsel %vm2390, %v2395, %v2394
    %vm2397 = vcmp.lt.s32.totalorder %v1775, 0
    %v2398 = vsub.s32 0, %v1775
    %v2399 = vsel %vm2397, %v2398, %v1775
    %v2400 = vshrl.u32 %v2399, 2
    %v2401 = vand.u32 %v2399, 3
    %v2402 = vsub.s32 0, %v2401
    %v2403 = vsel %vm2397, %v2402, %v2401
    %vm2404 = vcmp.lt.s32.totalorder %v1776, 0
    %v2405 = vsub.s32 0, %v1776
    %v2406 = vsel %vm2404, %v2405, %v1776
    %v2407 = vshrl.u32 %v2406, 2
    %v2408 = vand.u32 %v2406, 3
    %v2409 = vsub.s32 0, %v2408
    %v2410 = vsel %vm2404, %v2409, %v2408
    %vm2411 = vcmp.lt.s32.totalorder %v1777, 0
    %v2412 = vsub.s32 0, %v1777
    %v2413 = vsel %vm2411, %v2412, %v1777
    %v2414 = vshrl.u32 %v2413, 2
    %v2415 = vand.u32 %v2413, 3
    %v2416 = vsub.s32 0, %v2415
    %v2417 = vsel %vm2411, %v2416, %v2415
    %vm2418 = vcmp.lt.s32.totalorder %v1778, 0
    %v2419 = vsub.s32 0, %v1778
    %v2420 = vsel %vm2418, %v2419, %v1778
    %v2421 = vshrl.u32 %v2420, 2
    %v2422 = vand.u32 %v2420, 3
    %v2423 = vsub.s32 0, %v2422
    %v2424 = vsel %vm2418, %v2423, %v2422
    %vm2425 = vcmp.lt.s32.totalorder %v1779, 0
    %v2426 = vsub.s32 0, %v1779
    %v2427 = vsel %vm2425, %v2426, %v1779
    %v2428 = vshrl.u32 %v2427, 2
    %v2429 = vand.u32 %v2427, 3
    %v2430 = vsub.s32 0, %v2429
    %v2431 = vsel %vm2425, %v2430, %v2429
    %vm2432 = vcmp.lt.s32.totalorder %v1780, 0
    %v2433 = vsub.s32 0, %v1780
    %v2434 = vsel %vm2432, %v2433, %v1780
    %v2435 = vshrl.u32 %v2434, 2
    %v2436 = vand.u32 %v2434, 3
    %v2437 = vsub.s32 0, %v2436
    %v2438 = vsel %vm2432, %v2437, %v2436
    %vm2439 = vcmp.lt.s32.totalorder %v1781, 0
    %v2440 = vsub.s32 0, %v1781
    %v2441 = vsel %vm2439, %v2440, %v1781
    %v2442 = vshrl.u32 %v2441, 2
    %v2443 = vand.u32 %v2441, 3
    %v2444 = vsub.s32 0, %v2443
    %v2445 = vsel %vm2439, %v2444, %v2443
    %vm2446 = vcmp.lt.s32.totalorder %v1782, 0
    %v2447 = vsub.s32 0, %v1782
    %v2448 = vsel %vm2446, %v2447, %v1782
    %v2449 = vshrl.u32 %v2448, 2
    %v2450 = vand.u32 %v2448, 3
    %v2451 = vsub.s32 0, %v2450
    %v2452 = vsel %vm2446, %v2451, %v2450
    %vm2453 = vcmp.lt.s32.totalorder %v1783, 0
    %v2454 = vsub.s32 0, %v1783
    %v2455 = vsel %vm2453, %v2454, %v1783
    %v2456 = vshrl.u32 %v2455, 2
    %v2457 = vand.u32 %v2455, 3
    %v2458 = vsub.s32 0, %v2457
    %v2459 = vsel %vm2453, %v2458, %v2457
    %vm2460 = vcmp.lt.s32.totalorder %v1784, 0
    %v2461 = vsub.s32 0, %v1784
    %v2462 = vsel %vm2460, %v2461, %v1784
    %v2463 = vshrl.u32 %v2462, 2
    %v2464 = vand.u32 %v2462, 3
    %v2465 = vsub.s32 0, %v2464
    %v2466 = vsel %vm2460, %v2465, %v2464
    %vm2467 = vcmp.lt.s32.totalorder %v1785, 0
    %v2468 = vsub.s32 0, %v1785
    %v2469 = vsel %vm2467, %v2468, %v1785
    %v2470 = vshrl.u32 %v2469, 2
    %v2471 = vand.u32 %v2469, 3
    %v2472 = vsub.s32 0, %v2471
    %v2473 = vsel %vm2467, %v2472, %v2471
    %vm2474 = vcmp.lt.s32.totalorder %v1786, 0
    %v2475 = vsub.s32 0, %v1786
    %v2476 = vsel %vm2474, %v2475, %v1786
    %v2477 = vshrl.u32 %v2476, 2
    %v2478 = vand.u32 %v2476, 3
    %v2479 = vsub.s32 0, %v2478
    %v2480 = vsel %vm2474, %v2479, %v2478
    %vm2481 = vcmp.lt.s32.totalorder %v1787, 0
    %v2482 = vsub.s32 0, %v1787
    %v2483 = vsel %vm2481, %v2482, %v1787
    %v2484 = vshrl.u32 %v2483, 2
    %v2485 = vand.u32 %v2483, 3
    %v2486 = vsub.s32 0, %v2485
    %v2487 = vsel %vm2481, %v2486, %v2485
    %vm2488 = vcmp.lt.s32.totalorder %v1788, 0
    %v2489 = vsub.s32 0, %v1788
    %v2490 = vsel %vm2488, %v2489, %v1788
    %v2491 = vshrl.u32 %v2490, 2
    %v2492 = vand.u32 %v2490, 3
    %v2493 = vsub.s32 0, %v2492
    %v2494 = vsel %vm2488, %v2493, %v2492
    %vm2495 = vcmp.lt.s32.totalorder %v1789, 0
    %v2496 = vsub.s32 0, %v1789
    %v2497 = vsel %vm2495, %v2496, %v1789
    %v2498 = vshrl.u32 %v2497, 2
    %v2499 = vand.u32 %v2497, 3
    %v2500 = vsub.s32 0, %v2499
    %v2501 = vsel %vm2495, %v2500, %v2499
    %vm2502 = vcmp.lt.s32.totalorder %v1790, 0
    %v2503 = vsub.s32 0, %v1790
    %v2504 = vsel %vm2502, %v2503, %v1790
    %v2505 = vshrl.u32 %v2504, 2
    %v2506 = vand.u32 %v2504, 3
    %v2507 = vsub.s32 0, %v2506
    %v2508 = vsel %vm2502, %v2507, %v2506
    %vm2509 = vcmp.lt.s32.totalorder %v1791, 0
    %v2510 = vsub.s32 0, %v1791
    %v2511 = vsel %vm2509, %v2510, %v1791
    %v2512 = vshrl.u32 %v2511, 2
    %v2513 = vand.u32 %v2511, 3
    %v2514 = vsub.s32 0, %v2513
    %v2515 = vsel %vm2509, %v2514, %v2513
    %vm2516 = vcmp.lt.s32.totalorder %v1792, 0
    %v2517 = vsub.s32 0, %v1792
    %v2518 = vsel %vm2516, %v2517, %v1792
    %v2519 = vshrl.u32 %v2518, 2
    %v2520 = vand.u32 %v2518, 3
    %v2521 = vsub.s32 0, %v2520
    %v2522 = vsel %vm2516, %v2521, %v2520
    %vm2523 = vcmp.lt.s32.totalorder %v1793, 0
    %v2524 = vsub.s32 0, %v1793
    %v2525 = vsel %vm2523, %v2524, %v1793
    %v2526 = vshrl.u32 %v2525, 2
    %v2527 = vand.u32 %v2525, 3
    %v2528 = vsub.s32 0, %v2527
    %v2529 = vsel %vm2523, %v2528, %v2527
    %vm2530 = vcmp.lt.s32.totalorder %v1794, 0
    %v2531 = vsub.s32 0, %v1794
    %v2532 = vsel %vm2530, %v2531, %v1794
    %v2533 = vshrl.u32 %v2532, 2
    %v2534 = vand.u32 %v2532, 3
    %v2535 = vsub.s32 0, %v2534
    %v2536 = vsel %vm2530, %v2535, %v2534
    %vm2537 = vcmp.lt.s32.totalorder %v1795, 0
    %v2538 = vsub.s32 0, %v1795
    %v2539 = vsel %vm2537, %v2538, %v1795
    %v2540 = vshrl.u32 %v2539, 2
    %v2541 = vand.u32 %v2539, 3
    %v2542 = vsub.s32 0, %v2541
    %v2543 = vsel %vm2537, %v2542, %v2541
    %vm2544 = vcmp.lt.s32.totalorder %v1796, 0
    %v2545 = vsub.s32 0, %v1796
    %v2546 = vsel %vm2544, %v2545, %v1796
    %v2547 = vshrl.u32 %v2546, 2
    %v2548 = vand.u32 %v2546, 3
    %v2549 = vsub.s32 0, %v2548
    %v2550 = vsel %vm2544, %v2549, %v2548
    %vm2551 = vcmp.lt.s32.totalorder %v1797, 0
    %v2552 = vsub.s32 0, %v1797
    %v2553 = vsel %vm2551, %v2552, %v1797
    %v2554 = vshrl.u32 %v2553, 2
    %v2555 = vand.u32 %v2553, 3
    %v2556 = vsub.s32 0, %v2555
    %v2557 = vsel %vm2551, %v2556, %v2555
    %vm2558 = vcmp.lt.s32.totalorder %v1798, 0
    %v2559 = vsub.s32 0, %v1798
    %v2560 = vsel %vm2558, %v2559, %v1798
    %v2561 = vshrl.u32 %v2560, 2
    %v2562 = vand.u32 %v2560, 3
    %v2563 = vsub.s32 0, %v2562
    %v2564 = vsel %vm2558, %v2563, %v2562
    %vm2565 = vcmp.lt.s32.totalorder %v1799, 0
    %v2566 = vsub.s32 0, %v1799
    %v2567 = vsel %vm2565, %v2566, %v1799
    %v2568 = vshrl.u32 %v2567, 2
    %v2569 = vand.u32 %v2567, 3
    %v2570 = vsub.s32 0, %v2569
    %v2571 = vsel %vm2565, %v2570, %v2569
    %vm2572 = vcmp.lt.s32.totalorder %v1800, 0
    %v2573 = vsub.s32 0, %v1800
    %v2574 = vsel %vm2572, %v2573, %v1800
    %v2575 = vshrl.u32 %v2574, 2
    %v2576 = vand.u32 %v2574, 3
    %v2577 = vsub.s32 0, %v2576
    %v2578 = vsel %vm2572, %v2577, %v2576
    %vm2579 = vcmp.lt.s32.totalorder %v1801, 0
    %v2580 = vsub.s32 0, %v1801
    %v2581 = vsel %vm2579, %v2580, %v1801
    %v2582 = vshrl.u32 %v2581, 2
    %v2583 = vand.u32 %v2581, 3
    %v2584 = vsub.s32 0, %v2583
    %v2585 = vsel %vm2579, %v2584, %v2583
    %vm2586 = vcmp.lt.s32.totalorder %v1802, 0
    %v2587 = vsub.s32 0, %v1802
    %v2588 = vsel %vm2586, %v2587, %v1802
    %v2589 = vshrl.u32 %v2588, 2
    %v2590 = vand.u32 %v2588, 3
    %v2591 = vsub.s32 0, %v2590
    %v2592 = vsel %vm2586, %v2591, %v2590
    %vm2593 = vcmp.lt.s32.totalorder %v1803, 0
    %v2594 = vsub.s32 0, %v1803
    %v2595 = vsel %vm2593, %v2594, %v1803
    %v2596 = vshrl.u32 %v2595, 2
    %v2597 = vand.u32 %v2595, 3
    %v2598 = vsub.s32 0, %v2597
    %v2599 = vsel %vm2593, %v2598, %v2597
    %vm2600 = vcmp.lt.s32.totalorder %v1804, 0
    %v2601 = vsub.s32 0, %v1804
    %v2602 = vsel %vm2600, %v2601, %v1804
    %v2603 = vshrl.u32 %v2602, 2
    %v2604 = vand.u32 %v2602, 3
    %v2605 = vsub.s32 0, %v2604
    %v2606 = vsel %vm2600, %v2605, %v2604
    %vm2607 = vcmp.lt.s32.totalorder %v1805, 0
    %v2608 = vsub.s32 0, %v1805
    %v2609 = vsel %vm2607, %v2608, %v1805
    %v2610 = vshrl.u32 %v2609, 2
    %v2611 = vand.u32 %v2609, 3
    %v2612 = vsub.s32 0, %v2611
    %v2613 = vsel %vm2607, %v2612, %v2611
    %vm2614 = vcmp.lt.s32.totalorder %v1806, 0
    %v2615 = vsub.s32 0, %v1806
    %v2616 = vsel %vm2614, %v2615, %v1806
    %v2617 = vshrl.u32 %v2616, 2
    %v2618 = vand.u32 %v2616, 3
    %v2619 = vsub.s32 0, %v2618
    %v2620 = vsel %vm2614, %v2619, %v2618
    %vm2621 = vcmp.lt.s32.totalorder %v1807, 0
    %v2622 = vsub.s32 0, %v1807
    %v2623 = vsel %vm2621, %v2622, %v1807
    %v2624 = vshrl.u32 %v2623, 2
    %v2625 = vand.u32 %v2623, 3
    %v2626 = vsub.s32 0, %v2625
    %v2627 = vsel %vm2621, %v2626, %v2625
    %vm2628 = vcmp.lt.s32.totalorder %v1808, 0
    %v2629 = vsub.s32 0, %v1808
    %v2630 = vsel %vm2628, %v2629, %v1808
    %v2631 = vshrl.u32 %v2630, 2
    %v2632 = vand.u32 %v2630, 3
    %v2633 = vsub.s32 0, %v2632
    %v2634 = vsel %vm2628, %v2633, %v2632
    %vm2635 = vcmp.lt.s32.totalorder %v1809, 0
    %v2636 = vsub.s32 0, %v1809
    %v2637 = vsel %vm2635, %v2636, %v1809
    %v2638 = vshrl.u32 %v2637, 2
    %v2639 = vand.u32 %v2637, 3
    %v2640 = vsub.s32 0, %v2639
    %v2641 = vsel %vm2635, %v2640, %v2639
    %vm2642 = vcmp.lt.s32.totalorder %v1810, 0
    %v2643 = vsub.s32 0, %v1810
    %v2644 = vsel %vm2642, %v2643, %v1810
    %v2645 = vshrl.u32 %v2644, 2
    %v2646 = vand.u32 %v2644, 3
    %v2647 = vsub.s32 0, %v2646
    %v2648 = vsel %vm2642, %v2647, %v2646
    %vm2649 = vcmp.lt.s32.totalorder %v1811, 0
    %v2650 = vsub.s32 0, %v1811
    %v2651 = vsel %vm2649, %v2650, %v1811
    %v2652 = vshrl.u32 %v2651, 2
    %v2653 = vand.u32 %v2651, 3
    %v2654 = vsub.s32 0, %v2653
    %v2655 = vsel %vm2649, %v2654, %v2653
    %vm2656 = vcmp.lt.s32.totalorder %v1812, 0
    %v2657 = vsub.s32 0, %v1812
    %v2658 = vsel %vm2656, %v2657, %v1812
    %v2659 = vshrl.u32 %v2658, 2
    %v2660 = vand.u32 %v2658, 3
    %v2661 = vsub.s32 0, %v2660
    %v2662 = vsel %vm2656, %v2661, %v2660
    %vm2663 = vcmp.lt.s32.totalorder %v1813, 0
    %v2664 = vsub.s32 0, %v1813
    %v2665 = vsel %vm2663, %v2664, %v1813
    %v2666 = vshrl.u32 %v2665, 2
    %v2667 = vand.u32 %v2665, 3
    %v2668 = vsub.s32 0, %v2667
    %v2669 = vsel %vm2663, %v2668, %v2667
    %vm2670 = vcmp.lt.s32.totalorder %v1814, 0
    %v2671 = vsub.s32 0, %v1814
    %v2672 = vsel %vm2670, %v2671, %v1814
    %v2673 = vshrl.u32 %v2672, 2
    %v2674 = vand.u32 %v2672, 3
    %v2675 = vsub.s32 0, %v2674
    %v2676 = vsel %vm2670, %v2675, %v2674
    %vm2677 = vcmp.lt.s32.totalorder %v1815, 0
    %v2678 = vsub.s32 0, %v1815
    %v2679 = vsel %vm2677, %v2678, %v1815
    %v2680 = vshrl.u32 %v2679, 2
    %v2681 = vand.u32 %v2679, 3
    %v2682 = vsub.s32 0, %v2681
    %v2683 = vsel %vm2677, %v2682, %v2681
    %vm2684 = vcmp.lt.s32.totalorder %v1816, 0
    %v2685 = vsub.s32 0, %v1816
    %v2686 = vsel %vm2684, %v2685, %v1816
    %v2687 = vshrl.u32 %v2686, 2
    %v2688 = vand.u32 %v2686, 3
    %v2689 = vsub.s32 0, %v2688
    %v2690 = vsel %vm2684, %v2689, %v2688
    %vm2691 = vcmp.lt.s32.totalorder %v1817, 0
    %v2692 = vsub.s32 0, %v1817
    %v2693 = vsel %vm2691, %v2692, %v1817
    %v2694 = vshrl.u32 %v2693, 2
    %v2695 = vand.u32 %v2693, 3
    %v2696 = vsub.s32 0, %v2695
    %v2697 = vsel %vm2691, %v2696, %v2695
    %vm2698 = vcmp.lt.s32.totalorder %v1818, 0
    %v2699 = vsub.s32 0, %v1818
    %v2700 = vsel %vm2698, %v2699, %v1818
    %v2701 = vshrl.u32 %v2700, 2
    %v2702 = vand.u32 %v2700, 3
    %v2703 = vsub.s32 0, %v2702
    %v2704 = vsel %vm2698, %v2703, %v2702
    %vm2705 = vcmp.lt.s32.totalorder %v1819, 0
    %v2706 = vsub.s32 0, %v1819
    %v2707 = vsel %vm2705, %v2706, %v1819
    %v2708 = vshrl.u32 %v2707, 2
    %v2709 = vand.u32 %v2707, 3
    %v2710 = vsub.s32 0, %v2709
    %v2711 = vsel %vm2705, %v2710, %v2709
    %vm2712 = vcmp.lt.s32.totalorder %v1820, 0
    %v2713 = vsub.s32 0, %v1820
    %v2714 = vsel %vm2712, %v2713, %v1820
    %v2715 = vshrl.u32 %v2714, 2
    %v2716 = vand.u32 %v2714, 3
    %v2717 = vsub.s32 0, %v2716
    %v2718 = vsel %vm2712, %v2717, %v2716
    %vm2719 = vcmp.lt.s32.totalorder %v1821, 0
    %v2720 = vsub.s32 0, %v1821
    %v2721 = vsel %vm2719, %v2720, %v1821
    %v2722 = vshrl.u32 %v2721, 2
    %v2723 = vand.u32 %v2721, 3
    %v2724 = vsub.s32 0, %v2723
    %v2725 = vsel %vm2719, %v2724, %v2723
    %vm2726 = vcmp.lt.s32.totalorder %v1822, 0
    %v2727 = vsub.s32 0, %v1822
    %v2728 = vsel %vm2726, %v2727, %v1822
    %v2729 = vshrl.u32 %v2728, 2
    %v2730 = vand.u32 %v2728, 3
    %v2731 = vsub.s32 0, %v2730
    %v2732 = vsel %vm2726, %v2731, %v2730
    %vm2733 = vcmp.lt.s32.totalorder %v1823, 0
    %v2734 = vsub.s32 0, %v1823
    %v2735 = vsel %vm2733, %v2734, %v1823
    %v2736 = vshrl.u32 %v2735, 2
    %v2737 = vand.u32 %v2735, 3
    %v2738 = vsub.s32 0, %v2737
    %v2739 = vsel %vm2733, %v2738, %v2737
    %vm2740 = vcmp.lt.s32.totalorder %v1824, 0
    %v2741 = vsub.s32 0, %v1824
    %v2742 = vsel %vm2740, %v2741, %v1824
    %v2743 = vshrl.u32 %v2742, 2
    %v2744 = vand.u32 %v2742, 3
    %v2745 = vsub.s32 0, %v2744
    %v2746 = vsel %vm2740, %v2745, %v2744
    %vm2747 = vcmp.lt.s32.totalorder %v1825, 0
    %v2748 = vsub.s32 0, %v1825
    %v2749 = vsel %vm2747, %v2748, %v1825
    %v2750 = vshrl.u32 %v2749, 2
    %v2751 = vand.u32 %v2749, 3
    %v2752 = vsub.s32 0, %v2751
    %v2753 = vsel %vm2747, %v2752, %v2751
    %vm2754 = vcmp.lt.s32.totalorder %v1826, 0
    %v2755 = vsub.s32 0, %v1826
    %v2756 = vsel %vm2754, %v2755, %v1826
    %v2757 = vshrl.u32 %v2756, 2
    %v2758 = vand.u32 %v2756, 3
    %v2759 = vsub.s32 0, %v2758
    %v2760 = vsel %vm2754, %v2759, %v2758
    %vm2761 = vcmp.lt.s32.totalorder %v1827, 0
    %v2762 = vsub.s32 0, %v1827
    %v2763 = vsel %vm2761, %v2762, %v1827
    %v2764 = vshrl.u32 %v2763, 2
    %v2765 = vand.u32 %v2763, 3
    %v2766 = vsub.s32 0, %v2765
    %v2767 = vsel %vm2761, %v2766, %v2765
    %vm2768 = vcmp.lt.s32.totalorder %v1828, 0
    %v2769 = vsub.s32 0, %v1828
    %v2770 = vsel %vm2768, %v2769, %v1828
    %v2771 = vshrl.u32 %v2770, 2
    %v2772 = vand.u32 %v2770, 3
    %v2773 = vsub.s32 0, %v2772
    %v2774 = vsel %vm2768, %v2773, %v2772
    %vm2775 = vcmp.lt.s32.totalorder %v1829, 0
    %v2776 = vsub.s32 0, %v1829
    %v2777 = vsel %vm2775, %v2776, %v1829
    %v2778 = vshrl.u32 %v2777, 2
    %v2779 = vand.u32 %v2777, 3
    %v2780 = vsub.s32 0, %v2779
    %v2781 = vsel %vm2775, %v2780, %v2779
    %vm2782 = vcmp.lt.s32.totalorder %v1830, 0
    %v2783 = vsub.s32 0, %v1830
    %v2784 = vsel %vm2782, %v2783, %v1830
    %v2785 = vshrl.u32 %v2784, 2
    %v2786 = vand.u32 %v2784, 3
    %v2787 = vsub.s32 0, %v2786
    %v2788 = vsel %vm2782, %v2787, %v2786
    %vm2789 = vcmp.lt.s32.totalorder %v1831, 0
    %v2790 = vsub.s32 0, %v1831
    %v2791 = vsel %vm2789, %v2790, %v1831
    %v2792 = vshrl.u32 %v2791, 2
    %v2793 = vand.u32 %v2791, 3
    %v2794 = vsub.s32 0, %v2793
    %v2795 = vsel %vm2789, %v2794, %v2793
    %vm2796 = vcmp.lt.s32.totalorder %v1832, 0
    %v2797 = vsub.s32 0, %v1832
    %v2798 = vsel %vm2796, %v2797, %v1832
    %v2799 = vshrl.u32 %v2798, 2
    %v2800 = vand.u32 %v2798, 3
    %v2801 = vsub.s32 0, %v2800
    %v2802 = vsel %vm2796, %v2801, %v2800
    %vm2803 = vcmp.lt.s32.totalorder %v1833, 0
    %v2804 = vsub.s32 0, %v1833
    %v2805 = vsel %vm2803, %v2804, %v1833
    %v2806 = vshrl.u32 %v2805, 2
    %v2807 = vand.u32 %v2805, 3
    %v2808 = vsub.s32 0, %v2807
    %v2809 = vsel %vm2803, %v2808, %v2807
    %vm2810 = vcmp.lt.s32.totalorder %v1834, 0
    %v2811 = vsub.s32 0, %v1834
    %v2812 = vsel %vm2810, %v2811, %v1834
    %v2813 = vshrl.u32 %v2812, 2
    %v2814 = vand.u32 %v2812, 3
    %v2815 = vsub.s32 0, %v2814
    %v2816 = vsel %vm2810, %v2815, %v2814
    %vm2817 = vcmp.lt.s32.totalorder %v1835, 0
    %v2818 = vsub.s32 0, %v1835
    %v2819 = vsel %vm2817, %v2818, %v1835
    %v2820 = vshrl.u32 %v2819, 2
    %v2821 = vand.u32 %v2819, 3
    %v2822 = vsub.s32 0, %v2821
    %v2823 = vsel %vm2817, %v2822, %v2821
    %vm2824 = vcmp.lt.s32.totalorder %v1836, 0
    %v2825 = vsub.s32 0, %v1836
    %v2826 = vsel %vm2824, %v2825, %v1836
    %v2827 = vshrl.u32 %v2826, 2
    %v2828 = vand.u32 %v2826, 3
    %v2829 = vsub.s32 0, %v2828
    %v2830 = vsel %vm2824, %v2829, %v2828
    %vm2831 = vcmp.lt.s32.totalorder %v1837, 0
    %v2832 = vsub.s32 0, %v1837
    %v2833 = vsel %vm2831, %v2832, %v1837
    %v2834 = vshrl.u32 %v2833, 2
    %v2835 = vand.u32 %v2833, 3
    %v2836 = vsub.s32 0, %v2835
    %v2837 = vsel %vm2831, %v2836, %v2835
    %vm2838 = vcmp.lt.s32.totalorder %v1838, 0
    %v2839 = vsub.s32 0, %v1838
    %v2840 = vsel %vm2838, %v2839, %v1838
    %v2841 = vshrl.u32 %v2840, 2
    %v2842 = vand.u32 %v2840, 3
    %v2843 = vsub.s32 0, %v2842
    %v2844 = vsel %vm2838, %v2843, %v2842
    %vm2845 = vcmp.lt.s32.totalorder %v1839, 0
    %v2846 = vsub.s32 0, %v1839
    %v2847 = vsel %vm2845, %v2846, %v1839
    %v2848 = vshrl.u32 %v2847, 2
    %v2849 = vand.u32 %v2847, 3
    %v2850 = vsub.s32 0, %v2849
    %v2851 = vsel %vm2845, %v2850, %v2849
    %vm2852 = vcmp.lt.s32.totalorder %v1840, 0
    %v2853 = vsub.s32 0, %v1840
    %v2854 = vsel %vm2852, %v2853, %v1840
    %v2855 = vshrl.u32 %v2854, 2
    %v2856 = vand.u32 %v2854, 3
    %v2857 = vsub.s32 0, %v2856
    %v2858 = vsel %vm2852, %v2857, %v2856
    %vm2859 = vcmp.lt.s32.totalorder %v1841, 0
    %v2860 = vsub.s32 0, %v1841
    %v2861 = vsel %vm2859, %v2860, %v1841
    %v2862 = vshrl.u32 %v2861, 2
    %v2863 = vand.u32 %v2861, 3
    %v2864 = vsub.s32 0, %v2863
    %v2865 = vsel %vm2859, %v2864, %v2863
    %vm2866 = vcmp.lt.s32.totalorder %v1842, 0
    %v2867 = vsub.s32 0, %v1842
    %v2868 = vsel %vm2866, %v2867, %v1842
    %v2869 = vshrl.u32 %v2868, 2
    %v2870 = vand.u32 %v2868, 3
    %v2871 = vsub.s32 0, %v2870
    %v2872 = vsel %vm2866, %v2871, %v2870
    %vm2873 = vcmp.lt.s32.totalorder %v1843, 0
    %v2874 = vsub.s32 0, %v1843
    %v2875 = vsel %vm2873, %v2874, %v1843
    %v2876 = vshrl.u32 %v2875, 2
    %v2877 = vand.u32 %v2875, 3
    %v2878 = vsub.s32 0, %v2877
    %v2879 = vsel %vm2873, %v2878, %v2877
    %vm2880 = vcmp.lt.s32.totalorder %v1844, 0
    %v2881 = vsub.s32 0, %v1844
    %v2882 = vsel %vm2880, %v2881, %v1844
    %v2883 = vshrl.u32 %v2882, 2
    %v2884 = vand.u32 %v2882, 3
    %v2885 = vsub.s32 0, %v2884
    %v2886 = vsel %vm2880, %v2885, %v2884
    %vm2887 = vcmp.lt.s32.totalorder %v1845, 0
    %v2888 = vsub.s32 0, %v1845
    %v2889 = vsel %vm2887, %v2888, %v1845
    %v2890 = vshrl.u32 %v2889, 2
    %v2891 = vand.u32 %v2889, 3
    %v2892 = vsub.s32 0, %v2891
    %v2893 = vsel %vm2887, %v2892, %v2891
    %vm2894 = vcmp.lt.s32.totalorder %v1846, 0
    %v2895 = vsub.s32 0, %v1846
    %v2896 = vsel %vm2894, %v2895, %v1846
    %v2897 = vshrl.u32 %v2896, 2
    %v2898 = vand.u32 %v2896, 3
    %v2899 = vsub.s32 0, %v2898
    %v2900 = vsel %vm2894, %v2899, %v2898
    %vm2901 = vcmp.lt.s32.totalorder %v1847, 0
    %v2902 = vsub.s32 0, %v1847
    %v2903 = vsel %vm2901, %v2902, %v1847
    %v2904 = vshrl.u32 %v2903, 2
    %v2905 = vand.u32 %v2903, 3
    %v2906 = vsub.s32 0, %v2905
    %v2907 = vsel %vm2901, %v2906, %v2905
    %vm2908 = vcmp.lt.s32.totalorder %v1848, 0
    %v2909 = vsub.s32 0, %v1848
    %v2910 = vsel %vm2908, %v2909, %v1848
    %v2911 = vshrl.u32 %v2910, 2
    %v2912 = vand.u32 %v2910, 3
    %v2913 = vsub.s32 0, %v2912
    %v2914 = vsel %vm2908, %v2913, %v2912
    %vm2915 = vcmp.lt.s32.totalorder %v1849, 0
    %v2916 = vsub.s32 0, %v1849
    %v2917 = vsel %vm2915, %v2916, %v1849
    %v2918 = vshrl.u32 %v2917, 2
    %v2919 = vand.u32 %v2917, 3
    %v2920 = vsub.s32 0, %v2919
    %v2921 = vsel %vm2915, %v2920, %v2919
    %vm2922 = vcmp.lt.s32.totalorder %v1850, 0
    %v2923 = vsub.s32 0, %v1850
    %v2924 = vsel %vm2922, %v2923, %v1850
    %v2925 = vshrl.u32 %v2924, 2
    %v2926 = vand.u32 %v2924, 3
    %v2927 = vsub.s32 0, %v2926
    %v2928 = vsel %vm2922, %v2927, %v2926
    %vm2929 = vcmp.lt.s32.totalorder %v1851, 0
    %v2930 = vsub.s32 0, %v1851
    %v2931 = vsel %vm2929, %v2930, %v1851
    %v2932 = vshrl.u32 %v2931, 2
    %v2933 = vand.u32 %v2931, 3
    %v2934 = vsub.s32 0, %v2933
    %v2935 = vsel %vm2929, %v2934, %v2933
    %vm2936 = vcmp.lt.s32.totalorder %v1852, 0
    %v2937 = vsub.s32 0, %v1852
    %v2938 = vsel %vm2936, %v2937, %v1852
    %v2939 = vshrl.u32 %v2938, 2
    %v2940 = vand.u32 %v2938, 3
    %v2941 = vsub.s32 0, %v2940
    %v2942 = vsel %vm2936, %v2941, %v2940
    %vm2943 = vcmp.lt.s32.totalorder %v1853, 0
    %v2944 = vsub.s32 0, %v1853
    %v2945 = vsel %vm2943, %v2944, %v1853
    %v2946 = vshrl.u32 %v2945, 2
    %v2947 = vand.u32 %v2945, 3
    %v2948 = vsub.s32 0, %v2947
    %v2949 = vsel %vm2943, %v2948, %v2947
    %vm2950 = vcmp.lt.s32.totalorder %v1854, 0
    %v2951 = vsub.s32 0, %v1854
    %v2952 = vsel %vm2950, %v2951, %v1854
    %v2953 = vshrl.u32 %v2952, 2
    %v2954 = vand.u32 %v2952, 3
    %v2955 = vsub.s32 0, %v2954
    %v2956 = vsel %vm2950, %v2955, %v2954
    %vm2957 = vcmp.lt.s32.totalorder %v1855, 0
    %v2958 = vsub.s32 0, %v1855
    %v2959 = vsel %vm2957, %v2958, %v1855
    %v2960 = vshrl.u32 %v2959, 2
    %v2961 = vand.u32 %v2959, 3
    %v2962 = vsub.s32 0, %v2961
    %v2963 = vsel %vm2957, %v2962, %v2961
    %vm2964 = vcmp.lt.s32.totalorder %v1856, 0
    %v2965 = vsub.s32 0, %v1856
    %v2966 = vsel %vm2964, %v2965, %v1856
    %v2967 = vshrl.u32 %v2966, 2
    %v2968 = vand.u32 %v2966, 3
    %v2969 = vsub.s32 0, %v2968
    %v2970 = vsel %vm2964, %v2969, %v2968
    %vm2971 = vcmp.lt.s32.totalorder %v1857, 0
    %v2972 = vsub.s32 0, %v1857
    %v2973 = vsel %vm2971, %v2972, %v1857
    %v2974 = vshrl.u32 %v2973, 2
    %v2975 = vand.u32 %v2973, 3
    %v2976 = vsub.s32 0, %v2975
    %v2977 = vsel %vm2971, %v2976, %v2975
    %vm2978 = vcmp.lt.s32.totalorder %v1858, 0
    %v2979 = vsub.s32 0, %v1858
    %v2980 = vsel %vm2978, %v2979, %v1858
    %v2981 = vshrl.u32 %v2980, 2
    %v2982 = vand.u32 %v2980, 3
    %v2983 = vsub.s32 0, %v2982
    %v2984 = vsel %vm2978, %v2983, %v2982
    %vm2985 = vcmp.lt.s32.totalorder %v1859, 0
    %v2986 = vsub.s32 0, %v1859
    %v2987 = vsel %vm2985, %v2986, %v1859
    %v2988 = vshrl.u32 %v2987, 2
    %v2989 = vand.u32 %v2987, 3
    %v2990 = vsub.s32 0, %v2989
    %v2991 = vsel %vm2985, %v2990, %v2989
    %vm2992 = vcmp.lt.s32.totalorder %v1860, 0
    %v2993 = vsub.s32 0, %v1860
    %v2994 = vsel %vm2992, %v2993, %v1860
    %v2995 = vshrl.u32 %v2994, 2
    %v2996 = vand.u32 %v2994, 3
    %v2997 = vsub.s32 0, %v2996
    %v2998 = vsel %vm2992, %v2997, %v2996
    %vm2999 = vcmp.lt.s32.totalorder %v1861, 0
    %v3000 = vsub.s32 0, %v1861
    %v3001 = vsel %vm2999, %v3000, %v1861
    %v3002 = vshrl.u32 %v3001, 2
    %v3003 = vand.u32 %v3001, 3
    %v3004 = vsub.s32 0, %v3003
    %v3005 = vsel %vm2999, %v3004, %v3003
    %vm3006 = vcmp.lt.s32.totalorder %v1862, 0
    %v3007 = vsub.s32 0, %v1862
    %v3008 = vsel %vm3006, %v3007, %v1862
    %v3009 = vshrl.u32 %v3008, 2
    %v3010 = vand.u32 %v3008, 3
    %v3011 = vsub.s32 0, %v3010
    %v3012 = vsel %vm3006, %v3011, %v3010
    %vm3013 = vcmp.lt.s32.totalorder %v1863, 0
    %v3014 = vsub.s32 0, %v1863
    %v3015 = vsel %vm3013, %v3014, %v1863
    %v3016 = vshrl.u32 %v3015, 2
    %v3017 = vand.u32 %v3015, 3
    %v3018 = vsub.s32 0, %v3017
    %v3019 = vsel %vm3013, %v3018, %v3017
    %vm3020 = vcmp.lt.s32.totalorder %v1864, 0
    %v3021 = vsub.s32 0, %v1864
    %v3022 = vsel %vm3020, %v3021, %v1864
    %v3023 = vshrl.u32 %v3022, 2
    %v3024 = vand.u32 %v3022, 3
    %v3025 = vsub.s32 0, %v3024
    %v3026 = vsel %vm3020, %v3025, %v3024
    %vm3027 = vcmp.lt.s32.totalorder %v1865, 0
    %v3028 = vsub.s32 0, %v1865
    %v3029 = vsel %vm3027, %v3028, %v1865
    %v3030 = vshrl.u32 %v3029, 2
    %v3031 = vand.u32 %v3029, 3
    %v3032 = vsub.s32 0, %v3031
    %v3033 = vsel %vm3027, %v3032, %v3031
    %vm3034 = vcmp.lt.s32.totalorder %v1866, 0
    %v3035 = vsub.s32 0, %v1866
    %v3036 = vsel %vm3034, %v3035, %v1866
    %v3037 = vshrl.u32 %v3036, 2
    %v3038 = vand.u32 %v3036, 3
    %v3039 = vsub.s32 0, %v3038
    %v3040 = vsel %vm3034, %v3039, %v3038
    %vm3041 = vcmp.lt.s32.totalorder %v1867, 0
    %v3042 = vsub.s32 0, %v1867
    %v3043 = vsel %vm3041, %v3042, %v1867
    %v3044 = vshrl.u32 %v3043, 2
    %v3045 = vand.u32 %v3043, 3
    %v3046 = vsub.s32 0, %v3045
    %v3047 = vsel %vm3041, %v3046, %v3045
    %vm3048 = vcmp.lt.s32.totalorder %v1868, 0
    %v3049 = vsub.s32 0, %v1868
    %v3050 = vsel %vm3048, %v3049, %v1868
    %v3051 = vshrl.u32 %v3050, 2
    %v3052 = vand.u32 %v3050, 3
    %v3053 = vsub.s32 0, %v3052
    %v3054 = vsel %vm3048, %v3053, %v3052
    %vm3055 = vcmp.lt.s32.totalorder %v1869, 0
    %v3056 = vsub.s32 0, %v1869
    %v3057 = vsel %vm3055, %v3056, %v1869
    %v3058 = vshrl.u32 %v3057, 2
    %v3059 = vand.u32 %v3057, 3
    %v3060 = vsub.s32 0, %v3059
    %v3061 = vsel %vm3055, %v3060, %v3059
    %vm3062 = vcmp.lt.s32.totalorder %v1870, 0
    %v3063 = vsub.s32 0, %v1870
    %v3064 = vsel %vm3062, %v3063, %v1870
    %v3065 = vshrl.u32 %v3064, 2
    %v3066 = vand.u32 %v3064, 3
    %v3067 = vsub.s32 0, %v3066
    %v3068 = vsel %vm3062, %v3067, %v3066
    %vm3069 = vcmp.lt.s32.totalorder %v1871, 0
    %v3070 = vsub.s32 0, %v1871
    %v3071 = vsel %vm3069, %v3070, %v1871
    %v3072 = vshrl.u32 %v3071, 2
    %v3073 = vand.u32 %v3071, 3
    %v3074 = vsub.s32 0, %v3073
    %v3075 = vsel %vm3069, %v3074, %v3073
    %vm3076 = vcmp.lt.s32.totalorder %v1872, 0
    %v3077 = vsub.s32 0, %v1872
    %v3078 = vsel %vm3076, %v3077, %v1872
    %v3079 = vshrl.u32 %v3078, 2
    %v3080 = vand.u32 %v3078, 3
    %v3081 = vsub.s32 0, %v3080
    %v3082 = vsel %vm3076, %v3081, %v3080
    %vm3083 = vcmp.lt.s32.totalorder %v1873, 0
    %v3084 = vsub.s32 0, %v1873
    %v3085 = vsel %vm3083, %v3084, %v1873
    %v3086 = vshrl.u32 %v3085, 2
    %v3087 = vand.u32 %v3085, 3
    %v3088 = vsub.s32 0, %v3087
    %v3089 = vsel %vm3083, %v3088, %v3087
    %vm3090 = vcmp.ne.s32.totalorder %v2032, 0
    %vm3091 = vcmp.ne.s32.totalorder %v2039, 0
    %vm3092 = vcmp.ne.s32.totalorder %v2046, 0
    %vm3093 = vcmp.ne.s32.totalorder %v2053, 0
    %vm3094 = vcmp.ne.s32.totalorder %v2060, 0
    %vm3095 = vcmp.ne.s32.totalorder %v2067, 0
    %vm3096 = vcmp.ne.s32.totalorder %v2074, 0
    %vm3097 = vcmp.ne.s32.totalorder %v2081, 0
    %vm3098 = vcmp.ne.s32.totalorder %v2088, 0
    %vm3099 = vcmp.ne.s32.totalorder %v2095, 0
    %vm3100 = vcmp.ne.s32.totalorder %v2102, 0
    %vm3101 = vcmp.ne.s32.totalorder %v2109, 0
    %vm3102 = vcmp.ne.s32.totalorder %v2116, 0
    %vm3103 = vcmp.ne.s32.totalorder %v2123, 0
    %vm3104 = vcmp.ne.s32.totalorder %v2130, 0
    %vm3105 = vcmp.ne.s32.totalorder %v2137, 0
    %vm3106 = vcmp.ne.s32.totalorder %v2144, 0
    %vm3107 = vcmp.ne.s32.totalorder %v2151, 0
    %vm3108 = vcmp.ne.s32.totalorder %v2158, 0
    %vm3109 = vcmp.ne.s32.totalorder %v2165, 0
    %vm3110 = vcmp.ne.s32.totalorder %v2172, 0
    %vm3111 = vcmp.ne.s32.totalorder %v2179, 0
    %vm3112 = vcmp.ne.s32.totalorder %v2186, 0
    %vm3113 = vcmp.ne.s32.totalorder %v2193, 0
    %vm3114 = vcmp.ne.s32.totalorder %v2200, 0
    %vm3115 = vcmp.ne.s32.totalorder %v2207, 0
    %vm3116 = vcmp.ne.s32.totalorder %v2214, 0
    %vm3117 = vcmp.ne.s32.totalorder %v2221, 0
    %vm3118 = vcmp.ne.s32.totalorder %v2228, 0
    %vm3119 = vcmp.ne.s32.totalorder %v2235, 0
    %vm3120 = vcmp.ne.s32.totalorder %v2242, 0
    %vm3121 = vcmp.ne.s32.totalorder %v2249, 0
    %vm3122 = vcmp.ne.s32.totalorder %v2256, 0
    %vm3123 = vcmp.ne.s32.totalorder %v2263, 0
    %vm3124 = vcmp.ne.s32.totalorder %v2270, 0
    %vm3125 = vcmp.ne.s32.totalorder %v2277, 0
    %vm3126 = vcmp.ne.s32.totalorder %v2284, 0
    %vm3127 = vcmp.ne.s32.totalorder %v2291, 0
    %vm3128 = vcmp.ne.s32.totalorder %v2298, 0
    %vm3129 = vcmp.ne.s32.totalorder %v2305, 0
    %vm3130 = vcmp.ne.s32.totalorder %v2312, 0
    %vm3131 = vcmp.ne.s32.totalorder %v2319, 0
    %vm3132 = vcmp.ne.s32.totalorder %v2326, 0
    %vm3133 = vcmp.ne.s32.totalorder %v2333, 0
    %vm3134 = vcmp.ne.s32.totalorder %v2340, 0
    %vm3135 = vcmp.ne.s32.totalorder %v2347, 0
    %vm3136 = vcmp.ne.s32.totalorder %v2354, 0
    %vm3137 = vcmp.ne.s32.totalorder %v2361, 0
    %vm3138 = vcmp.ne.s32.totalorder %v2368, 0
    %vm3139 = vcmp.ne.s32.totalorder %v2375, 0
    %vm3140 = vcmp.ne.s32.totalorder %v2382, 0
    %vm3141 = vcmp.ne.s32.totalorder %v2389, 0
    %vm3142 = vcmp.ne.s32.totalorder %v2396, 0
    %vm3143 = vcmp.ne.s32.totalorder %v2403, 0
    %vm3144 = vcmp.ne.s32.totalorder %v2410, 0
    %vm3145 = vcmp.ne.s32.totalorder %v2417, 0
    %vm3146 = vcmp.ne.s32.totalorder %v2424, 0
    %vm3147 = vcmp.ne.s32.totalorder %v2431, 0
    %vm3148 = vcmp.ne.s32.totalorder %v2438, 0
    %vm3149 = vcmp.ne.s32.totalorder %v2445, 0
    %vm3150 = vcmp.ne.s32.totalorder %v2452, 0
    %vm3151 = vcmp.ne.s32.totalorder %v2459, 0
    %vm3152 = vcmp.ne.s32.totalorder %v2466, 0
    %vm3153 = vcmp.ne.s32.totalorder %v2473, 0
    %vm3154 = vcmp.ne.s32.totalorder %v2480, 0
    %vm3155 = vcmp.ne.s32.totalorder %v2487, 0
    %vm3156 = vcmp.ne.s32.totalorder %v2494, 0
    %vm3157 = vcmp.ne.s32.totalorder %v2501, 0
    %vm3158 = vcmp.ne.s32.totalorder %v2508, 0
    %vm3159 = vcmp.ne.s32.totalorder %v2515, 0
    %vm3160 = vcmp.ne.s32.totalorder %v2522, 0
    %vm3161 = vcmp.ne.s32.totalorder %v2529, 0
    %vm3162 = vcmp.ne.s32.totalorder %v2536, 0
    %vm3163 = vcmp.ne.s32.totalorder %v2543, 0
    %vm3164 = vcmp.ne.s32.totalorder %v2550, 0
    %vm3165 = vcmp.ne.s32.totalorder %v2557, 0
    %vm3166 = vcmp.ne.s32.totalorder %v2564, 0
    %vm3167 = vcmp.ne.s32.totalorder %v2571, 0
    %vm3168 = vcmp.ne.s32.totalorder %v2578, 0
    %vm3169 = vcmp.ne.s32.totalorder %v2585, 0
    %vm3170 = vcmp.ne.s32.totalorder %v2592, 0
    %vm3171 = vcmp.ne.s32.totalorder %v2599, 0
    %vm3172 = vcmp.ne.s32.totalorder %v2606, 0
    %vm3173 = vcmp.ne.s32.totalorder %v2613, 0
    %vm3174 = vcmp.ne.s32.totalorder %v2620, 0
    %vm3175 = vcmp.ne.s32.totalorder %v2627, 0
    %vm3176 = vcmp.ne.s32.totalorder %v2634, 0
    %vm3177 = vcmp.ne.s32.totalorder %v2641, 0
    %vm3178 = vcmp.ne.s32.totalorder %v2648, 0
    %vm3179 = vcmp.ne.s32.totalorder %v2655, 0
    %vm3180 = vcmp.ne.s32.totalorder %v2662, 0
    %vm3181 = vcmp.ne.s32.totalorder %v2669, 0
    %vm3182 = vcmp.ne.s32.totalorder %v2676, 0
    %vm3183 = vcmp.ne.s32.totalorder %v2683, 0
    %vm3184 = vcmp.ne.s32.totalorder %v2690, 0
    %vm3185 = vcmp.ne.s32.totalorder %v2697, 0
    %vm3186 = vcmp.ne.s32.totalorder %v2704, 0
    %vm3187 = vcmp.ne.s32.totalorder %v2711, 0
    %vm3188 = vcmp.ne.s32.totalorder %v2718, 0
    %vm3189 = vcmp.ne.s32.totalorder %v2725, 0
    %vm3190 = vcmp.ne.s32.totalorder %v2732, 0
    %vm3191 = vcmp.ne.s32.totalorder %v2739, 0
    %vm3192 = vcmp.ne.s32.totalorder %v2746, 0
    %vm3193 = vcmp.ne.s32.totalorder %v2753, 0
    %vm3194 = vcmp.ne.s32.totalorder %v2760, 0
    %vm3195 = vcmp.ne.s32.totalorder %v2767, 0
    %vm3196 = vcmp.ne.s32.totalorder %v2774, 0
    %vm3197 = vcmp.ne.s32.totalorder %v2781, 0
    %vm3198 = vcmp.ne.s32.totalorder %v2788, 0
    %vm3199 = vcmp.ne.s32.totalorder %v2795, 0
    %vm3200 = vcmp.ne.s32.totalorder %v2802, 0
    %vm3201 = vcmp.ne.s32.totalorder %v2809, 0
    %vm3202 = vcmp.ne.s32.totalorder %v2816, 0
    %vm3203 = vcmp.ne.s32.totalorder %v2823, 0
    %vm3204 = vcmp.ne.s32.totalorder %v2830, 0
    %vm3205 = vcmp.ne.s32.totalorder %v2837, 0
    %vm3206 = vcmp.ne.s32.totalorder %v2844, 0
    %vm3207 = vcmp.ne.s32.totalorder %v2851, 0
    %vm3208 = vcmp.ne.s32.totalorder %v2858, 0
    %vm3209 = vcmp.ne.s32.totalorder %v2865, 0
    %vm3210 = vcmp.ne.s32.totalorder %v2872, 0
    %vm3211 = vcmp.ne.s32.totalorder %v2879, 0
    %vm3212 = vcmp.ne.s32.totalorder %v2886, 0
    %vm3213 = vcmp.ne.s32.totalorder %v2893, 0
    %vm3214 = vcmp.ne.s32.totalorder %v2900, 0
    %vm3215 = vcmp.ne.s32.totalorder %v2907, 0
    %vm3216 = vcmp.ne.s32.totalorder %v2914, 0
    %vm3217 = vcmp.ne.s32.totalorder %v2921, 0
    %vm3218 = vcmp.ne.s32.totalorder %v2928, 0
    %vm3219 = vcmp.ne.s32.totalorder %v2935, 0
    %vm3220 = vcmp.ne.s32.totalorder %v2942, 0
    %vm3221 = vcmp.ne.s32.totalorder %v2949, 0
    %vm3222 = vcmp.ne.s32.totalorder %v2956, 0
    %vm3223 = vcmp.ne.s32.totalorder %v2963, 0
    %vm3224 = vcmp.ne.s32.totalorder %v2970, 0
    %vm3225 = vcmp.ne.s32.totalorder %v2977, 0
    %vm3226 = vcmp.ne.s32.totalorder %v2984, 0
    %vm3227 = vcmp.ne.s32.totalorder %v2991, 0
    %vm3228 = vcmp.ne.s32.totalorder %v2998, 0
    %vm3229 = vcmp.ne.s32.totalorder %v3005, 0
    %vm3230 = vcmp.ne.s32.totalorder %v3012, 0
    %vm3231 = vcmp.ne.s32.totalorder %v3019, 0
    %vm3232 = vcmp.ne.s32.totalorder %v3026, 0
    %vm3233 = vcmp.ne.s32.totalorder %v3033, 0
    %vm3234 = vcmp.ne.s32.totalorder %v3040, 0
    %vm3235 = vcmp.ne.s32.totalorder %v3047, 0
    %vm3236 = vcmp.ne.s32.totalorder %v3054, 0
    %vm3237 = vcmp.ne.s32.totalorder %v3061, 0
    %vm3238 = vcmp.ne.s32.totalorder %v3068, 0
    %vm3239 = vcmp.ne.s32.totalorder %v3075, 0
    %vm3240 = vcmp.ne.s32.totalorder %v3082, 0
    %vm3241 = vcmp.ne.s32.totalorder %v3089, 0
    %vm3242 = vcmp.lt.s32.totalorder %v2032, 0
    %vm3243 = vcmp.lt.s32.totalorder %v2039, 0
    %vm3244 = vcmp.lt.s32.totalorder %v2046, 0
    %vm3245 = vcmp.lt.s32.totalorder %v2053, 0
    %vm3246 = vcmp.lt.s32.totalorder %v2060, 0
    %vm3247 = vcmp.lt.s32.totalorder %v2067, 0
    %vm3248 = vcmp.lt.s32.totalorder %v2074, 0
    %vm3249 = vcmp.lt.s32.totalorder %v2081, 0
    %vm3250 = vcmp.lt.s32.totalorder %v2088, 0
    %vm3251 = vcmp.lt.s32.totalorder %v2095, 0
    %vm3252 = vcmp.lt.s32.totalorder %v2102, 0
    %vm3253 = vcmp.lt.s32.totalorder %v2109, 0
    %vm3254 = vcmp.lt.s32.totalorder %v2116, 0
    %vm3255 = vcmp.lt.s32.totalorder %v2123, 0
    %vm3256 = vcmp.lt.s32.totalorder %v2130, 0
    %vm3257 = vcmp.lt.s32.totalorder %v2137, 0
    %vm3258 = vcmp.lt.s32.totalorder %v2144, 0
    %vm3259 = vcmp.lt.s32.totalorder %v2151, 0
    %vm3260 = vcmp.lt.s32.totalorder %v2158, 0
    %vm3261 = vcmp.lt.s32.totalorder %v2165, 0
    %vm3262 = vcmp.lt.s32.totalorder %v2172, 0
    %vm3263 = vcmp.lt.s32.totalorder %v2179, 0
    %vm3264 = vcmp.lt.s32.totalorder %v2186, 0
    %vm3265 = vcmp.lt.s32.totalorder %v2193, 0
    %vm3266 = vcmp.lt.s32.totalorder %v2200, 0
    %vm3267 = vcmp.lt.s32.totalorder %v2207, 0
    %vm3268 = vcmp.lt.s32.totalorder %v2214, 0
    %vm3269 = vcmp.lt.s32.totalorder %v2221, 0
    %vm3270 = vcmp.lt.s32.totalorder %v2228, 0
    %vm3271 = vcmp.lt.s32.totalorder %v2235, 0
    %vm3272 = vcmp.lt.s32.totalorder %v2242, 0
    %vm3273 = vcmp.lt.s32.totalorder %v2249, 0
    %vm3274 = vcmp.lt.s32.totalorder %v2256, 0
    %vm3275 = vcmp.lt.s32.totalorder %v2263, 0
    %vm3276 = vcmp.lt.s32.totalorder %v2270, 0
    %vm3277 = vcmp.lt.s32.totalorder %v2277, 0
    %vm3278 = vcmp.lt.s32.totalorder %v2284, 0
    %vm3279 = vcmp.lt.s32.totalorder %v2291, 0
    %vm3280 = vcmp.lt.s32.totalorder %v2298, 0
    %vm3281 = vcmp.lt.s32.totalorder %v2305, 0
    %vm3282 = vcmp.lt.s32.totalorder %v2312, 0
    %vm3283 = vcmp.lt.s32.totalorder %v2319, 0
    %vm3284 = vcmp.lt.s32.totalorder %v2326, 0
    %vm3285 = vcmp.lt.s32.totalorder %v2333, 0
    %vm3286 = vcmp.lt.s32.totalorder %v2340, 0
    %vm3287 = vcmp.lt.s32.totalorder %v2347, 0
    %vm3288 = vcmp.lt.s32.totalorder %v2354, 0
    %vm3289 = vcmp.lt.s32.totalorder %v2361, 0
    %vm3290 = vcmp.lt.s32.totalorder %v2368, 0
    %vm3291 = vcmp.lt.s32.totalorder %v2375, 0
    %vm3292 = vcmp.lt.s32.totalorder %v2382, 0
    %vm3293 = vcmp.lt.s32.totalorder %v2389, 0
    %vm3294 = vcmp.lt.s32.totalorder %v2396, 0
    %vm3295 = vcmp.lt.s32.totalorder %v2403, 0
    %vm3296 = vcmp.lt.s32.totalorder %v2410, 0
    %vm3297 = vcmp.lt.s32.totalorder %v2417, 0
    %vm3298 = vcmp.lt.s32.totalorder %v2424, 0
    %vm3299 = vcmp.lt.s32.totalorder %v2431, 0
    %vm3300 = vcmp.lt.s32.totalorder %v2438, 0
    %vm3301 = vcmp.lt.s32.totalorder %v2445, 0
    %vm3302 = vcmp.lt.s32.totalorder %v2452, 0
    %vm3303 = vcmp.lt.s32.totalorder %v2459, 0
    %vm3304 = vcmp.lt.s32.totalorder %v2466, 0
    %vm3305 = vcmp.lt.s32.totalorder %v2473, 0
    %vm3306 = vcmp.lt.s32.totalorder %v2480, 0
    %vm3307 = vcmp.lt.s32.totalorder %v2487, 0
    %vm3308 = vcmp.lt.s32.totalorder %v2494, 0
    %vm3309 = vcmp.lt.s32.totalorder %v2501, 0
    %vm3310 = vcmp.lt.s32.totalorder %v2508, 0
    %vm3311 = vcmp.lt.s32.totalorder %v2515, 0
    %vm3312 = vcmp.lt.s32.totalorder %v2522, 0
    %vm3313 = vcmp.lt.s32.totalorder %v2529, 0
    %vm3314 = vcmp.lt.s32.totalorder %v2536, 0
    %vm3315 = vcmp.lt.s32.totalorder %v2543, 0
    %vm3316 = vcmp.lt.s32.totalorder %v2550, 0
    %vm3317 = vcmp.lt.s32.totalorder %v2557, 0
    %vm3318 = vcmp.lt.s32.totalorder %v2564, 0
    %vm3319 = vcmp.lt.s32.totalorder %v2571, 0
    %vm3320 = vcmp.lt.s32.totalorder %v2578, 0
    %vm3321 = vcmp.lt.s32.totalorder %v2585, 0
    %vm3322 = vcmp.lt.s32.totalorder %v2592, 0
    %vm3323 = vcmp.lt.s32.totalorder %v2599, 0
    %vm3324 = vcmp.lt.s32.totalorder %v2606, 0
    %vm3325 = vcmp.lt.s32.totalorder %v2613, 0
    %vm3326 = vcmp.lt.s32.totalorder %v2620, 0
    %vm3327 = vcmp.lt.s32.totalorder %v2627, 0
    %vm3328 = vcmp.lt.s32.totalorder %v2634, 0
    %vm3329 = vcmp.lt.s32.totalorder %v2641, 0
    %vm3330 = vcmp.lt.s32.totalorder %v2648, 0
    %vm3331 = vcmp.lt.s32.totalorder %v2655, 0
    %vm3332 = vcmp.lt.s32.totalorder %v2662, 0
    %vm3333 = vcmp.lt.s32.totalorder %v2669, 0
    %vm3334 = vcmp.lt.s32.totalorder %v2676, 0
    %vm3335 = vcmp.lt.s32.totalorder %v2683, 0
    %vm3336 = vcmp.lt.s32.totalorder %v2690, 0
    %vm3337 = vcmp.lt.s32.totalorder %v2697, 0
    %vm3338 = vcmp.lt.s32.totalorder %v2704, 0
    %vm3339 = vcmp.lt.s32.totalorder %v2711, 0
    %vm3340 = vcmp.lt.s32.totalorder %v2718, 0
    %vm3341 = vcmp.lt.s32.totalorder %v2725, 0
    %vm3342 = vcmp.lt.s32.totalorder %v2732, 0
    %vm3343 = vcmp.lt.s32.totalorder %v2739, 0
    %vm3344 = vcmp.lt.s32.totalorder %v2746, 0
    %vm3345 = vcmp.lt.s32.totalorder %v2753, 0
    %vm3346 = vcmp.lt.s32.totalorder %v2760, 0
    %vm3347 = vcmp.lt.s32.totalorder %v2767, 0
    %vm3348 = vcmp.lt.s32.totalorder %v2774, 0
    %vm3349 = vcmp.lt.s32.totalorder %v2781, 0
    %vm3350 = vcmp.lt.s32.totalorder %v2788, 0
    %vm3351 = vcmp.lt.s32.totalorder %v2795, 0
    %vm3352 = vcmp.lt.s32.totalorder %v2802, 0
    %vm3353 = vcmp.lt.s32.totalorder %v2809, 0
    %vm3354 = vcmp.lt.s32.totalorder %v2816, 0
    %vm3355 = vcmp.lt.s32.totalorder %v2823, 0
    %vm3356 = vcmp.lt.s32.totalorder %v2830, 0
    %vm3357 = vcmp.lt.s32.totalorder %v2837, 0
    %vm3358 = vcmp.lt.s32.totalorder %v2844, 0
    %vm3359 = vcmp.lt.s32.totalorder %v2851, 0
    %vm3360 = vcmp.lt.s32.totalorder %v2858, 0
    %vm3361 = vcmp.lt.s32.totalorder %v2865, 0
    %vm3362 = vcmp.lt.s32.totalorder %v2872, 0
    %vm3363 = vcmp.lt.s32.totalorder %v2879, 0
    %vm3364 = vcmp.lt.s32.totalorder %v2886, 0
    %vm3365 = vcmp.lt.s32.totalorder %v2893, 0
    %vm3366 = vcmp.lt.s32.totalorder %v2900, 0
    %vm3367 = vcmp.lt.s32.totalorder %v2907, 0
    %vm3368 = vcmp.lt.s32.totalorder %v2914, 0
    %vm3369 = vcmp.lt.s32.totalorder %v2921, 0
    %vm3370 = vcmp.lt.s32.totalorder %v2928, 0
    %vm3371 = vcmp.lt.s32.totalorder %v2935, 0
    %vm3372 = vcmp.lt.s32.totalorder %v2942, 0
    %vm3373 = vcmp.lt.s32.totalorder %v2949, 0
    %vm3374 = vcmp.lt.s32.totalorder %v2956, 0
    %vm3375 = vcmp.lt.s32.totalorder %v2963, 0
    %vm3376 = vcmp.lt.s32.totalorder %v2970, 0
    %vm3377 = vcmp.lt.s32.totalorder %v2977, 0
    %vm3378 = vcmp.lt.s32.totalorder %v2984, 0
    %vm3379 = vcmp.lt.s32.totalorder %v2991, 0
    %vm3380 = vcmp.lt.s32.totalorder %v2998, 0
    %vm3381 = vcmp.lt.s32.totalorder %v3005, 0
    %vm3382 = vcmp.lt.s32.totalorder %v3012, 0
    %vm3383 = vcmp.lt.s32.totalorder %v3019, 0
    %vm3384 = vcmp.lt.s32.totalorder %v3026, 0
    %vm3385 = vcmp.lt.s32.totalorder %v3033, 0
    %vm3386 = vcmp.lt.s32.totalorder %v3040, 0
    %vm3387 = vcmp.lt.s32.totalorder %v3047, 0
    %vm3388 = vcmp.lt.s32.totalorder %v3054, 0
    %vm3389 = vcmp.lt.s32.totalorder %v3061, 0
    %vm3390 = vcmp.lt.s32.totalorder %v3068, 0
    %vm3391 = vcmp.lt.s32.totalorder %v3075, 0
    %vm3392 = vcmp.lt.s32.totalorder %v3082, 0
    %vm3393 = vcmp.lt.s32.totalorder %v3089, 0
    %vm3394 = vmand %vm3242, %vm3090
    %vm3395 = vmand %vm3243, %vm3091
    %vm3396 = vmand %vm3244, %vm3092
    %vm3397 = vmand %vm3245, %vm3093
    %vm3398 = vmand %vm3246, %vm3094
    %vm3399 = vmand %vm3247, %vm3095
    %vm3400 = vmand %vm3248, %vm3096
    %vm3401 = vmand %vm3249, %vm3097
    %vm3402 = vmand %vm3250, %vm3098
    %vm3403 = vmand %vm3251, %vm3099
    %vm3404 = vmand %vm3252, %vm3100
    %vm3405 = vmand %vm3253, %vm3101
    %vm3406 = vmand %vm3254, %vm3102
    %vm3407 = vmand %vm3255, %vm3103
    %vm3408 = vmand %vm3256, %vm3104
    %vm3409 = vmand %vm3257, %vm3105
    %vm3410 = vmand %vm3258, %vm3106
    %vm3411 = vmand %vm3259, %vm3107
    %vm3412 = vmand %vm3260, %vm3108
    %vm3413 = vmand %vm3261, %vm3109
    %vm3414 = vmand %vm3262, %vm3110
    %vm3415 = vmand %vm3263, %vm3111
    %vm3416 = vmand %vm3264, %vm3112
    %vm3417 = vmand %vm3265, %vm3113
    %vm3418 = vmand %vm3266, %vm3114
    %vm3419 = vmand %vm3267, %vm3115
    %vm3420 = vmand %vm3268, %vm3116
    %vm3421 = vmand %vm3269, %vm3117
    %vm3422 = vmand %vm3270, %vm3118
    %vm3423 = vmand %vm3271, %vm3119
    %vm3424 = vmand %vm3272, %vm3120
    %vm3425 = vmand %vm3273, %vm3121
    %vm3426 = vmand %vm3274, %vm3122
    %vm3427 = vmand %vm3275, %vm3123
    %vm3428 = vmand %vm3276, %vm3124
    %vm3429 = vmand %vm3277, %vm3125
    %vm3430 = vmand %vm3278, %vm3126
    %vm3431 = vmand %vm3279, %vm3127
    %vm3432 = vmand %vm3280, %vm3128
    %vm3433 = vmand %vm3281, %vm3129
    %vm3434 = vmand %vm3282, %vm3130
    %vm3435 = vmand %vm3283, %vm3131
    %vm3436 = vmand %vm3284, %vm3132
    %vm3437 = vmand %vm3285, %vm3133
    %vm3438 = vmand %vm3286, %vm3134
    %vm3439 = vmand %vm3287, %vm3135
    %vm3440 = vmand %vm3288, %vm3136
    %vm3441 = vmand %vm3289, %vm3137
    %vm3442 = vmand %vm3290, %vm3138
    %vm3443 = vmand %vm3291, %vm3139
    %vm3444 = vmand %vm3292, %vm3140
    %vm3445 = vmand %vm3293, %vm3141
    %vm3446 = vmand %vm3294, %vm3142
    %vm3447 = vmand %vm3295, %vm3143
    %vm3448 = vmand %vm3296, %vm3144
    %vm3449 = vmand %vm3297, %vm3145
    %vm3450 = vmand %vm3298, %vm3146
    %vm3451 = vmand %vm3299, %vm3147
    %vm3452 = vmand %vm3300, %vm3148
    %vm3453 = vmand %vm3301, %vm3149
    %vm3454 = vmand %vm3302, %vm3150
    %vm3455 = vmand %vm3303, %vm3151
    %vm3456 = vmand %vm3304, %vm3152
    %vm3457 = vmand %vm3305, %vm3153
    %vm3458 = vmand %vm3306, %vm3154
    %vm3459 = vmand %vm3307, %vm3155
    %vm3460 = vmand %vm3308, %vm3156
    %vm3461 = vmand %vm3309, %vm3157
    %vm3462 = vmand %vm3310, %vm3158
    %vm3463 = vmand %vm3311, %vm3159
    %vm3464 = vmand %vm3312, %vm3160
    %vm3465 = vmand %vm3313, %vm3161
    %vm3466 = vmand %vm3314, %vm3162
    %vm3467 = vmand %vm3315, %vm3163
    %vm3468 = vmand %vm3316, %vm3164
    %vm3469 = vmand %vm3317, %vm3165
    %vm3470 = vmand %vm3318, %vm3166
    %vm3471 = vmand %vm3319, %vm3167
    %vm3472 = vmand %vm3320, %vm3168
    %vm3473 = vmand %vm3321, %vm3169
    %vm3474 = vmand %vm3322, %vm3170
    %vm3475 = vmand %vm3323, %vm3171
    %vm3476 = vmand %vm3324, %vm3172
    %vm3477 = vmand %vm3325, %vm3173
    %vm3478 = vmand %vm3326, %vm3174
    %vm3479 = vmand %vm3327, %vm3175
    %vm3480 = vmand %vm3328, %vm3176
    %vm3481 = vmand %vm3329, %vm3177
    %vm3482 = vmand %vm3330, %vm3178
    %vm3483 = vmand %vm3331, %vm3179
    %vm3484 = vmand %vm3332, %vm3180
    %vm3485 = vmand %vm3333, %vm3181
    %vm3486 = vmand %vm3334, %vm3182
    %vm3487 = vmand %vm3335, %vm3183
    %vm3488 = vmand %vm3336, %vm3184
    %vm3489 = vmand %vm3337, %vm3185
    %vm3490 = vmand %vm3338, %vm3186
    %vm3491 = vmand %vm3339, %vm3187
    %vm3492 = vmand %vm3340, %vm3188
    %vm3493 = vmand %vm3341, %vm3189
    %vm3494 = vmand %vm3342, %vm3190
    %vm3495 = vmand %vm3343, %vm3191
    %vm3496 = vmand %vm3344, %vm3192
    %vm3497 = vmand %vm3345, %vm3193
    %vm3498 = vmand %vm3346, %vm3194
    %vm3499 = vmand %vm3347, %vm3195
    %vm3500 = vmand %vm3348, %vm3196
    %vm3501 = vmand %vm3349, %vm3197
    %vm3502 = vmand %vm3350, %vm3198
    %vm3503 = vmand %vm3351, %vm3199
    %vm3504 = vmand %vm3352, %vm3200
    %vm3505 = vmand %vm3353, %vm3201
    %vm3506 = vmand %vm3354, %vm3202
    %vm3507 = vmand %vm3355, %vm3203
    %vm3508 = vmand %vm3356, %vm3204
    %vm3509 = vmand %vm3357, %vm3205
    %vm3510 = vmand %vm3358, %vm3206
    %vm3511 = vmand %vm3359, %vm3207
    %vm3512 = vmand %vm3360, %vm3208
    %vm3513 = vmand %vm3361, %vm3209
    %vm3514 = vmand %vm3362, %vm3210
    %vm3515 = vmand %vm3363, %vm3211
    %vm3516 = vmand %vm3364, %vm3212
    %vm3517 = vmand %vm3365, %vm3213
    %vm3518 = vmand %vm3366, %vm3214
    %vm3519 = vmand %vm3367, %vm3215
    %vm3520 = vmand %vm3368, %vm3216
    %vm3521 = vmand %vm3369, %vm3217
    %vm3522 = vmand %vm3370, %vm3218
    %vm3523 = vmand %vm3371, %vm3219
    %vm3524 = vmand %vm3372, %vm3220
    %vm3525 = vmand %vm3373, %vm3221
    %vm3526 = vmand %vm3374, %vm3222
    %vm3527 = vmand %vm3375, %vm3223
    %vm3528 = vmand %vm3376, %vm3224
    %vm3529 = vmand %vm3377, %vm3225
    %vm3530 = vmand %vm3378, %vm3226
    %vm3531 = vmand %vm3379, %vm3227
    %vm3532 = vmand %vm3380, %vm3228
    %vm3533 = vmand %vm3381, %vm3229
    %vm3534 = vmand %vm3382, %vm3230
    %vm3535 = vmand %vm3383, %vm3231
    %vm3536 = vmand %vm3384, %vm3232
    %vm3537 = vmand %vm3385, %vm3233
    %vm3538 = vmand %vm3386, %vm3234
    %vm3539 = vmand %vm3387, %vm3235
    %vm3540 = vmand %vm3388, %vm3236
    %vm3541 = vmand %vm3389, %vm3237
    %vm3542 = vmand %vm3390, %vm3238
    %vm3543 = vmand %vm3391, %vm3239
    %vm3544 = vmand %vm3392, %vm3240
    %vm3545 = vmand %vm3393, %vm3241
    %v3546 = vadd.s32 %v2032, 4
    %v3547 = vadd.s32 %v2039, 4
    %v3548 = vadd.s32 %v2046, 4
    %v3549 = vadd.s32 %v2053, 4
    %v3550 = vadd.s32 %v2060, 4
    %v3551 = vadd.s32 %v2067, 4
    %v3552 = vadd.s32 %v2074, 4
    %v3553 = vadd.s32 %v2081, 4
    %v3554 = vadd.s32 %v2088, 4
    %v3555 = vadd.s32 %v2095, 4
    %v3556 = vadd.s32 %v2102, 4
    %v3557 = vadd.s32 %v2109, 4
    %v3558 = vadd.s32 %v2116, 4
    %v3559 = vadd.s32 %v2123, 4
    %v3560 = vadd.s32 %v2130, 4
    %v3561 = vadd.s32 %v2137, 4
    %v3562 = vadd.s32 %v2144, 4
    %v3563 = vadd.s32 %v2151, 4
    %v3564 = vadd.s32 %v2158, 4
    %v3565 = vadd.s32 %v2165, 4
    %v3566 = vadd.s32 %v2172, 4
    %v3567 = vadd.s32 %v2179, 4
    %v3568 = vadd.s32 %v2186, 4
    %v3569 = vadd.s32 %v2193, 4
    %v3570 = vadd.s32 %v2200, 4
    %v3571 = vadd.s32 %v2207, 4
    %v3572 = vadd.s32 %v2214, 4
    %v3573 = vadd.s32 %v2221, 4
    %v3574 = vadd.s32 %v2228, 4
    %v3575 = vadd.s32 %v2235, 4
    %v3576 = vadd.s32 %v2242, 4
    %v3577 = vadd.s32 %v2249, 4
    %v3578 = vadd.s32 %v2256, 4
    %v3579 = vadd.s32 %v2263, 4
    %v3580 = vadd.s32 %v2270, 4
    %v3581 = vadd.s32 %v2277, 4
    %v3582 = vadd.s32 %v2284, 4
    %v3583 = vadd.s32 %v2291, 4
    %v3584 = vadd.s32 %v2298, 4
    %v3585 = vadd.s32 %v2305, 4
    %v3586 = vadd.s32 %v2312, 4
    %v3587 = vadd.s32 %v2319, 4
    %v3588 = vadd.s32 %v2326, 4
    %v3589 = vadd.s32 %v2333, 4
    %v3590 = vadd.s32 %v2340, 4
    %v3591 = vadd.s32 %v2347, 4
    %v3592 = vadd.s32 %v2354, 4
    %v3593 = vadd.s32 %v2361, 4
    %v3594 = vadd.s32 %v2368, 4
    %v3595 = vadd.s32 %v2375, 4
    %v3596 = vadd.s32 %v2382, 4
    %v3597 = vadd.s32 %v2389, 4
    %v3598 = vadd.s32 %v2396, 4
    %v3599 = vadd.s32 %v2403, 4
    %v3600 = vadd.s32 %v2410, 4
    %v3601 = vadd.s32 %v2417, 4
    %v3602 = vadd.s32 %v2424, 4
    %v3603 = vadd.s32 %v2431, 4
    %v3604 = vadd.s32 %v2438, 4
    %v3605 = vadd.s32 %v2445, 4
    %v3606 = vadd.s32 %v2452, 4
    %v3607 = vadd.s32 %v2459, 4
    %v3608 = vadd.s32 %v2466, 4
    %v3609 = vadd.s32 %v2473, 4
    %v3610 = vadd.s32 %v2480, 4
    %v3611 = vadd.s32 %v2487, 4
    %v3612 = vadd.s32 %v2494, 4
    %v3613 = vadd.s32 %v2501, 4
    %v3614 = vadd.s32 %v2508, 4
    %v3615 = vadd.s32 %v2515, 4
    %v3616 = vadd.s32 %v2522, 4
    %v3617 = vadd.s32 %v2529, 4
    %v3618 = vadd.s32 %v2536, 4
    %v3619 = vadd.s32 %v2543, 4
    %v3620 = vadd.s32 %v2550, 4
    %v3621 = vadd.s32 %v2557, 4
    %v3622 = vadd.s32 %v2564, 4
    %v3623 = vadd.s32 %v2571, 4
    %v3624 = vadd.s32 %v2578, 4
    %v3625 = vadd.s32 %v2585, 4
    %v3626 = vadd.s32 %v2592, 4
    %v3627 = vadd.s32 %v2599, 4
    %v3628 = vadd.s32 %v2606, 4
    %v3629 = vadd.s32 %v2613, 4
    %v3630 = vadd.s32 %v2620, 4
    %v3631 = vadd.s32 %v2627, 4
    %v3632 = vadd.s32 %v2634, 4
    %v3633 = vadd.s32 %v2641, 4
    %v3634 = vadd.s32 %v2648, 4
    %v3635 = vadd.s32 %v2655, 4
    %v3636 = vadd.s32 %v2662, 4
    %v3637 = vadd.s32 %v2669, 4
    %v3638 = vadd.s32 %v2676, 4
    %v3639 = vadd.s32 %v2683, 4
    %v3640 = vadd.s32 %v2690, 4
    %v3641 = vadd.s32 %v2697, 4
    %v3642 = vadd.s32 %v2704, 4
    %v3643 = vadd.s32 %v2711, 4
    %v3644 = vadd.s32 %v2718, 4
    %v3645 = vadd.s32 %v2725, 4
    %v3646 = vadd.s32 %v2732, 4
    %v3647 = vadd.s32 %v2739, 4
    %v3648 = vadd.s32 %v2746, 4
    %v3649 = vadd.s32 %v2753, 4
    %v3650 = vadd.s32 %v2760, 4
    %v3651 = vadd.s32 %v2767, 4
    %v3652 = vadd.s32 %v2774, 4
    %v3653 = vadd.s32 %v2781, 4
    %v3654 = vadd.s32 %v2788, 4
    %v3655 = vadd.s32 %v2795, 4
    %v3656 = vadd.s32 %v2802, 4
    %v3657 = vadd.s32 %v2809, 4
    %v3658 = vadd.s32 %v2816, 4
    %v3659 = vadd.s32 %v2823, 4
    %v3660 = vadd.s32 %v2830, 4
    %v3661 = vadd.s32 %v2837, 4
    %v3662 = vadd.s32 %v2844, 4
    %v3663 = vadd.s32 %v2851, 4
    %v3664 = vadd.s32 %v2858, 4
    %v3665 = vadd.s32 %v2865, 4
    %v3666 = vadd.s32 %v2872, 4
    %v3667 = vadd.s32 %v2879, 4
    %v3668 = vadd.s32 %v2886, 4
    %v3669 = vadd.s32 %v2893, 4
    %v3670 = vadd.s32 %v2900, 4
    %v3671 = vadd.s32 %v2907, 4
    %v3672 = vadd.s32 %v2914, 4
    %v3673 = vadd.s32 %v2921, 4
    %v3674 = vadd.s32 %v2928, 4
    %v3675 = vadd.s32 %v2935, 4
    %v3676 = vadd.s32 %v2942, 4
    %v3677 = vadd.s32 %v2949, 4
    %v3678 = vadd.s32 %v2956, 4
    %v3679 = vadd.s32 %v2963, 4
    %v3680 = vadd.s32 %v2970, 4
    %v3681 = vadd.s32 %v2977, 4
    %v3682 = vadd.s32 %v2984, 4
    %v3683 = vadd.s32 %v2991, 4
    %v3684 = vadd.s32 %v2998, 4
    %v3685 = vadd.s32 %v3005, 4
    %v3686 = vadd.s32 %v3012, 4
    %v3687 = vadd.s32 %v3019, 4
    %v3688 = vadd.s32 %v3026, 4
    %v3689 = vadd.s32 %v3033, 4
    %v3690 = vadd.s32 %v3040, 4
    %v3691 = vadd.s32 %v3047, 4
    %v3692 = vadd.s32 %v3054, 4
    %v3693 = vadd.s32 %v3061, 4
    %v3694 = vadd.s32 %v3068, 4
    %v3695 = vadd.s32 %v3075, 4
    %v3696 = vadd.s32 %v3082, 4
    %v3697 = vadd.s32 %v3089, 4
    %v3698 = vsel %vm3394, %v3546, %v2032
    %v3699 = vsel %vm3395, %v3547, %v2039
    %v3700 = vsel %vm3396, %v3548, %v2046
    %v3701 = vsel %vm3397, %v3549, %v2053
    %v3702 = vsel %vm3398, %v3550, %v2060
    %v3703 = vsel %vm3399, %v3551, %v2067
    %v3704 = vsel %vm3400, %v3552, %v2074
    %v3705 = vsel %vm3401, %v3553, %v2081
    %v3706 = vsel %vm3402, %v3554, %v2088
    %v3707 = vsel %vm3403, %v3555, %v2095
    %v3708 = vsel %vm3404, %v3556, %v2102
    %v3709 = vsel %vm3405, %v3557, %v2109
    %v3710 = vsel %vm3406, %v3558, %v2116
    %v3711 = vsel %vm3407, %v3559, %v2123
    %v3712 = vsel %vm3408, %v3560, %v2130
    %v3713 = vsel %vm3409, %v3561, %v2137
    %v3714 = vsel %vm3410, %v3562, %v2144
    %v3715 = vsel %vm3411, %v3563, %v2151
    %v3716 = vsel %vm3412, %v3564, %v2158
    %v3717 = vsel %vm3413, %v3565, %v2165
    %v3718 = vsel %vm3414, %v3566, %v2172
    %v3719 = vsel %vm3415, %v3567, %v2179
    %v3720 = vsel %vm3416, %v3568, %v2186
    %v3721 = vsel %vm3417, %v3569, %v2193
    %v3722 = vsel %vm3418, %v3570, %v2200
    %v3723 = vsel %vm3419, %v3571, %v2207
    %v3724 = vsel %vm3420, %v3572, %v2214
    %v3725 = vsel %vm3421, %v3573, %v2221
    %v3726 = vsel %vm3422, %v3574, %v2228
    %v3727 = vsel %vm3423, %v3575, %v2235
    %v3728 = vsel %vm3424, %v3576, %v2242
    %v3729 = vsel %vm3425, %v3577, %v2249
    %v3730 = vsel %vm3426, %v3578, %v2256
    %v3731 = vsel %vm3427, %v3579, %v2263
    %v3732 = vsel %vm3428, %v3580, %v2270
    %v3733 = vsel %vm3429, %v3581, %v2277
    %v3734 = vsel %vm3430, %v3582, %v2284
    %v3735 = vsel %vm3431, %v3583, %v2291
    %v3736 = vsel %vm3432, %v3584, %v2298
    %v3737 = vsel %vm3433, %v3585, %v2305
    %v3738 = vsel %vm3434, %v3586, %v2312
    %v3739 = vsel %vm3435, %v3587, %v2319
    %v3740 = vsel %vm3436, %v3588, %v2326
    %v3741 = vsel %vm3437, %v3589, %v2333
    %v3742 = vsel %vm3438, %v3590, %v2340
    %v3743 = vsel %vm3439, %v3591, %v2347
    %v3744 = vsel %vm3440, %v3592, %v2354
    %v3745 = vsel %vm3441, %v3593, %v2361
    %v3746 = vsel %vm3442, %v3594, %v2368
    %v3747 = vsel %vm3443, %v3595, %v2375
    %v3748 = vsel %vm3444, %v3596, %v2382
    %v3749 = vsel %vm3445, %v3597, %v2389
    %v3750 = vsel %vm3446, %v3598, %v2396
    %v3751 = vsel %vm3447, %v3599, %v2403
    %v3752 = vsel %vm3448, %v3600, %v2410
    %v3753 = vsel %vm3449, %v3601, %v2417
    %v3754 = vsel %vm3450, %v3602, %v2424
    %v3755 = vsel %vm3451, %v3603, %v2431
    %v3756 = vsel %vm3452, %v3604, %v2438
    %v3757 = vsel %vm3453, %v3605, %v2445
    %v3758 = vsel %vm3454, %v3606, %v2452
    %v3759 = vsel %vm3455, %v3607, %v2459
    %v3760 = vsel %vm3456, %v3608, %v2466
    %v3761 = vsel %vm3457, %v3609, %v2473
    %v3762 = vsel %vm3458, %v3610, %v2480
    %v3763 = vsel %vm3459, %v3611, %v2487
    %v3764 = vsel %vm3460, %v3612, %v2494
    %v3765 = vsel %vm3461, %v3613, %v2501
    %v3766 = vsel %vm3462, %v3614, %v2508
    %v3767 = vsel %vm3463, %v3615, %v2515
    %v3768 = vsel %vm3464, %v3616, %v2522
    %v3769 = vsel %vm3465, %v3617, %v2529
    %v3770 = vsel %vm3466, %v3618, %v2536
    %v3771 = vsel %vm3467, %v3619, %v2543
    %v3772 = vsel %vm3468, %v3620, %v2550
    %v3773 = vsel %vm3469, %v3621, %v2557
    %v3774 = vsel %vm3470, %v3622, %v2564
    %v3775 = vsel %vm3471, %v3623, %v2571
    %v3776 = vsel %vm3472, %v3624, %v2578
    %v3777 = vsel %vm3473, %v3625, %v2585
    %v3778 = vsel %vm3474, %v3626, %v2592
    %v3779 = vsel %vm3475, %v3627, %v2599
    %v3780 = vsel %vm3476, %v3628, %v2606
    %v3781 = vsel %vm3477, %v3629, %v2613
    %v3782 = vsel %vm3478, %v3630, %v2620
    %v3783 = vsel %vm3479, %v3631, %v2627
    %v3784 = vsel %vm3480, %v3632, %v2634
    %v3785 = vsel %vm3481, %v3633, %v2641
    %v3786 = vsel %vm3482, %v3634, %v2648
    %v3787 = vsel %vm3483, %v3635, %v2655
    %v3788 = vsel %vm3484, %v3636, %v2662
    %v3789 = vsel %vm3485, %v3637, %v2669
    %v3790 = vsel %vm3486, %v3638, %v2676
    %v3791 = vsel %vm3487, %v3639, %v2683
    %v3792 = vsel %vm3488, %v3640, %v2690
    %v3793 = vsel %vm3489, %v3641, %v2697
    %v3794 = vsel %vm3490, %v3642, %v2704
    %v3795 = vsel %vm3491, %v3643, %v2711
    %v3796 = vsel %vm3492, %v3644, %v2718
    %v3797 = vsel %vm3493, %v3645, %v2725
    %v3798 = vsel %vm3494, %v3646, %v2732
    %v3799 = vsel %vm3495, %v3647, %v2739
    %v3800 = vsel %vm3496, %v3648, %v2746
    %v3801 = vsel %vm3497, %v3649, %v2753
    %v3802 = vsel %vm3498, %v3650, %v2760
    %v3803 = vsel %vm3499, %v3651, %v2767
    %v3804 = vsel %vm3500, %v3652, %v2774
    %v3805 = vsel %vm3501, %v3653, %v2781
    %v3806 = vsel %vm3502, %v3654, %v2788
    %v3807 = vsel %vm3503, %v3655, %v2795
    %v3808 = vsel %vm3504, %v3656, %v2802
    %v3809 = vsel %vm3505, %v3657, %v2809
    %v3810 = vsel %vm3506, %v3658, %v2816
    %v3811 = vsel %vm3507, %v3659, %v2823
    %v3812 = vsel %vm3508, %v3660, %v2830
    %v3813 = vsel %vm3509, %v3661, %v2837
    %v3814 = vsel %vm3510, %v3662, %v2844
    %v3815 = vsel %vm3511, %v3663, %v2851
    %v3816 = vsel %vm3512, %v3664, %v2858
    %v3817 = vsel %vm3513, %v3665, %v2865
    %v3818 = vsel %vm3514, %v3666, %v2872
    %v3819 = vsel %vm3515, %v3667, %v2879
    %v3820 = vsel %vm3516, %v3668, %v2886
    %v3821 = vsel %vm3517, %v3669, %v2893
    %v3822 = vsel %vm3518, %v3670, %v2900
    %v3823 = vsel %vm3519, %v3671, %v2907
    %v3824 = vsel %vm3520, %v3672, %v2914
    %v3825 = vsel %vm3521, %v3673, %v2921
    %v3826 = vsel %vm3522, %v3674, %v2928
    %v3827 = vsel %vm3523, %v3675, %v2935
    %v3828 = vsel %vm3524, %v3676, %v2942
    %v3829 = vsel %vm3525, %v3677, %v2949
    %v3830 = vsel %vm3526, %v3678, %v2956
    %v3831 = vsel %vm3527, %v3679, %v2963
    %v3832 = vsel %vm3528, %v3680, %v2970
    %v3833 = vsel %vm3529, %v3681, %v2977
    %v3834 = vsel %vm3530, %v3682, %v2984
    %v3835 = vsel %vm3531, %v3683, %v2991
    %v3836 = vsel %vm3532, %v3684, %v2998
    %v3837 = vsel %vm3533, %v3685, %v3005
    %v3838 = vsel %vm3534, %v3686, %v3012
    %v3839 = vsel %vm3535, %v3687, %v3019
    %v3840 = vsel %vm3536, %v3688, %v3026
    %v3841 = vsel %vm3537, %v3689, %v3033
    %v3842 = vsel %vm3538, %v3690, %v3040
    %v3843 = vsel %vm3539, %v3691, %v3047
    %v3844 = vsel %vm3540, %v3692, %v3054
    %v3845 = vsel %vm3541, %v3693, %v3061
    %v3846 = vsel %vm3542, %v3694, %v3068
    %v3847 = vsel %vm3543, %v3695, %v3075
    %v3848 = vsel %vm3544, %v3696, %v3082
    %v3849 = vsel %vm3545, %v3697, %v3089
    %v3850 = vlaneseq
    %v3851 = vand.u32 %v3850, 127
    %vm3852 = vcmp.eq.s32.totalorder %v3698, %v3851
    %vm3853 = vcmp.eq.s32.totalorder %v3699, %v3851
    %vm3854 = vcmp.eq.s32.totalorder %v3700, %v3851
    %vm3855 = vcmp.eq.s32.totalorder %v3701, %v3851
    %vm3856 = vcmp.eq.s32.totalorder %v3702, %v3851
    %vm3857 = vcmp.eq.s32.totalorder %v3703, %v3851
    %vm3858 = vcmp.eq.s32.totalorder %v3704, %v3851
    %vm3859 = vcmp.eq.s32.totalorder %v3705, %v3851
    %vm3860 = vcmp.eq.s32.totalorder %v3706, %v3851
    %vm3861 = vcmp.eq.s32.totalorder %v3707, %v3851
    %vm3862 = vcmp.eq.s32.totalorder %v3708, %v3851
    %vm3863 = vcmp.eq.s32.totalorder %v3709, %v3851
    %vm3864 = vcmp.eq.s32.totalorder %v3710, %v3851
    %vm3865 = vcmp.eq.s32.totalorder %v3711, %v3851
    %vm3866 = vcmp.eq.s32.totalorder %v3712, %v3851
    %vm3867 = vcmp.eq.s32.totalorder %v3713, %v3851
    %vm3868 = vcmp.eq.s32.totalorder %v3714, %v3851
    %vm3869 = vcmp.eq.s32.totalorder %v3715, %v3851
    %vm3870 = vcmp.eq.s32.totalorder %v3716, %v3851
    %vm3871 = vcmp.eq.s32.totalorder %v3717, %v3851
    %vm3872 = vcmp.eq.s32.totalorder %v3718, %v3851
    %vm3873 = vcmp.eq.s32.totalorder %v3719, %v3851
    %vm3874 = vcmp.eq.s32.totalorder %v3720, %v3851
    %vm3875 = vcmp.eq.s32.totalorder %v3721, %v3851
    %vm3876 = vcmp.eq.s32.totalorder %v3722, %v3851
    %vm3877 = vcmp.eq.s32.totalorder %v3723, %v3851
    %vm3878 = vcmp.eq.s32.totalorder %v3724, %v3851
    %vm3879 = vcmp.eq.s32.totalorder %v3725, %v3851
    %vm3880 = vcmp.eq.s32.totalorder %v3726, %v3851
    %vm3881 = vcmp.eq.s32.totalorder %v3727, %v3851
    %vm3882 = vcmp.eq.s32.totalorder %v3728, %v3851
    %vm3883 = vcmp.eq.s32.totalorder %v3729, %v3851
    %vm3884 = vcmp.eq.s32.totalorder %v3730, %v3851
    %vm3885 = vcmp.eq.s32.totalorder %v3731, %v3851
    %vm3886 = vcmp.eq.s32.totalorder %v3732, %v3851
    %vm3887 = vcmp.eq.s32.totalorder %v3733, %v3851
    %vm3888 = vcmp.eq.s32.totalorder %v3734, %v3851
    %vm3889 = vcmp.eq.s32.totalorder %v3735, %v3851
    %vm3890 = vcmp.eq.s32.totalorder %v3736, %v3851
    %vm3891 = vcmp.eq.s32.totalorder %v3737, %v3851
    %vm3892 = vcmp.eq.s32.totalorder %v3738, %v3851
    %vm3893 = vcmp.eq.s32.totalorder %v3739, %v3851
    %vm3894 = vcmp.eq.s32.totalorder %v3740, %v3851
    %vm3895 = vcmp.eq.s32.totalorder %v3741, %v3851
    %vm3896 = vcmp.eq.s32.totalorder %v3742, %v3851
    %vm3897 = vcmp.eq.s32.totalorder %v3743, %v3851
    %vm3898 = vcmp.eq.s32.totalorder %v3744, %v3851
    %vm3899 = vcmp.eq.s32.totalorder %v3745, %v3851
    %vm3900 = vcmp.eq.s32.totalorder %v3746, %v3851
    %vm3901 = vcmp.eq.s32.totalorder %v3747, %v3851
    %vm3902 = vcmp.eq.s32.totalorder %v3748, %v3851
    %vm3903 = vcmp.eq.s32.totalorder %v3749, %v3851
    %vm3904 = vcmp.eq.s32.totalorder %v3750, %v3851
    %vm3905 = vcmp.eq.s32.totalorder %v3751, %v3851
    %vm3906 = vcmp.eq.s32.totalorder %v3752, %v3851
    %vm3907 = vcmp.eq.s32.totalorder %v3753, %v3851
    %vm3908 = vcmp.eq.s32.totalorder %v3754, %v3851
    %vm3909 = vcmp.eq.s32.totalorder %v3755, %v3851
    %vm3910 = vcmp.eq.s32.totalorder %v3756, %v3851
    %vm3911 = vcmp.eq.s32.totalorder %v3757, %v3851
    %vm3912 = vcmp.eq.s32.totalorder %v3758, %v3851
    %vm3913 = vcmp.eq.s32.totalorder %v3759, %v3851
    %vm3914 = vcmp.eq.s32.totalorder %v3760, %v3851
    %vm3915 = vcmp.eq.s32.totalorder %v3761, %v3851
    %vm3916 = vcmp.eq.s32.totalorder %v3762, %v3851
    %vm3917 = vcmp.eq.s32.totalorder %v3763, %v3851
    %vm3918 = vcmp.eq.s32.totalorder %v3764, %v3851
    %vm3919 = vcmp.eq.s32.totalorder %v3765, %v3851
    %vm3920 = vcmp.eq.s32.totalorder %v3766, %v3851
    %vm3921 = vcmp.eq.s32.totalorder %v3767, %v3851
    %vm3922 = vcmp.eq.s32.totalorder %v3768, %v3851
    %vm3923 = vcmp.eq.s32.totalorder %v3769, %v3851
    %vm3924 = vcmp.eq.s32.totalorder %v3770, %v3851
    %vm3925 = vcmp.eq.s32.totalorder %v3771, %v3851
    %vm3926 = vcmp.eq.s32.totalorder %v3772, %v3851
    %vm3927 = vcmp.eq.s32.totalorder %v3773, %v3851
    %vm3928 = vcmp.eq.s32.totalorder %v3774, %v3851
    %vm3929 = vcmp.eq.s32.totalorder %v3775, %v3851
    %vm3930 = vcmp.eq.s32.totalorder %v3776, %v3851
    %vm3931 = vcmp.eq.s32.totalorder %v3777, %v3851
    %vm3932 = vcmp.eq.s32.totalorder %v3778, %v3851
    %vm3933 = vcmp.eq.s32.totalorder %v3779, %v3851
    %vm3934 = vcmp.eq.s32.totalorder %v3780, %v3851
    %vm3935 = vcmp.eq.s32.totalorder %v3781, %v3851
    %vm3936 = vcmp.eq.s32.totalorder %v3782, %v3851
    %vm3937 = vcmp.eq.s32.totalorder %v3783, %v3851
    %vm3938 = vcmp.eq.s32.totalorder %v3784, %v3851
    %vm3939 = vcmp.eq.s32.totalorder %v3785, %v3851
    %vm3940 = vcmp.eq.s32.totalorder %v3786, %v3851
    %vm3941 = vcmp.eq.s32.totalorder %v3787, %v3851
    %vm3942 = vcmp.eq.s32.totalorder %v3788, %v3851
    %vm3943 = vcmp.eq.s32.totalorder %v3789, %v3851
    %vm3944 = vcmp.eq.s32.totalorder %v3790, %v3851
    %vm3945 = vcmp.eq.s32.totalorder %v3791, %v3851
    %vm3946 = vcmp.eq.s32.totalorder %v3792, %v3851
    %vm3947 = vcmp.eq.s32.totalorder %v3793, %v3851
    %vm3948 = vcmp.eq.s32.totalorder %v3794, %v3851
    %vm3949 = vcmp.eq.s32.totalorder %v3795, %v3851
    %vm3950 = vcmp.eq.s32.totalorder %v3796, %v3851
    %vm3951 = vcmp.eq.s32.totalorder %v3797, %v3851
    %vm3952 = vcmp.eq.s32.totalorder %v3798, %v3851
    %vm3953 = vcmp.eq.s32.totalorder %v3799, %v3851
    %vm3954 = vcmp.eq.s32.totalorder %v3800, %v3851
    %vm3955 = vcmp.eq.s32.totalorder %v3801, %v3851
    %vm3956 = vcmp.eq.s32.totalorder %v3802, %v3851
    %vm3957 = vcmp.eq.s32.totalorder %v3803, %v3851
    %vm3958 = vcmp.eq.s32.totalorder %v3804, %v3851
    %vm3959 = vcmp.eq.s32.totalorder %v3805, %v3851
    %vm3960 = vcmp.eq.s32.totalorder %v3806, %v3851
    %vm3961 = vcmp.eq.s32.totalorder %v3807, %v3851
    %vm3962 = vcmp.eq.s32.totalorder %v3808, %v3851
    %vm3963 = vcmp.eq.s32.totalorder %v3809, %v3851
    %vm3964 = vcmp.eq.s32.totalorder %v3810, %v3851
    %vm3965 = vcmp.eq.s32.totalorder %v3811, %v3851
    %vm3966 = vcmp.eq.s32.totalorder %v3812, %v3851
    %vm3967 = vcmp.eq.s32.totalorder %v3813, %v3851
    %vm3968 = vcmp.eq.s32.totalorder %v3814, %v3851
    %vm3969 = vcmp.eq.s32.totalorder %v3815, %v3851
    %vm3970 = vcmp.eq.s32.totalorder %v3816, %v3851
    %vm3971 = vcmp.eq.s32.totalorder %v3817, %v3851
    %vm3972 = vcmp.eq.s32.totalorder %v3818, %v3851
    %vm3973 = vcmp.eq.s32.totalorder %v3819, %v3851
    %vm3974 = vcmp.eq.s32.totalorder %v3820, %v3851
    %vm3975 = vcmp.eq.s32.totalorder %v3821, %v3851
    %vm3976 = vcmp.eq.s32.totalorder %v3822, %v3851
    %vm3977 = vcmp.eq.s32.totalorder %v3823, %v3851
    %vm3978 = vcmp.eq.s32.totalorder %v3824, %v3851
    %vm3979 = vcmp.eq.s32.totalorder %v3825, %v3851
    %vm3980 = vcmp.eq.s32.totalorder %v3826, %v3851
    %vm3981 = vcmp.eq.s32.totalorder %v3827, %v3851
    %vm3982 = vcmp.eq.s32.totalorder %v3828, %v3851
    %vm3983 = vcmp.eq.s32.totalorder %v3829, %v3851
    %vm3984 = vcmp.eq.s32.totalorder %v3830, %v3851
    %vm3985 = vcmp.eq.s32.totalorder %v3831, %v3851
    %vm3986 = vcmp.eq.s32.totalorder %v3832, %v3851
    %vm3987 = vcmp.eq.s32.totalorder %v3833, %v3851
    %vm3988 = vcmp.eq.s32.totalorder %v3834, %v3851
    %vm3989 = vcmp.eq.s32.totalorder %v3835, %v3851
    %vm3990 = vcmp.eq.s32.totalorder %v3836, %v3851
    %vm3991 = vcmp.eq.s32.totalorder %v3837, %v3851
    %vm3992 = vcmp.eq.s32.totalorder %v3838, %v3851
    %vm3993 = vcmp.eq.s32.totalorder %v3839, %v3851
    %vm3994 = vcmp.eq.s32.totalorder %v3840, %v3851
    %vm3995 = vcmp.eq.s32.totalorder %v3841, %v3851
    %vm3996 = vcmp.eq.s32.totalorder %v3842, %v3851
    %vm3997 = vcmp.eq.s32.totalorder %v3843, %v3851
    %vm3998 = vcmp.eq.s32.totalorder %v3844, %v3851
    %vm3999 = vcmp.eq.s32.totalorder %v3845, %v3851
    %vm4000 = vcmp.eq.s32.totalorder %v3846, %v3851
    %vm4001 = vcmp.eq.s32.totalorder %v3847, %v3851
    %vm4002 = vcmp.eq.s32.totalorder %v3848, %v3851
    %vm4003 = vcmp.eq.s32.totalorder %v3849, %v3851
    %v4004 = vsel %vm1874, 1, 0
    %v4005 = vsel %vm1875, 1, 0
    %v4006 = vsel %vm1876, 1, 0
    %v4007 = vsel %vm1877, 1, 0
    %v4008 = vsel %vm1878, 1, 0
    %v4009 = vsel %vm1879, 1, 0
    %v4010 = vsel %vm1880, 1, 0
    %v4011 = vsel %vm1881, 1, 0
    %v4012 = vsel %vm1882, 1, 0
    %v4013 = vsel %vm1883, 1, 0
    %v4014 = vsel %vm1884, 1, 0
    %v4015 = vsel %vm1885, 1, 0
    %v4016 = vsel %vm1886, 1, 0
    %v4017 = vsel %vm1887, 1, 0
    %v4018 = vsel %vm1888, 1, 0
    %v4019 = vsel %vm1889, 1, 0
    %v4020 = vsel %vm1890, 1, 0
    %v4021 = vsel %vm1891, 1, 0
    %v4022 = vsel %vm1892, 1, 0
    %v4023 = vsel %vm1893, 1, 0
    %v4024 = vsel %vm1894, 1, 0
    %v4025 = vsel %vm1895, 1, 0
    %v4026 = vsel %vm1896, 1, 0
    %v4027 = vsel %vm1897, 1, 0
    %v4028 = vsel %vm1898, 1, 0
    %v4029 = vsel %vm1899, 1, 0
    %v4030 = vsel %vm1900, 1, 0
    %v4031 = vsel %vm1901, 1, 0
    %v4032 = vsel %vm1902, 1, 0
    %v4033 = vsel %vm1903, 1, 0
    %v4034 = vsel %vm1904, 1, 0
    %v4035 = vsel %vm1905, 1, 0
    %v4036 = vsel %vm1906, 1, 0
    %v4037 = vsel %vm1907, 1, 0
    %v4038 = vsel %vm1908, 1, 0
    %v4039 = vsel %vm1909, 1, 0
    %v4040 = vsel %vm1910, 1, 0
    %v4041 = vsel %vm1911, 1, 0
    %v4042 = vsel %vm1912, 1, 0
    %v4043 = vsel %vm1913, 1, 0
    %v4044 = vsel %vm1914, 1, 0
    %v4045 = vsel %vm1915, 1, 0
    %v4046 = vsel %vm1916, 1, 0
    %v4047 = vsel %vm1917, 1, 0
    %v4048 = vsel %vm1918, 1, 0
    %v4049 = vsel %vm1919, 1, 0
    %v4050 = vsel %vm1920, 1, 0
    %v4051 = vsel %vm1921, 1, 0
    %v4052 = vsel %vm1922, 1, 0
    %v4053 = vsel %vm1923, 1, 0
    %v4054 = vsel %vm1924, 1, 0
    %v4055 = vsel %vm1925, 1, 0
    %v4056 = vsel %vm1926, 1, 0
    %v4057 = vsel %vm1927, 1, 0
    %v4058 = vsel %vm1928, 1, 0
    %v4059 = vsel %vm1929, 1, 0
    %v4060 = vsel %vm1930, 1, 0
    %v4061 = vsel %vm1931, 1, 0
    %v4062 = vsel %vm1932, 1, 0
    %v4063 = vsel %vm1933, 1, 0
    %v4064 = vsel %vm1934, 1, 0
    %v4065 = vsel %vm1935, 1, 0
    %v4066 = vsel %vm1936, 1, 0
    %v4067 = vsel %vm1937, 1, 0
    %v4068 = vsel %vm1938, 1, 0
    %v4069 = vsel %vm1939, 1, 0
    %v4070 = vsel %vm1940, 1, 0
    %v4071 = vsel %vm1941, 1, 0
    %v4072 = vsel %vm1942, 1, 0
    %v4073 = vsel %vm1943, 1, 0
    %v4074 = vsel %vm1944, 1, 0
    %v4075 = vsel %vm1945, 1, 0
    %v4076 = vsel %vm1946, 1, 0
    %v4077 = vsel %vm1947, 1, 0
    %v4078 = vsel %vm1948, 1, 0
    %v4079 = vsel %vm1949, 1, 0
    %v4080 = vsel %vm1950, 1, 0
    %v4081 = vsel %vm1951, 1, 0
    %v4082 = vsel %vm1952, 1, 0
    %v4083 = vsel %vm1953, 1, 0
    %v4084 = vsel %vm1954, 1, 0
    %v4085 = vsel %vm1955, 1, 0
    %v4086 = vsel %vm1956, 1, 0
    %v4087 = vsel %vm1957, 1, 0
    %v4088 = vsel %vm1958, 1, 0
    %v4089 = vsel %vm1959, 1, 0
    %v4090 = vsel %vm1960, 1, 0
    %v4091 = vsel %vm1961, 1, 0
    %v4092 = vsel %vm1962, 1, 0
    %v4093 = vsel %vm1963, 1, 0
    %v4094 = vsel %vm1964, 1, 0
    %v4095 = vsel %vm1965, 1, 0
    %v4096 = vsel %vm1966, 1, 0
    %v4097 = vsel %vm1967, 1, 0
    %v4098 = vsel %vm1968, 1, 0
    %v4099 = vsel %vm1969, 1, 0
    %v4100 = vsel %vm1970, 1, 0
    %v4101 = vsel %vm1971, 1, 0
    %v4102 = vsel %vm1972, 1, 0
    %v4103 = vsel %vm1973, 1, 0
    %v4104 = vsel %vm1974, 1, 0
    %v4105 = vsel %vm1975, 1, 0
    %v4106 = vsel %vm1976, 1, 0
    %v4107 = vsel %vm1977, 1, 0
    %v4108 = vsel %vm1978, 1, 0
    %v4109 = vsel %vm1979, 1, 0
    %v4110 = vsel %vm1980, 1, 0
    %v4111 = vsel %vm1981, 1, 0
    %v4112 = vsel %vm1982, 1, 0
    %v4113 = vsel %vm1983, 1, 0
    %v4114 = vsel %vm1984, 1, 0
    %v4115 = vsel %vm1985, 1, 0
    %v4116 = vsel %vm1986, 1, 0
    %v4117 = vsel %vm1987, 1, 0
    %v4118 = vsel %vm1988, 1, 0
    %v4119 = vsel %vm1989, 1, 0
    %v4120 = vsel %vm1990, 1, 0
    %v4121 = vsel %vm1991, 1, 0
    %v4122 = vsel %vm1992, 1, 0
    %v4123 = vsel %vm1993, 1, 0
    %v4124 = vsel %vm1994, 1, 0
    %v4125 = vsel %vm1995, 1, 0
    %v4126 = vsel %vm1996, 1, 0
    %v4127 = vsel %vm1997, 1, 0
    %v4128 = vsel %vm1998, 1, 0
    %v4129 = vsel %vm1999, 1, 0
    %v4130 = vsel %vm2000, 1, 0
    %v4131 = vsel %vm2001, 1, 0
    %v4132 = vsel %vm2002, 1, 0
    %v4133 = vsel %vm2003, 1, 0
    %v4134 = vsel %vm2004, 1, 0
    %v4135 = vsel %vm2005, 1, 0
    %v4136 = vsel %vm2006, 1, 0
    %v4137 = vsel %vm2007, 1, 0
    %v4138 = vsel %vm2008, 1, 0
    %v4139 = vsel %vm2009, 1, 0
    %v4140 = vsel %vm2010, 1, 0
    %v4141 = vsel %vm2011, 1, 0
    %v4142 = vsel %vm2012, 1, 0
    %v4143 = vsel %vm2013, 1, 0
    %v4144 = vsel %vm2014, 1, 0
    %v4145 = vsel %vm2015, 1, 0
    %v4146 = vsel %vm2016, 1, 0
    %v4147 = vsel %vm2017, 1, 0
    %v4148 = vsel %vm2018, 1, 0
    %v4149 = vsel %vm2019, 1, 0
    %v4150 = vsel %vm2020, 1, 0
    %v4151 = vsel %vm2021, 1, 0
    %v4152 = vsel %vm2022, 1, 0
    %v4153 = vsel %vm2023, 1, 0
    %v4154 = vsel %vm2024, 1, 0
    %v4155 = vsel %vm2025, 1, 0
    %vm4156 = vcmp.eq.s32.totalorder %v4004, 1
    %vm4157 = vcmp.eq.s32.totalorder %v4005, 1
    %vm4158 = vcmp.eq.s32.totalorder %v4006, 1
    %vm4159 = vcmp.eq.s32.totalorder %v4007, 1
    %vm4160 = vcmp.eq.s32.totalorder %v4008, 1
    %vm4161 = vcmp.eq.s32.totalorder %v4009, 1
    %vm4162 = vcmp.eq.s32.totalorder %v4010, 1
    %vm4163 = vcmp.eq.s32.totalorder %v4011, 1
    %vm4164 = vcmp.eq.s32.totalorder %v4012, 1
    %vm4165 = vcmp.eq.s32.totalorder %v4013, 1
    %vm4166 = vcmp.eq.s32.totalorder %v4014, 1
    %vm4167 = vcmp.eq.s32.totalorder %v4015, 1
    %vm4168 = vcmp.eq.s32.totalorder %v4016, 1
    %vm4169 = vcmp.eq.s32.totalorder %v4017, 1
    %vm4170 = vcmp.eq.s32.totalorder %v4018, 1
    %vm4171 = vcmp.eq.s32.totalorder %v4019, 1
    %vm4172 = vcmp.eq.s32.totalorder %v4020, 1
    %vm4173 = vcmp.eq.s32.totalorder %v4021, 1
    %vm4174 = vcmp.eq.s32.totalorder %v4022, 1
    %vm4175 = vcmp.eq.s32.totalorder %v4023, 1
    %vm4176 = vcmp.eq.s32.totalorder %v4024, 1
    %vm4177 = vcmp.eq.s32.totalorder %v4025, 1
    %vm4178 = vcmp.eq.s32.totalorder %v4026, 1
    %vm4179 = vcmp.eq.s32.totalorder %v4027, 1
    %vm4180 = vcmp.eq.s32.totalorder %v4028, 1
    %vm4181 = vcmp.eq.s32.totalorder %v4029, 1
    %vm4182 = vcmp.eq.s32.totalorder %v4030, 1
    %vm4183 = vcmp.eq.s32.totalorder %v4031, 1
    %vm4184 = vcmp.eq.s32.totalorder %v4032, 1
    %vm4185 = vcmp.eq.s32.totalorder %v4033, 1
    %vm4186 = vcmp.eq.s32.totalorder %v4034, 1
    %vm4187 = vcmp.eq.s32.totalorder %v4035, 1
    %vm4188 = vcmp.eq.s32.totalorder %v4036, 1
    %vm4189 = vcmp.eq.s32.totalorder %v4037, 1
    %vm4190 = vcmp.eq.s32.totalorder %v4038, 1
    %vm4191 = vcmp.eq.s32.totalorder %v4039, 1
    %vm4192 = vcmp.eq.s32.totalorder %v4040, 1
    %vm4193 = vcmp.eq.s32.totalorder %v4041, 1
    %vm4194 = vcmp.eq.s32.totalorder %v4042, 1
    %vm4195 = vcmp.eq.s32.totalorder %v4043, 1
    %vm4196 = vcmp.eq.s32.totalorder %v4044, 1
    %vm4197 = vcmp.eq.s32.totalorder %v4045, 1
    %vm4198 = vcmp.eq.s32.totalorder %v4046, 1
    %vm4199 = vcmp.eq.s32.totalorder %v4047, 1
    %vm4200 = vcmp.eq.s32.totalorder %v4048, 1
    %vm4201 = vcmp.eq.s32.totalorder %v4049, 1
    %vm4202 = vcmp.eq.s32.totalorder %v4050, 1
    %vm4203 = vcmp.eq.s32.totalorder %v4051, 1
    %vm4204 = vcmp.eq.s32.totalorder %v4052, 1
    %vm4205 = vcmp.eq.s32.totalorder %v4053, 1
    %vm4206 = vcmp.eq.s32.totalorder %v4054, 1
    %vm4207 = vcmp.eq.s32.totalorder %v4055, 1
    %vm4208 = vcmp.eq.s32.totalorder %v4056, 1
    %vm4209 = vcmp.eq.s32.totalorder %v4057, 1
    %vm4210 = vcmp.eq.s32.totalorder %v4058, 1
    %vm4211 = vcmp.eq.s32.totalorder %v4059, 1
    %vm4212 = vcmp.eq.s32.totalorder %v4060, 1
    %vm4213 = vcmp.eq.s32.totalorder %v4061, 1
    %vm4214 = vcmp.eq.s32.totalorder %v4062, 1
    %vm4215 = vcmp.eq.s32.totalorder %v4063, 1
    %vm4216 = vcmp.eq.s32.totalorder %v4064, 1
    %vm4217 = vcmp.eq.s32.totalorder %v4065, 1
    %vm4218 = vcmp.eq.s32.totalorder %v4066, 1
    %vm4219 = vcmp.eq.s32.totalorder %v4067, 1
    %vm4220 = vcmp.eq.s32.totalorder %v4068, 1
    %vm4221 = vcmp.eq.s32.totalorder %v4069, 1
    %vm4222 = vcmp.eq.s32.totalorder %v4070, 1
    %vm4223 = vcmp.eq.s32.totalorder %v4071, 1
    %vm4224 = vcmp.eq.s32.totalorder %v4072, 1
    %vm4225 = vcmp.eq.s32.totalorder %v4073, 1
    %vm4226 = vcmp.eq.s32.totalorder %v4074, 1
    %vm4227 = vcmp.eq.s32.totalorder %v4075, 1
    %vm4228 = vcmp.eq.s32.totalorder %v4076, 1
    %vm4229 = vcmp.eq.s32.totalorder %v4077, 1
    %vm4230 = vcmp.eq.s32.totalorder %v4078, 1
    %vm4231 = vcmp.eq.s32.totalorder %v4079, 1
    %vm4232 = vcmp.eq.s32.totalorder %v4080, 1
    %vm4233 = vcmp.eq.s32.totalorder %v4081, 1
    %vm4234 = vcmp.eq.s32.totalorder %v4082, 1
    %vm4235 = vcmp.eq.s32.totalorder %v4083, 1
    %vm4236 = vcmp.eq.s32.totalorder %v4084, 1
    %vm4237 = vcmp.eq.s32.totalorder %v4085, 1
    %vm4238 = vcmp.eq.s32.totalorder %v4086, 1
    %vm4239 = vcmp.eq.s32.totalorder %v4087, 1
    %vm4240 = vcmp.eq.s32.totalorder %v4088, 1
    %vm4241 = vcmp.eq.s32.totalorder %v4089, 1
    %vm4242 = vcmp.eq.s32.totalorder %v4090, 1
    %vm4243 = vcmp.eq.s32.totalorder %v4091, 1
    %vm4244 = vcmp.eq.s32.totalorder %v4092, 1
    %vm4245 = vcmp.eq.s32.totalorder %v4093, 1
    %vm4246 = vcmp.eq.s32.totalorder %v4094, 1
    %vm4247 = vcmp.eq.s32.totalorder %v4095, 1
    %vm4248 = vcmp.eq.s32.totalorder %v4096, 1
    %vm4249 = vcmp.eq.s32.totalorder %v4097, 1
    %vm4250 = vcmp.eq.s32.totalorder %v4098, 1
    %vm4251 = vcmp.eq.s32.totalorder %v4099, 1
    %vm4252 = vcmp.eq.s32.totalorder %v4100, 1
    %vm4253 = vcmp.eq.s32.totalorder %v4101, 1
    %vm4254 = vcmp.eq.s32.totalorder %v4102, 1
    %vm4255 = vcmp.eq.s32.totalorder %v4103, 1
    %vm4256 = vcmp.eq.s32.totalorder %v4104, 1
    %vm4257 = vcmp.eq.s32.totalorder %v4105, 1
    %vm4258 = vcmp.eq.s32.totalorder %v4106, 1
    %vm4259 = vcmp.eq.s32.totalorder %v4107, 1
    %vm4260 = vcmp.eq.s32.totalorder %v4108, 1
    %vm4261 = vcmp.eq.s32.totalorder %v4109, 1
    %vm4262 = vcmp.eq.s32.totalorder %v4110, 1
    %vm4263 = vcmp.eq.s32.totalorder %v4111, 1
    %vm4264 = vcmp.eq.s32.totalorder %v4112, 1
    %vm4265 = vcmp.eq.s32.totalorder %v4113, 1
    %vm4266 = vcmp.eq.s32.totalorder %v4114, 1
    %vm4267 = vcmp.eq.s32.totalorder %v4115, 1
    %vm4268 = vcmp.eq.s32.totalorder %v4116, 1
    %vm4269 = vcmp.eq.s32.totalorder %v4117, 1
    %vm4270 = vcmp.eq.s32.totalorder %v4118, 1
    %vm4271 = vcmp.eq.s32.totalorder %v4119, 1
    %vm4272 = vcmp.eq.s32.totalorder %v4120, 1
    %vm4273 = vcmp.eq.s32.totalorder %v4121, 1
    %vm4274 = vcmp.eq.s32.totalorder %v4122, 1
    %vm4275 = vcmp.eq.s32.totalorder %v4123, 1
    %vm4276 = vcmp.eq.s32.totalorder %v4124, 1
    %vm4277 = vcmp.eq.s32.totalorder %v4125, 1
    %vm4278 = vcmp.eq.s32.totalorder %v4126, 1
    %vm4279 = vcmp.eq.s32.totalorder %v4127, 1
    %vm4280 = vcmp.eq.s32.totalorder %v4128, 1
    %vm4281 = vcmp.eq.s32.totalorder %v4129, 1
    %vm4282 = vcmp.eq.s32.totalorder %v4130, 1
    %vm4283 = vcmp.eq.s32.totalorder %v4131, 1
    %vm4284 = vcmp.eq.s32.totalorder %v4132, 1
    %vm4285 = vcmp.eq.s32.totalorder %v4133, 1
    %vm4286 = vcmp.eq.s32.totalorder %v4134, 1
    %vm4287 = vcmp.eq.s32.totalorder %v4135, 1
    %vm4288 = vcmp.eq.s32.totalorder %v4136, 1
    %vm4289 = vcmp.eq.s32.totalorder %v4137, 1
    %vm4290 = vcmp.eq.s32.totalorder %v4138, 1
    %vm4291 = vcmp.eq.s32.totalorder %v4139, 1
    %vm4292 = vcmp.eq.s32.totalorder %v4140, 1
    %vm4293 = vcmp.eq.s32.totalorder %v4141, 1
    %vm4294 = vcmp.eq.s32.totalorder %v4142, 1
    %vm4295 = vcmp.eq.s32.totalorder %v4143, 1
    %vm4296 = vcmp.eq.s32.totalorder %v4144, 1
    %vm4297 = vcmp.eq.s32.totalorder %v4145, 1
    %vm4298 = vcmp.eq.s32.totalorder %v4146, 1
    %vm4299 = vcmp.eq.s32.totalorder %v4147, 1
    %vm4300 = vcmp.eq.s32.totalorder %v4148, 1
    %vm4301 = vcmp.eq.s32.totalorder %v4149, 1
    %vm4302 = vcmp.eq.s32.totalorder %v4150, 1
    %vm4303 = vcmp.eq.s32.totalorder %v4151, 1
    %vm4304 = vcmp.eq.s32.totalorder %v4152, 1
    %vm4305 = vcmp.eq.s32.totalorder %v4153, 1
    %vm4306 = vcmp.eq.s32.totalorder %v4154, 1
    %vm4307 = vcmp.eq.s32.totalorder %v4155, 1
    %vm4308 = vmand %vm4156, %vm3852
    %vm4309 = vmand %vm4157, %vm3853
    %vm4310 = vmand %vm4158, %vm3854
    %vm4311 = vmand %vm4159, %vm3855
    %vm4312 = vmand %vm4160, %vm3856
    %vm4313 = vmand %vm4161, %vm3857
    %vm4314 = vmand %vm4162, %vm3858
    %vm4315 = vmand %vm4163, %vm3859
    %vm4316 = vmand %vm4164, %vm3860
    %vm4317 = vmand %vm4165, %vm3861
    %vm4318 = vmand %vm4166, %vm3862
    %vm4319 = vmand %vm4167, %vm3863
    %vm4320 = vmand %vm4168, %vm3864
    %vm4321 = vmand %vm4169, %vm3865
    %vm4322 = vmand %vm4170, %vm3866
    %vm4323 = vmand %vm4171, %vm3867
    %vm4324 = vmand %vm4172, %vm3868
    %vm4325 = vmand %vm4173, %vm3869
    %vm4326 = vmand %vm4174, %vm3870
    %vm4327 = vmand %vm4175, %vm3871
    %vm4328 = vmand %vm4176, %vm3872
    %vm4329 = vmand %vm4177, %vm3873
    %vm4330 = vmand %vm4178, %vm3874
    %vm4331 = vmand %vm4179, %vm3875
    %vm4332 = vmand %vm4180, %vm3876
    %vm4333 = vmand %vm4181, %vm3877
    %vm4334 = vmand %vm4182, %vm3878
    %vm4335 = vmand %vm4183, %vm3879
    %vm4336 = vmand %vm4184, %vm3880
    %vm4337 = vmand %vm4185, %vm3881
    %vm4338 = vmand %vm4186, %vm3882
    %vm4339 = vmand %vm4187, %vm3883
    %vm4340 = vmand %vm4188, %vm3884
    %vm4341 = vmand %vm4189, %vm3885
    %vm4342 = vmand %vm4190, %vm3886
    %vm4343 = vmand %vm4191, %vm3887
    %vm4344 = vmand %vm4192, %vm3888
    %vm4345 = vmand %vm4193, %vm3889
    %vm4346 = vmand %vm4194, %vm3890
    %vm4347 = vmand %vm4195, %vm3891
    %vm4348 = vmand %vm4196, %vm3892
    %vm4349 = vmand %vm4197, %vm3893
    %vm4350 = vmand %vm4198, %vm3894
    %vm4351 = vmand %vm4199, %vm3895
    %vm4352 = vmand %vm4200, %vm3896
    %vm4353 = vmand %vm4201, %vm3897
    %vm4354 = vmand %vm4202, %vm3898
    %vm4355 = vmand %vm4203, %vm3899
    %vm4356 = vmand %vm4204, %vm3900
    %vm4357 = vmand %vm4205, %vm3901
    %vm4358 = vmand %vm4206, %vm3902
    %vm4359 = vmand %vm4207, %vm3903
    %vm4360 = vmand %vm4208, %vm3904
    %vm4361 = vmand %vm4209, %vm3905
    %vm4362 = vmand %vm4210, %vm3906
    %vm4363 = vmand %vm4211, %vm3907
    %vm4364 = vmand %vm4212, %vm3908
    %vm4365 = vmand %vm4213, %vm3909
    %vm4366 = vmand %vm4214, %vm3910
    %vm4367 = vmand %vm4215, %vm3911
    %vm4368 = vmand %vm4216, %vm3912
    %vm4369 = vmand %vm4217, %vm3913
    %vm4370 = vmand %vm4218, %vm3914
    %vm4371 = vmand %vm4219, %vm3915
    %vm4372 = vmand %vm4220, %vm3916
    %vm4373 = vmand %vm4221, %vm3917
    %vm4374 = vmand %vm4222, %vm3918
    %vm4375 = vmand %vm4223, %vm3919
    %vm4376 = vmand %vm4224, %vm3920
    %vm4377 = vmand %vm4225, %vm3921
    %vm4378 = vmand %vm4226, %vm3922
    %vm4379 = vmand %vm4227, %vm3923
    %vm4380 = vmand %vm4228, %vm3924
    %vm4381 = vmand %vm4229, %vm3925
    %vm4382 = vmand %vm4230, %vm3926
    %vm4383 = vmand %vm4231, %vm3927
    %vm4384 = vmand %vm4232, %vm3928
    %vm4385 = vmand %vm4233, %vm3929
    %vm4386 = vmand %vm4234, %vm3930
    %vm4387 = vmand %vm4235, %vm3931
    %vm4388 = vmand %vm4236, %vm3932
    %vm4389 = vmand %vm4237, %vm3933
    %vm4390 = vmand %vm4238, %vm3934
    %vm4391 = vmand %vm4239, %vm3935
    %vm4392 = vmand %vm4240, %vm3936
    %vm4393 = vmand %vm4241, %vm3937
    %vm4394 = vmand %vm4242, %vm3938
    %vm4395 = vmand %vm4243, %vm3939
    %vm4396 = vmand %vm4244, %vm3940
    %vm4397 = vmand %vm4245, %vm3941
    %vm4398 = vmand %vm4246, %vm3942
    %vm4399 = vmand %vm4247, %vm3943
    %vm4400 = vmand %vm4248, %vm3944
    %vm4401 = vmand %vm4249, %vm3945
    %vm4402 = vmand %vm4250, %vm3946
    %vm4403 = vmand %vm4251, %vm3947
    %vm4404 = vmand %vm4252, %vm3948
    %vm4405 = vmand %vm4253, %vm3949
    %vm4406 = vmand %vm4254, %vm3950
    %vm4407 = vmand %vm4255, %vm3951
    %vm4408 = vmand %vm4256, %vm3952
    %vm4409 = vmand %vm4257, %vm3953
    %vm4410 = vmand %vm4258, %vm3954
    %vm4411 = vmand %vm4259, %vm3955
    %vm4412 = vmand %vm4260, %vm3956
    %vm4413 = vmand %vm4261, %vm3957
    %vm4414 = vmand %vm4262, %vm3958
    %vm4415 = vmand %vm4263, %vm3959
    %vm4416 = vmand %vm4264, %vm3960
    %vm4417 = vmand %vm4265, %vm3961
    %vm4418 = vmand %vm4266, %vm3962
    %vm4419 = vmand %vm4267, %vm3963
    %vm4420 = vmand %vm4268, %vm3964
    %vm4421 = vmand %vm4269, %vm3965
    %vm4422 = vmand %vm4270, %vm3966
    %vm4423 = vmand %vm4271, %vm3967
    %vm4424 = vmand %vm4272, %vm3968
    %vm4425 = vmand %vm4273, %vm3969
    %vm4426 = vmand %vm4274, %vm3970
    %vm4427 = vmand %vm4275, %vm3971
    %vm4428 = vmand %vm4276, %vm3972
    %vm4429 = vmand %vm4277, %vm3973
    %vm4430 = vmand %vm4278, %vm3974
    %vm4431 = vmand %vm4279, %vm3975
    %vm4432 = vmand %vm4280, %vm3976
    %vm4433 = vmand %vm4281, %vm3977
    %vm4434 = vmand %vm4282, %vm3978
    %vm4435 = vmand %vm4283, %vm3979
    %vm4436 = vmand %vm4284, %vm3980
    %vm4437 = vmand %vm4285, %vm3981
    %vm4438 = vmand %vm4286, %vm3982
    %vm4439 = vmand %vm4287, %vm3983
    %vm4440 = vmand %vm4288, %vm3984
    %vm4441 = vmand %vm4289, %vm3985
    %vm4442 = vmand %vm4290, %vm3986
    %vm4443 = vmand %vm4291, %vm3987
    %vm4444 = vmand %vm4292, %vm3988
    %vm4445 = vmand %vm4293, %vm3989
    %vm4446 = vmand %vm4294, %vm3990
    %vm4447 = vmand %vm4295, %vm3991
    %vm4448 = vmand %vm4296, %vm3992
    %vm4449 = vmand %vm4297, %vm3993
    %vm4450 = vmand %vm4298, %vm3994
    %vm4451 = vmand %vm4299, %vm3995
    %vm4452 = vmand %vm4300, %vm3996
    %vm4453 = vmand %vm4301, %vm3997
    %vm4454 = vmand %vm4302, %vm3998
    %vm4455 = vmand %vm4303, %vm3999
    %vm4456 = vmand %vm4304, %vm4000
    %vm4457 = vmand %vm4305, %vm4001
    %vm4458 = vmand %vm4306, %vm4002
    %vm4459 = vmand %vm4307, %vm4003
    %v4460 = vsel %vm4308, 1.0, 0.0
    %v4461 = vsel %vm4309, 1.0, 0.0
    %v4462 = vsel %vm4310, 1.0, 0.0
    %v4463 = vsel %vm4311, 1.0, 0.0
    %v4464 = vsel %vm4312, 1.0, 0.0
    %v4465 = vsel %vm4313, 1.0, 0.0
    %v4466 = vsel %vm4314, 1.0, 0.0
    %v4467 = vsel %vm4315, 1.0, 0.0
    %v4468 = vsel %vm4316, 1.0, 0.0
    %v4469 = vsel %vm4317, 1.0, 0.0
    %v4470 = vsel %vm4318, 1.0, 0.0
    %v4471 = vsel %vm4319, 1.0, 0.0
    %v4472 = vsel %vm4320, 1.0, 0.0
    %v4473 = vsel %vm4321, 1.0, 0.0
    %v4474 = vsel %vm4322, 1.0, 0.0
    %v4475 = vsel %vm4323, 1.0, 0.0
    %v4476 = vsel %vm4324, 1.0, 0.0
    %v4477 = vsel %vm4325, 1.0, 0.0
    %v4478 = vsel %vm4326, 1.0, 0.0
    %v4479 = vsel %vm4327, 1.0, 0.0
    %v4480 = vsel %vm4328, 1.0, 0.0
    %v4481 = vsel %vm4329, 1.0, 0.0
    %v4482 = vsel %vm4330, 1.0, 0.0
    %v4483 = vsel %vm4331, 1.0, 0.0
    %v4484 = vsel %vm4332, 1.0, 0.0
    %v4485 = vsel %vm4333, 1.0, 0.0
    %v4486 = vsel %vm4334, 1.0, 0.0
    %v4487 = vsel %vm4335, 1.0, 0.0
    %v4488 = vsel %vm4336, 1.0, 0.0
    %v4489 = vsel %vm4337, 1.0, 0.0
    %v4490 = vsel %vm4338, 1.0, 0.0
    %v4491 = vsel %vm4339, 1.0, 0.0
    %v4492 = vsel %vm4340, 1.0, 0.0
    %v4493 = vsel %vm4341, 1.0, 0.0
    %v4494 = vsel %vm4342, 1.0, 0.0
    %v4495 = vsel %vm4343, 1.0, 0.0
    %v4496 = vsel %vm4344, 1.0, 0.0
    %v4497 = vsel %vm4345, 1.0, 0.0
    %v4498 = vsel %vm4346, 1.0, 0.0
    %v4499 = vsel %vm4347, 1.0, 0.0
    %v4500 = vsel %vm4348, 1.0, 0.0
    %v4501 = vsel %vm4349, 1.0, 0.0
    %v4502 = vsel %vm4350, 1.0, 0.0
    %v4503 = vsel %vm4351, 1.0, 0.0
    %v4504 = vsel %vm4352, 1.0, 0.0
    %v4505 = vsel %vm4353, 1.0, 0.0
    %v4506 = vsel %vm4354, 1.0, 0.0
    %v4507 = vsel %vm4355, 1.0, 0.0
    %v4508 = vsel %vm4356, 1.0, 0.0
    %v4509 = vsel %vm4357, 1.0, 0.0
    %v4510 = vsel %vm4358, 1.0, 0.0
    %v4511 = vsel %vm4359, 1.0, 0.0
    %v4512 = vsel %vm4360, 1.0, 0.0
    %v4513 = vsel %vm4361, 1.0, 0.0
    %v4514 = vsel %vm4362, 1.0, 0.0
    %v4515 = vsel %vm4363, 1.0, 0.0
    %v4516 = vsel %vm4364, 1.0, 0.0
    %v4517 = vsel %vm4365, 1.0, 0.0
    %v4518 = vsel %vm4366, 1.0, 0.0
    %v4519 = vsel %vm4367, 1.0, 0.0
    %v4520 = vsel %vm4368, 1.0, 0.0
    %v4521 = vsel %vm4369, 1.0, 0.0
    %v4522 = vsel %vm4370, 1.0, 0.0
    %v4523 = vsel %vm4371, 1.0, 0.0
    %v4524 = vsel %vm4372, 1.0, 0.0
    %v4525 = vsel %vm4373, 1.0, 0.0
    %v4526 = vsel %vm4374, 1.0, 0.0
    %v4527 = vsel %vm4375, 1.0, 0.0
    %v4528 = vsel %vm4376, 1.0, 0.0
    %v4529 = vsel %vm4377, 1.0, 0.0
    %v4530 = vsel %vm4378, 1.0, 0.0
    %v4531 = vsel %vm4379, 1.0, 0.0
    %v4532 = vsel %vm4380, 1.0, 0.0
    %v4533 = vsel %vm4381, 1.0, 0.0
    %v4534 = vsel %vm4382, 1.0, 0.0
    %v4535 = vsel %vm4383, 1.0, 0.0
    %v4536 = vsel %vm4384, 1.0, 0.0
    %v4537 = vsel %vm4385, 1.0, 0.0
    %v4538 = vsel %vm4386, 1.0, 0.0
    %v4539 = vsel %vm4387, 1.0, 0.0
    %v4540 = vsel %vm4388, 1.0, 0.0
    %v4541 = vsel %vm4389, 1.0, 0.0
    %v4542 = vsel %vm4390, 1.0, 0.0
    %v4543 = vsel %vm4391, 1.0, 0.0
    %v4544 = vsel %vm4392, 1.0, 0.0
    %v4545 = vsel %vm4393, 1.0, 0.0
    %v4546 = vsel %vm4394, 1.0, 0.0
    %v4547 = vsel %vm4395, 1.0, 0.0
    %v4548 = vsel %vm4396, 1.0, 0.0
    %v4549 = vsel %vm4397, 1.0, 0.0
    %v4550 = vsel %vm4398, 1.0, 0.0
    %v4551 = vsel %vm4399, 1.0, 0.0
    %v4552 = vsel %vm4400, 1.0, 0.0
    %v4553 = vsel %vm4401, 1.0, 0.0
    %v4554 = vsel %vm4402, 1.0, 0.0
    %v4555 = vsel %vm4403, 1.0, 0.0
    %v4556 = vsel %vm4404, 1.0, 0.0
    %v4557 = vsel %vm4405, 1.0, 0.0
    %v4558 = vsel %vm4406, 1.0, 0.0
    %v4559 = vsel %vm4407, 1.0, 0.0
    %v4560 = vsel %vm4408, 1.0, 0.0
    %v4561 = vsel %vm4409, 1.0, 0.0
    %v4562 = vsel %vm4410, 1.0, 0.0
    %v4563 = vsel %vm4411, 1.0, 0.0
    %v4564 = vsel %vm4412, 1.0, 0.0
    %v4565 = vsel %vm4413, 1.0, 0.0
    %v4566 = vsel %vm4414, 1.0, 0.0
    %v4567 = vsel %vm4415, 1.0, 0.0
    %v4568 = vsel %vm4416, 1.0, 0.0
    %v4569 = vsel %vm4417, 1.0, 0.0
    %v4570 = vsel %vm4418, 1.0, 0.0
    %v4571 = vsel %vm4419, 1.0, 0.0
    %v4572 = vsel %vm4420, 1.0, 0.0
    %v4573 = vsel %vm4421, 1.0, 0.0
    %v4574 = vsel %vm4422, 1.0, 0.0
    %v4575 = vsel %vm4423, 1.0, 0.0
    %v4576 = vsel %vm4424, 1.0, 0.0
    %v4577 = vsel %vm4425, 1.0, 0.0
    %v4578 = vsel %vm4426, 1.0, 0.0
    %v4579 = vsel %vm4427, 1.0, 0.0
    %v4580 = vsel %vm4428, 1.0, 0.0
    %v4581 = vsel %vm4429, 1.0, 0.0
    %v4582 = vsel %vm4430, 1.0, 0.0
    %v4583 = vsel %vm4431, 1.0, 0.0
    %v4584 = vsel %vm4432, 1.0, 0.0
    %v4585 = vsel %vm4433, 1.0, 0.0
    %v4586 = vsel %vm4434, 1.0, 0.0
    %v4587 = vsel %vm4435, 1.0, 0.0
    %v4588 = vsel %vm4436, 1.0, 0.0
    %v4589 = vsel %vm4437, 1.0, 0.0
    %v4590 = vsel %vm4438, 1.0, 0.0
    %v4591 = vsel %vm4439, 1.0, 0.0
    %v4592 = vsel %vm4440, 1.0, 0.0
    %v4593 = vsel %vm4441, 1.0, 0.0
    %v4594 = vsel %vm4442, 1.0, 0.0
    %v4595 = vsel %vm4443, 1.0, 0.0
    %v4596 = vsel %vm4444, 1.0, 0.0
    %v4597 = vsel %vm4445, 1.0, 0.0
    %v4598 = vsel %vm4446, 1.0, 0.0
    %v4599 = vsel %vm4447, 1.0, 0.0
    %v4600 = vsel %vm4448, 1.0, 0.0
    %v4601 = vsel %vm4449, 1.0, 0.0
    %v4602 = vsel %vm4450, 1.0, 0.0
    %v4603 = vsel %vm4451, 1.0, 0.0
    %v4604 = vsel %vm4452, 1.0, 0.0
    %v4605 = vsel %vm4453, 1.0, 0.0
    %v4606 = vsel %vm4454, 1.0, 0.0
    %v4607 = vsel %vm4455, 1.0, 0.0
    %v4608 = vsel %vm4456, 1.0, 0.0
    %v4609 = vsel %vm4457, 1.0, 0.0
    %v4610 = vsel %vm4458, 1.0, 0.0
    %v4611 = vsel %vm4459, 1.0, 0.0
    %v4612 = vld [vmem:[#allocation7] sm:$0x1]
    %v4613 = vmul.f32 %v4460, %v1264
    %v4614 = vmul.f32 %v4461, %v1266
    %v4615 = vmul.f32 %v4462, %v1268
    %v4616 = vmul.f32 %v4463, %v1270
    %v4617 = vmul.f32 %v4464, %v1272
    %v4618 = vmul.f32 %v4465, %v1274
    %v4619 = vmul.f32 %v4466, %v1276
    %v4620 = vmul.f32 %v4467, %v1278
    %v4621 = vmul.f32 %v4468, %v1280
    %v4622 = vmul.f32 %v4469, %v1282
    %v4623 = vmul.f32 %v4470, %v1284
    %v4624 = vmul.f32 %v4471, %v1286
    %v4625 = vmul.f32 %v4472, %v1288
    %v4626 = vmul.f32 %v4473, %v1290
    %v4627 = vmul.f32 %v4474, %v1292
    %v4628 = vmul.f32 %v4475, %v1294
    %v4629 = vmul.f32 %v4476, %v1296
    %v4630 = vmul.f32 %v4477, %v1298
    %v4631 = vmul.f32 %v4478, %v1300
    %v4632 = vmul.f32 %v4479, %v1302
    %v4633 = vmul.f32 %v4480, %v1304
    %v4634 = vmul.f32 %v4481, %v1306
    %v4635 = vmul.f32 %v4482, %v1308
    %v4636 = vmul.f32 %v4483, %v1310
    %v4637 = vmul.f32 %v4484, %v1312
    %v4638 = vmul.f32 %v4485, %v1314
    %v4639 = vmul.f32 %v4486, %v1316
    %v4640 = vmul.f32 %v4487, %v1318
    %v4641 = vmul.f32 %v4488, %v1320
    %v4642 = vmul.f32 %v4489, %v1322
    %v4643 = vmul.f32 %v4490, %v1324
    %v4644 = vmul.f32 %v4491, %v1326
    %v4645 = vmul.f32 %v4492, %v1328
    %v4646 = vmul.f32 %v4493, %v1330
    %v4647 = vmul.f32 %v4494, %v1332
    %v4648 = vmul.f32 %v4495, %v1334
    %v4649 = vmul.f32 %v4496, %v1336
    %v4650 = vmul.f32 %v4497, %v1338
    %v4651 = vmul.f32 %v4498, %v1340
    %v4652 = vmul.f32 %v4499, %v1342
    %v4653 = vmul.f32 %v4500, %v1344
    %v4654 = vmul.f32 %v4501, %v1346
    %v4655 = vmul.f32 %v4502, %v1348
    %v4656 = vmul.f32 %v4503, %v1350
    %v4657 = vmul.f32 %v4504, %v1352
    %v4658 = vmul.f32 %v4505, %v1354
    %v4659 = vmul.f32 %v4506, %v1356
    %v4660 = vmul.f32 %v4507, %v1358
    %v4661 = vmul.f32 %v4508, %v1360
    %v4662 = vmul.f32 %v4509, %v1362
    %v4663 = vmul.f32 %v4510, %v1364
    %v4664 = vmul.f32 %v4511, %v1366
    %v4665 = vmul.f32 %v4512, %v1368
    %v4666 = vmul.f32 %v4513, %v1370
    %v4667 = vmul.f32 %v4514, %v1372
    %v4668 = vmul.f32 %v4515, %v1374
    %v4669 = vmul.f32 %v4516, %v1376
    %v4670 = vmul.f32 %v4517, %v1378
    %v4671 = vmul.f32 %v4518, %v1380
    %v4672 = vmul.f32 %v4519, %v1382
    %v4673 = vmul.f32 %v4520, %v1384
    %v4674 = vmul.f32 %v4521, %v1386
    %v4675 = vmul.f32 %v4522, %v1388
    %v4676 = vmul.f32 %v4523, %v1390
    %v4677 = vmul.f32 %v4524, %v1392
    %v4678 = vmul.f32 %v4525, %v1394
    %v4679 = vmul.f32 %v4526, %v1396
    %v4680 = vmul.f32 %v4527, %v1398
    %v4681 = vmul.f32 %v4528, %v1400
    %v4682 = vmul.f32 %v4529, %v1402
    %v4683 = vmul.f32 %v4530, %v1404
    %v4684 = vmul.f32 %v4531, %v1406
    %v4685 = vmul.f32 %v4532, %v1408
    %v4686 = vmul.f32 %v4533, %v1410
    %v4687 = vmul.f32 %v4534, %v1412
    %v4688 = vmul.f32 %v4535, %v1414
    %v4689 = vmul.f32 %v4536, %v1416
    %v4690 = vmul.f32 %v4537, %v1418
    %v4691 = vmul.f32 %v4538, %v1420
    %v4692 = vmul.f32 %v4539, %v1422
    %v4693 = vmul.f32 %v4540, %v1424
    %v4694 = vmul.f32 %v4541, %v1426
    %v4695 = vmul.f32 %v4542, %v1428
    %v4696 = vmul.f32 %v4543, %v1430
    %v4697 = vmul.f32 %v4544, %v1432
    %v4698 = vmul.f32 %v4545, %v1434
    %v4699 = vmul.f32 %v4546, %v1436
    %v4700 = vmul.f32 %v4547, %v1438
    %v4701 = vmul.f32 %v4548, %v1440
    %v4702 = vmul.f32 %v4549, %v1442
    %v4703 = vmul.f32 %v4550, %v1444
    %v4704 = vmul.f32 %v4551, %v1446
    %v4705 = vmul.f32 %v4552, %v1448
    %v4706 = vmul.f32 %v4553, %v1450
    %v4707 = vmul.f32 %v4554, %v1452
    %v4708 = vmul.f32 %v4555, %v1454
    %v4709 = vmul.f32 %v4556, %v1456
    %v4710 = vmul.f32 %v4557, %v1458
    %v4711 = vmul.f32 %v4558, %v1460
    %v4712 = vmul.f32 %v4559, %v1462
    %v4713 = vmul.f32 %v4560, %v1464
    %v4714 = vmul.f32 %v4561, %v1466
    %v4715 = vmul.f32 %v4562, %v1468
    %v4716 = vmul.f32 %v4563, %v1470
    %v4717 = vmul.f32 %v4564, %v1472
    %v4718 = vmul.f32 %v4565, %v1474
    %v4719 = vmul.f32 %v4566, %v1476
    %v4720 = vmul.f32 %v4567, %v1478
    %v4721 = vmul.f32 %v4568, %v1480
    %v4722 = vmul.f32 %v4569, %v1482
    %v4723 = vmul.f32 %v4570, %v1484
    %v4724 = vmul.f32 %v4571, %v1486
    %v4725 = vmul.f32 %v4572, %v1488
    %v4726 = vmul.f32 %v4573, %v1490
    %v4727 = vmul.f32 %v4574, %v1492
    %v4728 = vmul.f32 %v4575, %v1494
    %v4729 = vmul.f32 %v4576, %v1496
    %v4730 = vmul.f32 %v4577, %v1498
    %v4731 = vmul.f32 %v4578, %v1500
    %v4732 = vmul.f32 %v4579, %v1502
    %v4733 = vmul.f32 %v4580, %v1504
    %v4734 = vmul.f32 %v4581, %v1506
    %v4735 = vmul.f32 %v4582, %v1508
    %v4736 = vmul.f32 %v4583, %v1510
    %v4737 = vmul.f32 %v4584, %v1512
    %v4738 = vmul.f32 %v4585, %v1514
    %v4739 = vmul.f32 %v4586, %v1516
    %v4740 = vmul.f32 %v4587, %v1518
    %v4741 = vmul.f32 %v4588, %v1520
    %v4742 = vmul.f32 %v4589, %v1522
    %v4743 = vmul.f32 %v4590, %v1524
    %v4744 = vmul.f32 %v4591, %v1526
    %v4745 = vmul.f32 %v4592, %v1528
    %v4746 = vmul.f32 %v4593, %v1530
    %v4747 = vmul.f32 %v4594, %v1532
    %v4748 = vmul.f32 %v4595, %v1534
    %v4749 = vmul.f32 %v4596, %v1536
    %v4750 = vmul.f32 %v4597, %v1538
    %v4751 = vmul.f32 %v4598, %v1540
    %v4752 = vmul.f32 %v4599, %v1542
    %v4753 = vmul.f32 %v4600, %v1544
    %v4754 = vmul.f32 %v4601, %v1546
    %v4755 = vmul.f32 %v4602, %v1548
    %v4756 = vmul.f32 %v4603, %v1550
    %v4757 = vmul.f32 %v4604, %v1552
    %v4758 = vmul.f32 %v4605, %v1554
    %v4759 = vmul.f32 %v4606, %v1556
    %v4760 = vmul.f32 %v4607, %v1558
    %v4761 = vmul.f32 %v4608, %v1560
    %v4762 = vmul.f32 %v4609, %v1562
    %v4763 = vmul.f32 %v4610, %v1564
    %v4764 = vmul.f32 %v4611, %v1566
    %v4765 = vadd.f32 %v4613, %v4614
    %v4766 = vadd.f32 %v4765, %v4615
    %v4767 = vadd.f32 %v4766, %v4616
    %v4768 = vadd.f32 %v4767, %v4617
    %v4769 = vadd.f32 %v4768, %v4618
    %v4770 = vadd.f32 %v4769, %v4619
    %v4771 = vadd.f32 %v4770, %v4620
    %v4772 = vadd.f32 %v4771, %v4621
    %v4773 = vadd.f32 %v4772, %v4622
    %v4774 = vadd.f32 %v4773, %v4623
    %v4775 = vadd.f32 %v4774, %v4624
    %v4776 = vadd.f32 %v4775, %v4625
    %v4777 = vadd.f32 %v4776, %v4626
    %v4778 = vadd.f32 %v4777, %v4627
    %v4779 = vadd.f32 %v4778, %v4628
    %v4780 = vadd.f32 %v4779, %v4629
    %v4781 = vadd.f32 %v4780, %v4630
    %v4782 = vadd.f32 %v4781, %v4631
    %v4783 = vadd.f32 %v4782, %v4632
    %v4784 = vadd.f32 %v4783, %v4633
    %v4785 = vadd.f32 %v4784, %v4634
    %v4786 = vadd.f32 %v4785, %v4635
    %v4787 = vadd.f32 %v4786, %v4636
    %v4788 = vadd.f32 %v4787, %v4637
    %v4789 = vadd.f32 %v4788, %v4638
    %v4790 = vadd.f32 %v4789, %v4639
    %v4791 = vadd.f32 %v4790, %v4640
    %v4792 = vadd.f32 %v4791, %v4641
    %v4793 = vadd.f32 %v4792, %v4642
    %v4794 = vadd.f32 %v4793, %v4643
    %v4795 = vadd.f32 %v4794, %v4644
    %v4796 = vadd.f32 %v4795, %v4645
    %v4797 = vadd.f32 %v4796, %v4646
    %v4798 = vadd.f32 %v4797, %v4647
    %v4799 = vadd.f32 %v4798, %v4648
    %v4800 = vadd.f32 %v4799, %v4649
    %v4801 = vadd.f32 %v4800, %v4650
    %v4802 = vadd.f32 %v4801, %v4651
    %v4803 = vadd.f32 %v4802, %v4652
    %v4804 = vadd.f32 %v4803, %v4653
    %v4805 = vadd.f32 %v4804, %v4654
    %v4806 = vadd.f32 %v4805, %v4655
    %v4807 = vadd.f32 %v4806, %v4656
    %v4808 = vadd.f32 %v4807, %v4657
    %v4809 = vadd.f32 %v4808, %v4658
    %v4810 = vadd.f32 %v4809, %v4659
    %v4811 = vadd.f32 %v4810, %v4660
    %v4812 = vadd.f32 %v4811, %v4661
    %v4813 = vadd.f32 %v4812, %v4662
    %v4814 = vadd.f32 %v4813, %v4663
    %v4815 = vadd.f32 %v4814, %v4664
    %v4816 = vadd.f32 %v4815, %v4665
    %v4817 = vadd.f32 %v4816, %v4666
    %v4818 = vadd.f32 %v4817, %v4667
    %v4819 = vadd.f32 %v4818, %v4668
    %v4820 = vadd.f32 %v4819, %v4669
    %v4821 = vadd.f32 %v4820, %v4670
    %v4822 = vadd.f32 %v4821, %v4671
    %v4823 = vadd.f32 %v4822, %v4672
    %v4824 = vadd.f32 %v4823, %v4673
    %v4825 = vadd.f32 %v4824, %v4674
    %v4826 = vadd.f32 %v4825, %v4675
    %v4827 = vadd.f32 %v4826, %v4676
    %v4828 = vadd.f32 %v4827, %v4677
    %v4829 = vadd.f32 %v4828, %v4678
    %v4830 = vadd.f32 %v4829, %v4679
    %v4831 = vadd.f32 %v4830, %v4680
    %v4832 = vadd.f32 %v4831, %v4681
    %v4833 = vadd.f32 %v4832, %v4682
    %v4834 = vadd.f32 %v4833, %v4683
    %v4835 = vadd.f32 %v4834, %v4684
    %v4836 = vadd.f32 %v4835, %v4685
    %v4837 = vadd.f32 %v4836, %v4686
    %v4838 = vadd.f32 %v4837, %v4687
    %v4839 = vadd.f32 %v4838, %v4688
    %v4840 = vadd.f32 %v4839, %v4689
    %v4841 = vadd.f32 %v4840, %v4690
    %v4842 = vadd.f32 %v4841, %v4691
    %v4843 = vadd.f32 %v4842, %v4692
    %v4844 = vadd.f32 %v4843, %v4693
    %v4845 = vadd.f32 %v4844, %v4694
    %v4846 = vadd.f32 %v4845, %v4695
    %v4847 = vadd.f32 %v4846, %v4696
    %v4848 = vadd.f32 %v4847, %v4697
    %v4849 = vadd.f32 %v4848, %v4698
    %v4850 = vadd.f32 %v4849, %v4699
    %v4851 = vadd.f32 %v4850, %v4700
    %v4852 = vadd.f32 %v4851, %v4701
    %v4853 = vadd.f32 %v4852, %v4702
    %v4854 = vadd.f32 %v4853, %v4703
    %v4855 = vadd.f32 %v4854, %v4704
    %v4856 = vadd.f32 %v4855, %v4705
    %v4857 = vadd.f32 %v4856, %v4706
    %v4858 = vadd.f32 %v4857, %v4707
    %v4859 = vadd.f32 %v4858, %v4708
    %v4860 = vadd.f32 %v4859, %v4709
    %v4861 = vadd.f32 %v4860, %v4710
    %v4862 = vadd.f32 %v4861, %v4711
    %v4863 = vadd.f32 %v4862, %v4712
    %v4864 = vadd.f32 %v4863, %v4713
    %v4865 = vadd.f32 %v4864, %v4714
    %v4866 = vadd.f32 %v4865, %v4715
    %v4867 = vadd.f32 %v4866, %v4716
    %v4868 = vadd.f32 %v4867, %v4717
    %v4869 = vadd.f32 %v4868, %v4718
    %v4870 = vadd.f32 %v4869, %v4719
    %v4871 = vadd.f32 %v4870, %v4720
    %v4872 = vadd.f32 %v4871, %v4721
    %v4873 = vadd.f32 %v4872, %v4722
    %v4874 = vadd.f32 %v4873, %v4723
    %v4875 = vadd.f32 %v4874, %v4724
    %v4876 = vadd.f32 %v4875, %v4725
    %v4877 = vadd.f32 %v4876, %v4726
    %v4878 = vadd.f32 %v4877, %v4727
    %v4879 = vadd.f32 %v4878, %v4728
    %v4880 = vadd.f32 %v4879, %v4729
    %v4881 = vadd.f32 %v4880, %v4730
    %v4882 = vadd.f32 %v4881, %v4731
    %v4883 = vadd.f32 %v4882, %v4732
    %v4884 = vadd.f32 %v4883, %v4733
    %v4885 = vadd.f32 %v4884, %v4734
    %v4886 = vadd.f32 %v4885, %v4735
    %v4887 = vadd.f32 %v4886, %v4736
    %v4888 = vadd.f32 %v4887, %v4737
    %v4889 = vadd.f32 %v4888, %v4738
    %v4890 = vadd.f32 %v4889, %v4739
    %v4891 = vadd.f32 %v4890, %v4740
    %v4892 = vadd.f32 %v4891, %v4741
    %v4893 = vadd.f32 %v4892, %v4742
    %v4894 = vadd.f32 %v4893, %v4743
    %v4895 = vadd.f32 %v4894, %v4744
    %v4896 = vadd.f32 %v4895, %v4745
    %v4897 = vadd.f32 %v4896, %v4746
    %v4898 = vadd.f32 %v4897, %v4747
    %v4899 = vadd.f32 %v4898, %v4748
    %v4900 = vadd.f32 %v4899, %v4749
    %v4901 = vadd.f32 %v4900, %v4750
    %v4902 = vadd.f32 %v4901, %v4751
    %v4903 = vadd.f32 %v4902, %v4752
    %v4904 = vadd.f32 %v4903, %v4753
    %v4905 = vadd.f32 %v4904, %v4754
    %v4906 = vadd.f32 %v4905, %v4755
    %v4907 = vadd.f32 %v4906, %v4756
    %v4908 = vadd.f32 %v4907, %v4757
    %v4909 = vadd.f32 %v4908, %v4758
    %v4910 = vadd.f32 %v4909, %v4759
    %v4911 = vadd.f32 %v4910, %v4760
    %v4912 = vadd.f32 %v4911, %v4761
    %v4913 = vadd.f32 %v4912, %v4762
    %v4914 = vadd.f32 %v4913, %v4763
    %v4915 = vadd.f32 %v4914, %v4764
    %v4916 = vrot.slane %v4915, 4
    %v4917 = vadd.f32 %v4915, %v4916
    %v4918 = vrot.slane %v4917, 2
    %v4919 = vadd.f32 %v4917, %v4918
    %v4920 = vrot.slane %v4919, 1
    %v4921 = vadd.f32 %v4919, %v4920
    %v4922 = vadd.f32 %v4612, %v4921
    %4923 = vst [vmem:[#allocation7] sm:$0x1] %v4922
    // Predicated region
    $region30: #{tpu_custom_call.1} parent=1 // pred_check
      _
    $region31: #{tpu_custom_call.1} parent=1 // pred_check_branch
      %4925 = sbr.rel (0) target = $region33
    $region32: #{tpu_custom_call.1} parent=1 // pred_region
      %s4927 = ssub.s32 16, 16
      %4928 = vsyncadd [#allocation4], %s4927
      %s4930 = sshll.u32 [#allocation7], 4
      %s4931 = int_to_ptr.vmem [resolvable:$true] %s4930
      %4933 = dma.vmem_to_hbm [thread:$0]  %s4931, 16, %s4, [#allocation4]
    $region33: #{tpu_custom_call.1} parent=1 // pred_fallthru
      _
    // Predicated region
    $region34: #{tpu_custom_call.1} parent=1 // pred_check
      _
    $region35: #{tpu_custom_call.1} parent=1 // pred_check_branch
      %4935 = sbr.rel (0) target = $region37
    $region36: #{tpu_custom_call.1} parent=1 // pred_region
      %4936 = dma.done [#allocation4], 16
    $region37: #{tpu_custom_call.1} parent=1 // pred_fallthru
      _
    %4937 = vsyncpa [#allocation3], 1
    %4938 = vsyncpa [#allocation6], 1
    %4939 = vsyncpa [#allocation4], 1

</llo_original>
